<compile_context>
chip_gen: v5e
topology: v5e:2x2
jax: 0.10.0
libtpu: 0.0.40
codegen_flags: <defaults>
</compile_context>

<pallas_src>
import functools

import jax
import jax.numpy as jnp
from jax import lax
from jax.experimental import pallas as pl
from jax.experimental.pallas import tpu as pltpu


_LANE = 128
_ROW_PAD = 512                      # pad N so tk up to 512 always divides
_DEFAULT_TM = 512                   # >=256 keeps the 256-wide MXUs fed
_DEFAULT_TK = 1024
_VMEM_BUDGET = 40 * 1024 * 1024     # stay well under v7x's 64 MiB physical VMEM
_VMEM_LIMIT = 48 * 1024 * 1024


# ----------------------------------------------------------------------------
# Tiling helpers
# ----------------------------------------------------------------------------
def _round_up(x, m):
    return ((x + m - 1) // m) * m


def _pad2d(x, rows, cols):
    pr, pc = rows - x.shape[0], cols - x.shape[1]
    if pr == 0 and pc == 0:
        return x
    return jnp.pad(x, ((0, pr), (0, pc)))


def _vmem_estimate(tm, tk, k_pad, d_pad, e_resident):
    a_bytes = 2 * tm * tk * 2                              # 2x bf16 A tiles
    e_bytes = 2 * (k_pad if e_resident else tk) * d_pad * 2
    o_bytes = 2 * tm * d_pad * 4                           # 2x f32 out tiles
    acc_bytes = tm * d_pad * 4
    return a_bytes + e_bytes + o_bytes + acc_bytes


def _choose_tiles(n_pad, k_pad, d_pad, tm_req, tk_req, budget):
    def opts(n, cands):
        o = [c for c in cands if c <= n and n % c == 0]
        return o if o else [n]

    tm_opts = opts(n_pad, [c for c in (512, 256, 128, 64, 32, 16, 8) if c <= tm_req])
    # keep >= 2 row tiles so the "parallel" axis can shard over both v7x cores
    tm_opts = [t for t in tm_opts if n_pad // t >= 2] or tm_opts
    tk_opts = opts(k_pad, [c for c in (2048, 1024, 512, 256, 128) if c <= tk_req])

    ti, ki = 0, 0
    tm, tk = tm_opts[ti], tk_opts[ki]
    while _vmem_estimate(tm, tk, k_pad, d_pad, False) > budget:
        if ki + 1 < len(tk_opts):
            ki += 1
            tk = tk_opts[ki]
        elif ti + 1 < len(tm_opts):
            ti += 1
            tm = tm_opts[ti]
        else:
            break
    e_resident = _vmem_estimate(tm, tk, k_pad, d_pad, True) <= budget
    return tm, tk, e_resident


def _propagation_tiles(n_nodes, emb_dim):
    n_pad = _round_up(n_nodes, _ROW_PAD)
    d_pad = _round_up(max(emb_dim, _LANE), _LANE)
    tm, tk, e_res = _choose_tiles(n_pad, n_pad, d_pad,
                                  _DEFAULT_TM, _DEFAULT_TK, _VMEM_BUDGET)
    return n_pad, d_pad, tm, tk, e_res


# ----------------------------------------------------------------------------
# Fused node-dropout mask: deterministic per (seed, global row, global col).
# Pure int32 VPU ops (mul/add/xor/shift/compare) — no pltpu.prng_* needed, so
# the kernel runs both on real TPUs and under the interpret emulator.
# ----------------------------------------------------------------------------
def _i32(v):
    """Python int -> signed int32 value with the same 32-bit pattern."""
    v &= 0xFFFFFFFF
    return v - (1 << 32) if v >= (1 << 31) else v


_HASH_R = _i32(0x9E3779B1)
_HASH_C = _i32(0x85EBCA77)
_MIX_1 = _i32(0x7FEB352D)
_MIX_2 = _i32(0x846CA68B)


def _dropout_keep_scale(row_off, col_off, shape, seed, rate, inv_keep):
    """keep_mask * 1/(1-rate); keep iff u >= rate (== floor(1-rate+u) rule).

    Depends only on (seed, global row, global col), so it is tiling invariant
    and identical for every propagation layer in a forward pass (matching the
    reference, which samples the dropped adjacency once per forward)."""
    rows = lax.broadcasted_iota(jnp.int32, shape, 0) + row_off
    cols = lax.broadcasted_iota(jnp.int32, shape, 1) + col_off
    x = (rows * jnp.int32(_HASH_R) + cols * jnp.int32(_HASH_C)
         + jnp.int32(_i32(int(seed))))
    # lowbias32-style mix; int32 wrap-around arithmetic == uint32 bit pattern
    x = x ^ lax.shift_right_logical(x, 16)
    x = x * jnp.int32(_MIX_1)
    x = x ^ lax.shift_right_logical(x, 15)
    x = x * jnp.int32(_MIX_2)
    x = x ^ lax.shift_right_logical(x, 16)
    u24 = lax.shift_right_logical(x, 8)                  # uniform in [0, 2^24)
    thr = jnp.int32(int(float(rate) * float(1 << 24)))   # keep iff u >= rate
    return jnp.where(u24 >= thr, jnp.float32(inv_keep), jnp.float32(0.0))


# ----------------------------------------------------------------------------
# Pallas kernel: out = node_dropout(A_hat) @ E   (bf16 operands, f32 acc)
# Grid = (rows / tm, K / tk); K is the reduction ("arbitrary") axis.
# ----------------------------------------------------------------------------
def _make_propagate_kernel(apply_dropout, seed, rate, inv_keep, tm, tk,
                           e_resident):
    def kernel(a_ref, e_ref, o_ref, acc_ref):
        i = pl.program_id(0)
        k = pl.program_id(1)

        @pl.when(k == 0)
        def _():
            acc_ref[...] = jnp.zeros_like(acc_ref)

        a = a_ref[...]
        if apply_dropout:
            keep = _dropout_keep_scale(i * tm, k * tk, a_ref.shape,
                                       seed, rate, inv_keep)
            # mask math in f32 (v5e's VPU has no bf16), back to bf16 for MXU
            a = (a.astype(jnp.float32) * keep).astype(a_ref.dtype)

        if e_resident:
            e = e_ref[pl.ds(k * tk, tk), :]
        else:
            e = e_ref[...]

        acc_ref[...] += jnp.dot(a, e, preferred_element_type=jnp.float32)

        @pl.when(k == pl.num_programs(1) - 1)
        def _():
            o_ref[...] = acc_ref[...].astype(o_ref.dtype)

    return kernel


def graph_propagate(a_bf16, e_bf16, *, seed, rate, tm, tk, e_resident):
    """Returns (n_pad, d_pad) float32 = dropout(A_hat) @ E on the MXU."""
    n_pad, k_pad = a_bf16.shape
    k2, d_pad = e_bf16.shape
    assert k_pad == k2 and n_pad % tm == 0 and k_pad % tk == 0
    assert tm % 8 == 0 and tk % _LANE == 0 and d_pad % _LANE == 0

    apply_dropout = float(rate) > 0.0
    inv_keep = 1.0 / (1.0 - float(rate)) if apply_dropout else 1.0
    kernel = _make_propagate_kernel(apply_dropout, int(seed), float(rate),
                                    float(inv_keep), tm, tk, e_resident)

    if e_resident:
        # whole embedding operand: DMA'd once, stays VMEM-resident
        e_spec = pl.BlockSpec((k_pad, d_pad), lambda i, k: (0, 0))
    else:
        e_spec = pl.BlockSpec((tk, d_pad), lambda i, k: (k, 0))

    return pl.pallas_call(
        kernel,
        out_shape=jax.ShapeDtypeStruct((n_pad, d_pad), jnp.float32),
        grid_spec=pltpu.PrefetchScalarGridSpec(
            num_scalar_prefetch=0,
            grid=(n_pad // tm, k_pad // tk),            # reduction axis last
            in_specs=[
                pl.BlockSpec((tm, tk), lambda i, k: (i, k)),   # A tile
                e_spec,                                        # E operand
            ],
            out_specs=pl.BlockSpec((tm, d_pad), lambda i, k: (i, 0)),
            scratch_shapes=[pltpu.VMEM((tm, d_pad), jnp.float32)],
        ),
        compiler_params=pltpu.CompilerParams(
            dimension_semantics=("parallel", "arbitrary"),
            vmem_limit_bytes=_VMEM_LIMIT,
        ),
    )(a_bf16, e_bf16)


# ----------------------------------------------------------------------------
# Parameter init (xavier_uniform, deterministic) and forward glue.
# ----------------------------------------------------------------------------
def xavier_uniform(key, shape, dtype=jnp.float32):
    fan_in, fan_out = shape[0], shape[1]
    bound = (6.0 / (fan_in + fan_out)) ** 0.5
    return jax.random.uniform(key, shape, dtype, minval=-bound, maxval=bound)


def init_ngcf_params(key, n_user, n_item, emb_size, layer_sizes):
    keys = jax.random.split(key, 3 + 4 * len(layer_sizes))
    params = {
        "loss_weight": xavier_uniform(keys[0], (1, 1)),
        "user_emb": xavier_uniform(keys[1], (n_user, emb_size)),
        "item_emb": xavier_uniform(keys[2], (n_item, emb_size)),
    }
    # W_gc/b_gc/W_bi/b_bi exist for parity with the PyTorch module, but (as in
    # the reference forward) they are not used in the forward pass.
    dims = [emb_size] + list(layer_sizes)
    ki = 3
    for k in range(len(layer_sizes)):
        params[f"W_gc_{k}"] = xavier_uniform(keys[ki], (dims[k], dims[k + 1])); ki += 1
        params[f"b_gc_{k}"] = xavier_uniform(keys[ki], (1, dims[k + 1])); ki += 1
        params[f"W_bi_{k}"] = xavier_uniform(keys[ki], (dims[k], dims[k + 1])); ki += 1
        params[f"b_bi_{k}"] = xavier_uniform(keys[ki], (1, dims[k + 1])); ki += 1
    return params


def ngcf_forward(params, norm_adj, users, pos_items, neg_items, *,
                 n_user, n_layers, node_dropout, dropout_seed, drop_flag=True):
    n_nodes = norm_adj.shape[0]
    emb_dim = params["user_emb"].shape[1]
    n_pad, d_pad, tm, tk, e_res = _propagation_tiles(n_nodes, emb_dim)

    # In a training loop the padded bf16 adjacency should be prepared once;
    # here it is fused into the jit-ed forward (one cast, reused for L layers).
    a_bf16 = _pad2d(norm_adj, n_pad, n_pad).astype(jnp.bfloat16)
    rate = float(node_dropout) if drop_flag else 0.0

    ego = jnp.concatenate([params["user_emb"], params["item_emb"]], axis=0)
    layer_embs = [ego]
    e = _pad2d(ego, n_pad, d_pad).astype(jnp.bfloat16)
    for _ in range(n_layers):
        out = graph_propagate(a_bf16, e, seed=dropout_seed, rate=rate,
                              tm=tm, tk=tk, e_resident=e_res)   # (n_pad, d_pad) f32
        layer_embs.append(out[:n_nodes, :emb_dim])
        e = out.astype(jnp.bfloat16)        # padded rows/cols stay exactly zero

    # Gather the batch rows per layer, then concatenate: never materializes the
    # full (N, D*(L+1)) matrix in HBM.
    u_idx = users
    p_idx = n_user + pos_items
    n_idx = n_user + neg_items
    u_g = jnp.concatenate([x[u_idx] for x in layer_embs], axis=1)
    pos_g = jnp.concatenate([x[p_idx] for x in layer_embs], axis=1)
    neg_g = jnp.concatenate([x[n_idx] for x in layer_embs], axis=1)
    return u_g, pos_g, neg_g


# ----------------------------------------------------------------------------
# Plain-JAX reference (same bf16 operand rounding as the kernel) + checks
# ----------------------------------------------------------------------------
def reference_dropped_adj(norm_adj, *, seed, rate):
    """Plain-JAX replica of the kernel's fused dropout (same hash, same
    rounding): node_dropout(bf16(norm_adj)) rounded to bf16, returned as f32."""
    n = norm_adj.shape[0]
    keep = _dropout_keep_scale(0, 0, (n, n), seed, rate, 1.0 / (1.0 - rate))
    a = norm_adj.astype(jnp.bfloat16).astype(jnp.float32)
    return (a * keep).astype(jnp.bfloat16).astype(jnp.float32)


def reference_forward(params, norm_adj, users, pos_items, neg_items, *,
                      n_user, n_layers, a_drop=None):
    if a_drop is None:
        a = norm_adj.astype(jnp.bfloat16).astype(jnp.float32)
    else:
        a = a_drop
    ego = jnp.concatenate([params["user_emb"], params["item_emb"]], axis=0)
    embs = [ego]
    e = ego
    for _ in range(n_layers):
        e = jnp.dot(a, e.astype(jnp.bfloat16).astype(jnp.float32),
                    precision=jax.lax.Precision.HIGHEST)
        embs.append(e)
    u = jnp.concatenate([x[users] for x in embs], axis=1)
    p = jnp.concatenate([x[n_user + pos_items] for x in embs], axis=1)
    n = jnp.concatenate([x[n_user + neg_items] for x in embs], axis=1)
    return u, p, n


def _check_close(name, got, want, atol=2e-3, rtol=2e-3):
    if not bool(jnp.allclose(got, want, atol=atol, rtol=rtol)):
        raise AssertionError(
            f"{name}: max|diff|={float(jnp.max(jnp.abs(got - want))):.3e}")


# ----------------------------------------------------------------------------
if __name__ == "__main__":
    # Small, TPU-friendly shapes: N = n_user + n_item = 512 (pads to 512),
    # emb_size = 64 (pads to 128 lanes).
    n_user, n_item = 200, 312
    N = n_user + n_item
    emb_size = 64
    layer_sizes = [64, 64]          # args.layer_size = '[64, 64]'
    node_dropout = 0.1              # args.node_dropout = [0.1]
    batch = 8
    dropout_seed = 1234
    n_layers = len(layer_sizes)

    root = jax.random.PRNGKey(0)
    k_param, k_adj, k_u, k_p, k_n = jax.random.split(root, 5)

    params = init_ngcf_params(k_param, n_user, n_item, emb_size, layer_sizes)

    # Synthetic symmetric-normalized adjacency (dense stand-in for norm_adj).
    k_adj1, k_adj2 = jax.random.split(k_adj)
    mask = jax.random.bernoulli(k_adj1, p=0.05, shape=(N, N)).astype(jnp.float32)
    vals = jax.random.uniform(k_adj2, (N, N), jnp.float32)
    adj = mask * vals
    adj = adj + adj.T
    deg = jnp.maximum(adj.sum(axis=1), 1e-8)
    d_inv_sqrt = 1.0 / jnp.sqrt(deg)
    norm_adj = adj * d_inv_sqrt[:, None] * d_inv_sqrt[None, :]

    users = jax.random.randint(k_u, (batch,), 0, n_user)
    pos_items = jax.random.randint(k_p, (batch,), 0, n_item)
    neg_items = jax.random.randint(k_n, (batch,), 0, n_item)

    common = dict(n_user=n_user, n_layers=n_layers,
                  node_dropout=node_dropout, dropout_seed=dropout_seed)
    fwd_drop = jax.jit(functools.partial(ngcf_forward, drop_flag=True, **common))
    fwd_nodrop = jax.jit(functools.partial(ngcf_forward, drop_flag=False, **common))

    u_g, pos_g, neg_g = fwd_drop(params, norm_adj, users, pos_items, neg_items)
    u_g0, pos_g0, neg_g0 = fwd_nodrop(params, norm_adj, users, pos_items, neg_items)
    jax.block_until_ready((u_g, pos_g, neg_g, u_g0, pos_g0, neg_g0))

    expect_dim = emb_size * (n_layers + 1)
    assert u_g.shape == (batch, expect_dim)
    assert pos_g.shape == (batch, expect_dim)
    assert neg_g.shape == (batch, expect_dim)

    # ---- correctness: no-dropout path vs plain-JAX (bf16-operand parity) ----
    r_u0, r_p0, r_n0 = reference_forward(params, norm_adj, users, pos_items,
                                         neg_items, n_user=n_user,
                                         n_layers=n_layers, a_drop=None)
    _check_close("u_nodrop", u_g0, r_u0)
    _check_close("pos_nodrop", pos_g0, r_p0)
    _check_close("neg_nodrop", neg_g0, r_n0)

    # ---- correctness: fused-dropout path ----
    # The dropout mask is a pure function of (seed, global row, global col),
    # so the identical dropped adjacency can be built in plain JAX.
    a_drop = reference_dropped_adj(norm_adj, seed=dropout_seed,
                                   rate=node_dropout)
    r_u1, r_p1, r_n1 = reference_forward(params, norm_adj, users, pos_items,
                                         neg_items, n_user=n_user,
                                         n_layers=n_layers, a_drop=a_drop)
    _check_close("u_drop", u_g, r_u1)
    _check_close("pos_drop", pos_g, r_p1)
    _check_close("neg_drop", neg_g, r_n1)

    # ---- dropout semantics sanity: keep rate and rescale factor ----
    a_bf = norm_adj.astype(jnp.bfloat16).astype(jnp.float32)
    nz = a_bf != 0
    kept = nz & (a_drop != 0)
    keep_frac = float(jnp.sum(kept) / jnp.maximum(jnp.sum(nz), 1))
    assert abs(keep_frac - (1.0 - node_dropout)) < 0.03, keep_frac
    scaled = a_bf / (1.0 - node_dropout)
    scale_ok = jnp.where(kept, jnp.abs(a_drop - scaled) <= 1e-2 * jnp.abs(scaled), True)
    assert bool(jnp.all(scale_ok))

    print("KERNEL_OK")
</pallas_src>

<mosaic_0001>
module attributes {stable_mosaic.version = 11 : i64} {
  func.func @kernel(%arg0: i32, %arg1: i32, %arg2: memref<256x512xbf16, #tpu.memory_space<vmem>>, %arg3: memref<512x128xbf16, #tpu.memory_space<vmem>>, %arg4: memref<256x128xf32, #tpu.memory_space<vmem>>, %arg5: memref<256x128xf32, #tpu.memory_space<vmem>>) attributes {dimension_semantics = [#tpu.dimension_semantics<parallel>, #tpu.dimension_semantics<arbitrary>], iteration_bounds = array<i64: 2, 1>, scalar_prefetch = 0 : i64, scratch_operands = 1 : i64, tpu.core_type = #tpu.core_type<tc>, window_params = [{transform_indices = @transform_0, window_bounds = array<i64: 256, 512>}, {pipeline_mode = #tpu.pipeline_mode<synchronous>, transform_indices = @transform_1, window_bounds = array<i64: 512, 128>}, {transform_indices = @transform_2, window_bounds = array<i64: 256, 128>}]} {
    %c0_i32 = arith.constant 0 : i32
    %0 = arith.cmpi eq, %arg1, %c0_i32 : i32
    %1 = arith.extui %0 : i1 to i32
    %c0_i32_0 = arith.constant 0 : i32
    %2 = arith.cmpi ne, %1, %c0_i32_0 : i32
    scf.if %2 {
      %cst_13 = arith.constant 0.000000e+00 : f32
      %52 = vector.broadcast %cst_13 : f32 to vector<256x128xf32>
      %c0_14 = arith.constant 0 : index
      %c0_15 = arith.constant 0 : index
      %53 = vector.load %arg5[%c0_14, %c0_15] : memref<256x128xf32, #tpu.memory_space<vmem>>, vector<256x128xf32>
      tpu.vector_store %arg5[%c0_14, %c0_15], %52 {strides = array<i32>} : memref<256x128xf32, #tpu.memory_space<vmem>>, vector<256x128xf32>,
    } else {
    }
    %c0 = arith.constant 0 : index
    %c0_1 = arith.constant 0 : index
    %3 = vector.load %arg2[%c0, %c0_1] : memref<256x512xbf16, #tpu.memory_space<vmem>>, vector<256x512xbf16>
    %c256_i32 = arith.constant 256 : i32
    %4 = arith.muli %arg0, %c256_i32 : i32
    %c512_i32 = arith.constant 512 : i32
    %5 = arith.muli %arg1, %c512_i32 : i32
    %6 = tpu.iota {dimensions = array<i32: 0>} : vector<256x512xi32>
    %7 = vector.broadcast %4 : i32 to vector<256x512xi32>
    %8 = arith.addi %6, %7 : vector<256x512xi32>
    %9 = tpu.iota {dimensions = array<i32: 1>} : vector<256x512xi32>
    %10 = vector.broadcast %5 : i32 to vector<256x512xi32>
    %11 = arith.addi %9, %10 : vector<256x512xi32>
    %c-1640531535_i32 = arith.constant -1640531535 : i32
    %12 = vector.broadcast %c-1640531535_i32 : i32 to vector<256x512xi32>
    %13 = arith.muli %8, %12 : vector<256x512xi32>
    %c-2048144777_i32 = arith.constant -2048144777 : i32
    %14 = vector.broadcast %c-2048144777_i32 : i32 to vector<256x512xi32>
    %15 = arith.muli %11, %14 : vector<256x512xi32>
    %16 = arith.addi %13, %15 : vector<256x512xi32>
    %c1234_i32 = arith.constant 1234 : i32
    %17 = vector.broadcast %c1234_i32 : i32 to vector<256x512xi32>
    %18 = arith.addi %16, %17 : vector<256x512xi32>
    %c16_i32 = arith.constant 16 : i32
    %19 = vector.broadcast %c16_i32 : i32 to vector<256x512xi32>
    %20 = arith.shrui %18, %19 : vector<256x512xi32>
    %21 = arith.xori %18, %20 : vector<256x512xi32>
    %c2146121005_i32 = arith.constant 2146121005 : i32
    %22 = vector.broadcast %c2146121005_i32 : i32 to vector<256x512xi32>
    %23 = arith.muli %21, %22 : vector<256x512xi32>
    %c15_i32 = arith.constant 15 : i32
    %24 = vector.broadcast %c15_i32 : i32 to vector<256x512xi32>
    %25 = arith.shrui %23, %24 : vector<256x512xi32>
    %26 = arith.xori %23, %25 : vector<256x512xi32>
    %c-2073254261_i32 = arith.constant -2073254261 : i32
    %27 = vector.broadcast %c-2073254261_i32 : i32 to vector<256x512xi32>
    %28 = arith.muli %26, %27 : vector<256x512xi32>
    %c16_i32_2 = arith.constant 16 : i32
    %29 = vector.broadcast %c16_i32_2 : i32 to vector<256x512xi32>
    %30 = arith.shrui %28, %29 : vector<256x512xi32>
    %31 = arith.xori %28, %30 : vector<256x512xi32>
    %c8_i32 = arith.constant 8 : i32
    %32 = vector.broadcast %c8_i32 : i32 to vector<256x512xi32>
    %33 = arith.shrui %31, %32 : vector<256x512xi32>
    %c1677721_i32 = arith.constant 1677721 : i32
    %34 = vector.broadcast %c1677721_i32 : i32 to vector<256x512xi32>
    %35 = arith.cmpi sge, %33, %34 : vector<256x512xi32>
    %cst = arith.constant 1.11111116 : f32
    %cst_3 = arith.constant 0.000000e+00 : f32
    %36 = vector.broadcast %cst : f32 to vector<256x512xf32>
    %37 = vector.broadcast %cst_3 : f32 to vector<256x512xf32>
    %38 = arith.select %35, %36, %37 : vector<256x512xi1>, vector<256x512xf32>
    %39 = arith.extf %3 : vector<256x512xbf16> to vector<256x512xf32>
    %40 = arith.mulf %39, %38 : vector<256x512xf32>
    %41 = arith.truncf %40 : vector<256x512xf32> to vector<256x512xbf16>
    %c512_i32_4 = arith.constant 512 : i32
    %42 = arith.muli %arg1, %c512_i32_4 : i32
    %43 = arith.index_cast %42 : i32 to index
    %c0_5 = arith.constant 0 : index
    %44 = vector.load %arg3[%43, %c0_5] : memref<512x128xbf16, #tpu.memory_space<vmem>>, vector<512x128xbf16>
    %c0_6 = arith.constant 0 : index
    %c0_7 = arith.constant 0 : index
    %45 = vector.load %arg5[%c0_6, %c0_7] : memref<256x128xf32, #tpu.memory_space<vmem>>, vector<256x128xf32>
    %cst_8 = arith.constant dense<0.000000e+00> : vector<256x128xf32>
    %46 = tpu.matmul %41, %44, %cst_8 {dimension_numbers = #tpu.dot_dimension_numbers<[1], [0], [0], [1], [0, 0, 1, 1], [], []>} : vector<256x512xbf16>, vector<512x128xbf16>, vector<256x128xf32> -> vector<256x128xf32>
    %47 = arith.addf %45, %46 : vector<256x128xf32>
    %c0_9 = arith.constant 0 : index
    %c0_10 = arith.constant 0 : index
    %48 = vector.load %arg5[%c0_9, %c0_10] : memref<256x128xf32, #tpu.memory_space<vmem>>, vector<256x128xf32>
    tpu.vector_store %arg5[%c0_9, %c0_10], %47 {strides = array<i32>} : memref<256x128xf32, #tpu.memory_space<vmem>>, vector<256x128xf32>,
    %c0_i32_11 = arith.constant 0 : i32
    %49 = arith.cmpi eq, %arg1, %c0_i32_11 : i32
    %50 = arith.extui %49 : i1 to i32
    %c0_i32_12 = arith.constant 0 : i32
    %51 = arith.cmpi ne, %50, %c0_i32_12 : i32
    scf.if %51 {
      %c0_13 = arith.constant 0 : index
      %c0_14 = arith.constant 0 : index
      %52 = vector.load %arg5[%c0_13, %c0_14] : memref<256x128xf32, #tpu.memory_space<vmem>>, vector<256x128xf32>
      %c0_15 = arith.constant 0 : index
      %c0_16 = arith.constant 0 : index
      %53 = vector.load %arg4[%c0_15, %c0_16] : memref<256x128xf32, #tpu.memory_space<vmem>>, vector<256x128xf32>
      tpu.vector_store %arg4[%c0_15, %c0_16], %52 {strides = array<i32>} : memref<256x128xf32, #tpu.memory_space<vmem>>, vector<256x128xf32>,
    } else {
    }
    return
  }
  func.func @transform_0(%arg0: i32, %arg1: i32) -> (i32, i32) {
    %c0_i32 = arith.constant 0 : i32
    return %arg0, %arg1 : i32, i32
  }
  func.func @transform_1(%arg0: i32, %arg1: i32) -> (i32, i32) {
    %c0_i32 = arith.constant 0 : i32
    %c0_i32_0 = arith.constant 0 : i32
    %c0_i32_1 = arith.constant 0 : i32
    return %c0_i32, %c0_i32_0 : i32, i32
  }
  func.func @transform_2(%arg0: i32, %arg1: i32) -> (i32, i32) {
    %c0_i32 = arith.constant 0 : i32
    %c0_i32_0 = arith.constant 0 : i32
    return %arg0, %c0_i32 : i32, i32
  }
}

</mosaic_0001>

<llo_original>
// kernel: ngcf_forward.2
$region0: #{ngcf_forward.2}
  #allocation0 [shape = 'u32[]', space=smem, size = 0x4, offset = 0x4, fixed_abs, tag = 'smem constant byte address 0x4 - core index']
  #allocation1 [shape = 'u32[72,128]{1,0:T(1,128)}', space=vmem, size = 0x9000, scoped, tag = 'internal scratch']
  #allocation2 [shape = 'f32[256,128]{1,0:T(8,128)}', space=vmem, size = 0x20000, scoped, tag = 'scratch operand']
  %s0 = inlined_call_operand.vmem [shape: bf16[512,512], index: 0, kind: input, shape index: {}]
  %s1 = inlined_call_operand.vmem [shape: bf16[512,128], index: 1, kind: input, shape index: {}]
  %s2 = inlined_call_operand.vmem [shape: f32[512,128], index: 2, kind: output, shape index: {}]
  %s3 = sld [smem:[#allocation0]]
  $region49: #{ngcf_forward.2} parent=0
    _
  %s5 = ssub.s32 1, %s3
  %s6 = scalar_select 0, %s5, %s3
  loop: start=0, step=1, limit=4
  $region2: #{ngcf_forward.2} parent=0 // loop_pre_header
    _
  $region3: #{ngcf_forward.2} parent=0 // loop_header
    %s8 = sphi 0, %s12
    %p9 = scmp.ge.s32.totalorder %s8, 4
    %s15 = sphi 0, %s27
    %s16 = sphi 0, %s23
    %s17 = sphi 0, %s15
    %s18 = sphi 0, %s16
    %s19 = sphi 0, %s17
    %s20 = sphi 0, %s18
    %s32 = sphi 0, %s34
    %s35 = sphi 0, %s32
    %s36 = sphi 0, %s35
    %s52 = sphi 0, %s36
    %s56 = sphi 0, %s56
    %s58 = sphi 0, %s56
    %s59 = sphi 0, %s58
    %s73 = sphi 0, %s59
    %s79 = sphi 0, %s81
    %s82 = sphi 0, %s79
    %s83 = sphi 0, %s82
    %s99 = sphi 0, %s83
  $region4: #{ngcf_forward.2} parent=0 // loop_header_branch
    %11 = sbr.rel (%p9) target = $region8
  $region5: #{ngcf_forward.2} parent=0 // loop_body
    %s13 = ssub.s32 %s8, 1
    %s14 = ssub.s32 %s8, 2
    %s21 = sadd.s32 1, %s16
    %p22 = scmp.ge.s32.totalorder %s21, 1
    %s23 = scalar_select %p22, 0, %s21
    %s24 = sadd.s32 1, %s15
    %s25 = scalar_select %p22, %s24, %s15
    %p26 = scmp.ge.s32.totalorder %s25, 2
    %s27 = scalar_select %p26, 0, %s25
    %s28 = ssub.s32 %s15, %s27
    %s29 = ssub.s32 %s16, %s23
    %s30 = sor.u32 %s28, %s29
    %p31 = scmp.eq.s32.totalorder %s30, 0
    %s33 = sadd.s32 %s32, 1
    %s34 = scalar_select %p31, %s32, %s33
    %p37 = pneg %p31
    %p38 = scmp.eq.s32.totalorder %s8, 1
    %p39 = por %p37, %p38
    %p40 = scmp.ne.s32.totalorder %s32, %s35
    %p41 = scmp.eq.s32.totalorder %s8, 0
    %p42 = por %p40, %p41
    %p43 = scmp.ne.s32.totalorder %s32, %s35
    %p44 = scmp.eq.s32.totalorder %s13, 1
    %p45 = por %p43, %p44
    %p46 = scmp.ne.s32.totalorder %s35, %s36
    %p47 = scmp.eq.s32.totalorder %s13, 0
    %p48 = por %p46, %p47
    %p49 = scmp.ne.s32.totalorder %s35, %s36
    %p50 = scmp.eq.s32.totalorder %s14, 1
    %p51 = por %p49, %p50
    %p53 = scmp.ne.s32.totalorder %s36, %s52
    %p54 = scmp.eq.s32.totalorder %s14, 0
    %p55 = por %p53, %p54
    %s57 = sadd.s32 %s56, 1
    %p60 = scmp.eq.s32.totalorder %s8, 1
    %p61 = scmp.ne.s32.totalorder %s56, %s58
    %p62 = scmp.eq.s32.totalorder %s8, 0
    %p63 = por %p61, %p62
    %p64 = scmp.ne.s32.totalorder %s56, %s58
    %p65 = scmp.eq.s32.totalorder %s13, 1
    %p66 = por %p64, %p65
    %p67 = scmp.ne.s32.totalorder %s58, %s59
    %p68 = scmp.eq.s32.totalorder %s13, 0
    %p69 = por %p67, %p68
    %p70 = scmp.ne.s32.totalorder %s58, %s59
    %p71 = scmp.eq.s32.totalorder %s14, 1
    %p72 = por %p70, %p71
    %p74 = scmp.ne.s32.totalorder %s59, %s73
    %p75 = scmp.eq.s32.totalorder %s14, 0
    %p76 = por %p74, %p75
    %s77 = ssub.s32 %s15, %s27
    %p78 = scmp.eq.s32.totalorder %s77, 0
    %s80 = sadd.s32 %s79, 1
    %s81 = scalar_select %p78, %s79, %s80
    %p84 = pneg %p78
    %p85 = scmp.eq.s32.totalorder %s8, 1
    %p86 = por %p84, %p85
    %p87 = scmp.ne.s32.totalorder %s79, %s82
    %p88 = scmp.eq.s32.totalorder %s8, 0
    %p89 = por %p87, %p88
    %p90 = scmp.ne.s32.totalorder %s79, %s82
    %p91 = scmp.eq.s32.totalorder %s13, 1
    %p92 = por %p90, %p91
    %p93 = scmp.ne.s32.totalorder %s82, %s83
    %p94 = scmp.eq.s32.totalorder %s13, 0
    %p95 = por %p93, %p94
    %p96 = scmp.ne.s32.totalorder %s82, %s83
    %p97 = scmp.eq.s32.totalorder %s14, 1
    %p98 = por %p96, %p97
    %p100 = scmp.ne.s32.totalorder %s83, %s99
    %p101 = scmp.eq.s32.totalorder %s14, 0
    %p102 = por %p100, %p101
    %p103 = scmp.le.s32.totalorder 1, %s8
    %p104 = scmp.lt.s32.totalorder %s8, 3
    %p105 = pnand %p103, %p104
    %p106 = pneg %p105
    // Predicated region
    $region9: #{ngcf_forward.2} parent=5 // pred_check
      _
    $region10: #{ngcf_forward.2} parent=5 // pred_check_branch
      %108 = sbr.rel (%p105) target = $region12
    $region11: #{ngcf_forward.2} parent=5 // pred_region
      %s109 = ssub.s32 %s8, 1
      // Predicated region
      $region13: #{ngcf_forward.2} parent=11 // pred_check
        %p110 = pneg %p69
      $region14: #{ngcf_forward.2} parent=11 // pred_check_branch
        %112 = sbr.rel (%p110) target = $region16
      $region15: #{ngcf_forward.2} parent=11 // pred_region
        _
      $region16: #{ngcf_forward.2} parent=11 // pred_fallthru
        _
    $region12: #{ngcf_forward.2} parent=5 // pred_fallthru
      _
    %p113 = scmp.lt.s32.totalorder %s8, 2
    // Predicated region
    $region17: #{ngcf_forward.2} parent=5 // pred_check
      %p114 = pneg %p113
    $region18: #{ngcf_forward.2} parent=5 // pred_check_branch
      %116 = sbr.rel (%p114) target = $region20
    $region19: #{ngcf_forward.2} parent=5 // pred_region
      // Predicated region
      $region21: #{ngcf_forward.2} parent=19 // pred_check
        %p117 = pneg %p42
      $region22: #{ngcf_forward.2} parent=19 // pred_check_branch
        %119 = sbr.rel (%p117) target = $region24
      $region23: #{ngcf_forward.2} parent=19 // pred_region
        %s120 = smul.u32 32, %s15
        %s121 = smul.u32 4, %s16
        %p122 = scmp.lt.s32.totalorder %s120, 63
        %s123 = scalar_select %p122, %s120, 63
        %p124 = scmp.lt.s32.totalorder %s121, 3
        %s125 = scalar_select %p124, %s121, 3
        %s126 = smul.addr %s123, 4
        %s127 = sadd.s32 %s125, %s126
        %s128 = smul.addr %s127, 4
        %s129 = scalar_lea.vmem %s0, %s128
        %s130 = smul.u32 32, %s15
        %s131 = smul.u32 4, %s16
      $region24: #{ngcf_forward.2} parent=19 // pred_fallthru
        _
    $region20: #{ngcf_forward.2} parent=5 // pred_fallthru
      _
    %p132 = scmp.le.s32.totalorder 1, %s8
    %p133 = scmp.lt.s32.totalorder %s8, 3
    %p134 = pnand %p132, %p133
    %p135 = pneg %p134
    // Predicated region
    $region25: #{ngcf_forward.2} parent=5 // pred_check
      _
    $region26: #{ngcf_forward.2} parent=5 // pred_check_branch
      %137 = sbr.rel (%p134) target = $region28
    $region27: #{ngcf_forward.2} parent=5 // pred_region
      %s138 = ssub.s32 %s8, 1
      %s139 = smul.u32 32, %s17
      %s140 = smul.u32 4, %s18
      %p141 = scmp.lt.s32.totalorder %s139, 63
      %s142 = scalar_select %p141, %s139, 63
      %p143 = scmp.lt.s32.totalorder %s140, 3
      %s144 = scalar_select %p143, %s140, 3
      %s145 = smul.addr %s142, 4
      %s146 = sadd.s32 %s144, %s145
      %s147 = smul.addr %s146, 4
      %s148 = scalar_lea.vmem %s0, %s147
      %p149 = pneg %p48
      %p150 = pneg %p45
      %p151 = pneg %p69
      %p152 = pneg %p66
      %p153 = pneg %p95
      %p154 = pneg %p92
      %s155 = smul.u32 32, %s17
      %p156 = scmp.lt.s32.totalorder %s155, 63
      %s157 = scalar_select %p156, %s155, 63
      %s158 = smul.addr %s157, 8
      %s159 = scalar_lea.vmem %s2, %s158
      %s160 = smul.u32 32, %s17
      %s161 = smul.u32 4, %s18
      %p162 = scmp.lt.s32.totalorder %s160, 63
      %s163 = scalar_select %p162, %s160, 63
      %p164 = scmp.lt.s32.totalorder %s161, 3
      %s165 = scalar_select %p164, %s161, 3
      %s166 = smul.addr %s163, 4
      %s167 = sadd.s32 %s165, %s166
      %s168 = smul.addr %s167, 4
      %s169 = scalar_lea.vmem %s0, %s168
      %s170 = smul.u32 32, %s17
      %s171 = smul.u32 4, %s18
      %s172 = smul.u32 32, %s17
      %p173 = scmp.lt.s32.totalorder %s172, 63
      %s174 = scalar_select %p173, %s172, 63
      %s175 = smul.addr %s174, 8
      %s176 = scalar_lea.vmem %s2, %s175
      %s177 = smul.u32 32, %s17
      %p178 = scmp.eq.s32.totalorder %s18, 0
      // Predicated region
      $region29: #{ngcf_forward.2} parent=27 // pred_check
        %p179 = pneg %p178
      $region30: #{ngcf_forward.2} parent=27 // pred_check_branch
        %181 = sbr.rel (%p179) target = $region32
      $region31: #{ngcf_forward.2} parent=27 // pred_region
        %182 = vst [vmem:[#allocation2] sm:$0xff] 0.0
        %183 = vst [vmem:[#allocation2 + $0x8] sm:$0xff] 0.0
        %184 = vst [vmem:[#allocation2 + $0x10] sm:$0xff] 0.0
        %185 = vst [vmem:[#allocation2 + $0x18] sm:$0xff] 0.0
        %186 = vst [vmem:[#allocation2 + $0x20] sm:$0xff] 0.0
        %187 = vst [vmem:[#allocation2 + $0x28] sm:$0xff] 0.0
        %188 = vst [vmem:[#allocation2 + $0x30] sm:$0xff] 0.0
        %189 = vst [vmem:[#allocation2 + $0x38] sm:$0xff] 0.0
        %190 = vst [vmem:[#allocation2 + $0x40] sm:$0xff] 0.0
        %191 = vst [vmem:[#allocation2 + $0x48] sm:$0xff] 0.0
        %192 = vst [vmem:[#allocation2 + $0x50] sm:$0xff] 0.0
        %193 = vst [vmem:[#allocation2 + $0x58] sm:$0xff] 0.0
        %194 = vst [vmem:[#allocation2 + $0x60] sm:$0xff] 0.0
        %195 = vst [vmem:[#allocation2 + $0x68] sm:$0xff] 0.0
        %196 = vst [vmem:[#allocation2 + $0x70] sm:$0xff] 0.0
        %197 = vst [vmem:[#allocation2 + $0x78] sm:$0xff] 0.0
        %198 = vst [vmem:[#allocation2 + $0x80] sm:$0xff] 0.0
        %199 = vst [vmem:[#allocation2 + $0x88] sm:$0xff] 0.0
        %200 = vst [vmem:[#allocation2 + $0x90] sm:$0xff] 0.0
        %201 = vst [vmem:[#allocation2 + $0x98] sm:$0xff] 0.0
        %202 = vst [vmem:[#allocation2 + $0xa0] sm:$0xff] 0.0
        %203 = vst [vmem:[#allocation2 + $0xa8] sm:$0xff] 0.0
        %204 = vst [vmem:[#allocation2 + $0xb0] sm:$0xff] 0.0
        %205 = vst [vmem:[#allocation2 + $0xb8] sm:$0xff] 0.0
        %206 = vst [vmem:[#allocation2 + $0xc0] sm:$0xff] 0.0
        %207 = vst [vmem:[#allocation2 + $0xc8] sm:$0xff] 0.0
        %208 = vst [vmem:[#allocation2 + $0xd0] sm:$0xff] 0.0
        %209 = vst [vmem:[#allocation2 + $0xd8] sm:$0xff] 0.0
        %210 = vst [vmem:[#allocation2 + $0xe0] sm:$0xff] 0.0
        %211 = vst [vmem:[#allocation2 + $0xe8] sm:$0xff] 0.0
        %212 = vst [vmem:[#allocation2 + $0xf0] sm:$0xff] 0.0
        %213 = vst [vmem:[#allocation2 + $0xf8] sm:$0xff] 0.0
      $region32: #{ngcf_forward.2} parent=27 // pred_fallthru
        _
      %v214 = vld [vmem:[%s169] sm:$0xff]
      %v215 = vld [vmem:[%s169 + $0x8] sm:$0xff]
      %v216 = vld [vmem:[%s169 + $0x10] sm:$0xff]
      %v217 = vld [vmem:[%s169 + $0x18] sm:$0xff]
      %v218 = vld [vmem:[%s169 + $0x20] sm:$0xff]
      %v219 = vld [vmem:[%s169 + $0x28] sm:$0xff]
      %v220 = vld [vmem:[%s169 + $0x30] sm:$0xff]
      %v221 = vld [vmem:[%s169 + $0x38] sm:$0xff]
      %v222 = vld [vmem:[%s169 + $0x40] sm:$0xff]
      %v223 = vld [vmem:[%s169 + $0x48] sm:$0xff]
      %v224 = vld [vmem:[%s169 + $0x50] sm:$0xff]
      %v225 = vld [vmem:[%s169 + $0x58] sm:$0xff]
      %v226 = vld [vmem:[%s169 + $0x60] sm:$0xff]
      %v227 = vld [vmem:[%s169 + $0x68] sm:$0xff]
      %v228 = vld [vmem:[%s169 + $0x70] sm:$0xff]
      %v229 = vld [vmem:[%s169 + $0x78] sm:$0xff]
      %v230 = vld [vmem:[%s169 + $0x80] sm:$0xff]
      %v231 = vld [vmem:[%s169 + $0x88] sm:$0xff]
      %v232 = vld [vmem:[%s169 + $0x90] sm:$0xff]
      %v233 = vld [vmem:[%s169 + $0x98] sm:$0xff]
      %v234 = vld [vmem:[%s169 + $0xa0] sm:$0xff]
      %v235 = vld [vmem:[%s169 + $0xa8] sm:$0xff]
      %v236 = vld [vmem:[%s169 + $0xb0] sm:$0xff]
      %v237 = vld [vmem:[%s169 + $0xb8] sm:$0xff]
      %v238 = vld [vmem:[%s169 + $0xc0] sm:$0xff]
      %v239 = vld [vmem:[%s169 + $0xc8] sm:$0xff]
      %v240 = vld [vmem:[%s169 + $0xd0] sm:$0xff]
      %v241 = vld [vmem:[%s169 + $0xd8] sm:$0xff]
      %v242 = vld [vmem:[%s169 + $0xe0] sm:$0xff]
      %v243 = vld [vmem:[%s169 + $0xe8] sm:$0xff]
      %v244 = vld [vmem:[%s169 + $0xf0] sm:$0xff]
      %v245 = vld [vmem:[%s169 + $0xf8] sm:$0xff]
      %v246 = vld [vmem:[%s169 + $0x100] sm:$0xff]
      %v247 = vld [vmem:[%s169 + $0x108] sm:$0xff]
      %v248 = vld [vmem:[%s169 + $0x110] sm:$0xff]
      %v249 = vld [vmem:[%s169 + $0x118] sm:$0xff]
      %v250 = vld [vmem:[%s169 + $0x120] sm:$0xff]
      %v251 = vld [vmem:[%s169 + $0x128] sm:$0xff]
      %v252 = vld [vmem:[%s169 + $0x130] sm:$0xff]
      %v253 = vld [vmem:[%s169 + $0x138] sm:$0xff]
      %v254 = vld [vmem:[%s169 + $0x140] sm:$0xff]
      %v255 = vld [vmem:[%s169 + $0x148] sm:$0xff]
      %v256 = vld [vmem:[%s169 + $0x150] sm:$0xff]
      %v257 = vld [vmem:[%s169 + $0x158] sm:$0xff]
      %v258 = vld [vmem:[%s169 + $0x160] sm:$0xff]
      %v259 = vld [vmem:[%s169 + $0x168] sm:$0xff]
      %v260 = vld [vmem:[%s169 + $0x170] sm:$0xff]
      %v261 = vld [vmem:[%s169 + $0x178] sm:$0xff]
      %v262 = vld [vmem:[%s169 + $0x180] sm:$0xff]
      %v263 = vld [vmem:[%s169 + $0x188] sm:$0xff]
      %v264 = vld [vmem:[%s169 + $0x190] sm:$0xff]
      %v265 = vld [vmem:[%s169 + $0x198] sm:$0xff]
      %v266 = vld [vmem:[%s169 + $0x1a0] sm:$0xff]
      %v267 = vld [vmem:[%s169 + $0x1a8] sm:$0xff]
      %v268 = vld [vmem:[%s169 + $0x1b0] sm:$0xff]
      %v269 = vld [vmem:[%s169 + $0x1b8] sm:$0xff]
      %v270 = vld [vmem:[%s169 + $0x1c0] sm:$0xff]
      %v271 = vld [vmem:[%s169 + $0x1c8] sm:$0xff]
      %v272 = vld [vmem:[%s169 + $0x1d0] sm:$0xff]
      %v273 = vld [vmem:[%s169 + $0x1d8] sm:$0xff]
      %v274 = vld [vmem:[%s169 + $0x1e0] sm:$0xff]
      %v275 = vld [vmem:[%s169 + $0x1e8] sm:$0xff]
      %v276 = vld [vmem:[%s169 + $0x1f0] sm:$0xff]
      %v277 = vld [vmem:[%s169 + $0x1f8] sm:$0xff]
      %s278 = smul.u32 %s17, 256
      %s279 = smul.u32 %s18, 512
      %v280 = vlaneseq
      %v281 = vshrl.u32 %v280, 7
      %v282 = vadd.s32 %v281, 8
      %v283 = vadd.s32 %v281, 16
      %v284 = vadd.s32 %v281, 24
      %v285 = vadd.s32 %v281, 32
      %v286 = vadd.s32 %v281, 40
      %v287 = vadd.s32 %v281, 48
      %v288 = vadd.s32 %v281, 56
      %v289 = vadd.s32 %v281, 64
      %v290 = vadd.s32 %v281, 72
      %v291 = vadd.s32 %v281, 80
      %v292 = vadd.s32 %v281, 88
      %v293 = vadd.s32 %v281, 96
      %v294 = vadd.s32 %v281, 104
      %v295 = vadd.s32 %v281, 112
      %v296 = vadd.s32 %v281, 120
      %v297 = vadd.s32 %v281, 128
      %v298 = vadd.s32 %v281, 136
      %v299 = vadd.s32 %v281, 144
      %v300 = vadd.s32 %v281, 152
      %v301 = vadd.s32 %v281, 160
      %v302 = vadd.s32 %v281, 168
      %v303 = vadd.s32 %v281, 176
      %v304 = vadd.s32 %v281, 184
      %v305 = vadd.s32 %v281, 192
      %v306 = vadd.s32 %v281, 200
      %v307 = vadd.s32 %v281, 208
      %v308 = vadd.s32 %v281, 216
      %v309 = vadd.s32 %v281, 224
      %v310 = vadd.s32 %v281, 232
      %v311 = vadd.s32 %v281, 240
      %v312 = vadd.s32 %v281, 248
      %v313 = vstv %s278
      %v314 = vadd.s32 %v281, %v313
      %v315 = vadd.s32 %v282, %v313
      %v316 = vadd.s32 %v283, %v313
      %v317 = vadd.s32 %v284, %v313
      %v318 = vadd.s32 %v285, %v313
      %v319 = vadd.s32 %v286, %v313
      %v320 = vadd.s32 %v287, %v313
      %v321 = vadd.s32 %v288, %v313
      %v322 = vadd.s32 %v289, %v313
      %v323 = vadd.s32 %v290, %v313
      %v324 = vadd.s32 %v291, %v313
      %v325 = vadd.s32 %v292, %v313
      %v326 = vadd.s32 %v293, %v313
      %v327 = vadd.s32 %v294, %v313
      %v328 = vadd.s32 %v295, %v313
      %v329 = vadd.s32 %v296, %v313
      %v330 = vadd.s32 %v297, %v313
      %v331 = vadd.s32 %v298, %v313
      %v332 = vadd.s32 %v299, %v313
      %v333 = vadd.s32 %v300, %v313
      %v334 = vadd.s32 %v301, %v313
      %v335 = vadd.s32 %v302, %v313
      %v336 = vadd.s32 %v303, %v313
      %v337 = vadd.s32 %v304, %v313
      %v338 = vadd.s32 %v305, %v313
      %v339 = vadd.s32 %v306, %v313
      %v340 = vadd.s32 %v307, %v313
      %v341 = vadd.s32 %v308, %v313
      %v342 = vadd.s32 %v309, %v313
      %v343 = vadd.s32 %v310, %v313
      %v344 = vadd.s32 %v311, %v313
      %v345 = vadd.s32 %v312, %v313
      %v346 = vlaneseq
      %v347 = vand.u32 %v346, 127
      %v348 = vadd.s32 %v347, 128
      %v349 = vadd.s32 %v347, 256
      %v350 = vadd.s32 %v347, 384
      %v351 = vstv %s279
      %v352 = vadd.s32 %v347, %v351
      %v353 = vadd.s32 %v348, %v351
      %v354 = vadd.s32 %v349, %v351
      %v355 = vadd.s32 %v350, %v351
      %v356 = vmul.u32 %v314, 2654435761
      %v357 = vmul.u32 %v315, 2654435761
      %v358 = vmul.u32 %v316, 2654435761
      %v359 = vmul.u32 %v317, 2654435761
      %v360 = vmul.u32 %v318, 2654435761
      %v361 = vmul.u32 %v319, 2654435761
      %v362 = vmul.u32 %v320, 2654435761
      %v363 = vmul.u32 %v321, 2654435761
      %v364 = vmul.u32 %v322, 2654435761
      %v365 = vmul.u32 %v323, 2654435761
      %v366 = vmul.u32 %v324, 2654435761
      %v367 = vmul.u32 %v325, 2654435761
      %v368 = vmul.u32 %v326, 2654435761
      %v369 = vmul.u32 %v327, 2654435761
      %v370 = vmul.u32 %v328, 2654435761
      %v371 = vmul.u32 %v329, 2654435761
      %v372 = vmul.u32 %v330, 2654435761
      %v373 = vmul.u32 %v331, 2654435761
      %v374 = vmul.u32 %v332, 2654435761
      %v375 = vmul.u32 %v333, 2654435761
      %v376 = vmul.u32 %v334, 2654435761
      %v377 = vmul.u32 %v335, 2654435761
      %v378 = vmul.u32 %v336, 2654435761
      %v379 = vmul.u32 %v337, 2654435761
      %v380 = vmul.u32 %v338, 2654435761
      %v381 = vmul.u32 %v339, 2654435761
      %v382 = vmul.u32 %v340, 2654435761
      %v383 = vmul.u32 %v341, 2654435761
      %v384 = vmul.u32 %v342, 2654435761
      %v385 = vmul.u32 %v343, 2654435761
      %v386 = vmul.u32 %v344, 2654435761
      %v387 = vmul.u32 %v345, 2654435761
      %v388 = vmul.u32 %v352, 2246822519
      %v389 = vmul.u32 %v353, 2246822519
      %v390 = vmul.u32 %v354, 2246822519
      %v391 = vmul.u32 %v355, 2246822519
      %v392 = vadd.s32 %v356, %v388
      %v393 = vadd.s32 %v356, %v389
      %v394 = vadd.s32 %v356, %v390
      %v395 = vadd.s32 %v356, %v391
      %v396 = vadd.s32 %v357, %v388
      %v397 = vadd.s32 %v357, %v389
      %v398 = vadd.s32 %v357, %v390
      %v399 = vadd.s32 %v357, %v391
      %v400 = vadd.s32 %v358, %v388
      %v401 = vadd.s32 %v358, %v389
      %v402 = vadd.s32 %v358, %v390
      %v403 = vadd.s32 %v358, %v391
      %v404 = vadd.s32 %v359, %v388
      %v405 = vadd.s32 %v359, %v389
      %v406 = vadd.s32 %v359, %v390
      %v407 = vadd.s32 %v359, %v391
      %v408 = vadd.s32 %v360, %v388
      %v409 = vadd.s32 %v360, %v389
      %v410 = vadd.s32 %v360, %v390
      %v411 = vadd.s32 %v360, %v391
      %v412 = vadd.s32 %v361, %v388
      %v413 = vadd.s32 %v361, %v389
      %v414 = vadd.s32 %v361, %v390
      %v415 = vadd.s32 %v361, %v391
      %v416 = vadd.s32 %v362, %v388
      %v417 = vadd.s32 %v362, %v389
      %v418 = vadd.s32 %v362, %v390
      %v419 = vadd.s32 %v362, %v391
      %v420 = vadd.s32 %v363, %v388
      %v421 = vadd.s32 %v363, %v389
      %v422 = vadd.s32 %v363, %v390
      %v423 = vadd.s32 %v363, %v391
      %v424 = vadd.s32 %v364, %v388
      %v425 = vadd.s32 %v364, %v389
      %v426 = vadd.s32 %v364, %v390
      %v427 = vadd.s32 %v364, %v391
      %v428 = vadd.s32 %v365, %v388
      %v429 = vadd.s32 %v365, %v389
      %v430 = vadd.s32 %v365, %v390
      %v431 = vadd.s32 %v365, %v391
      %v432 = vadd.s32 %v366, %v388
      %v433 = vadd.s32 %v366, %v389
      %v434 = vadd.s32 %v366, %v390
      %v435 = vadd.s32 %v366, %v391
      %v436 = vadd.s32 %v367, %v388
      %v437 = vadd.s32 %v367, %v389
      %v438 = vadd.s32 %v367, %v390
      %v439 = vadd.s32 %v367, %v391
      %v440 = vadd.s32 %v368, %v388
      %v441 = vadd.s32 %v368, %v389
      %v442 = vadd.s32 %v368, %v390
      %v443 = vadd.s32 %v368, %v391
      %v444 = vadd.s32 %v369, %v388
      %v445 = vadd.s32 %v369, %v389
      %v446 = vadd.s32 %v369, %v390
      %v447 = vadd.s32 %v369, %v391
      %v448 = vadd.s32 %v370, %v388
      %v449 = vadd.s32 %v370, %v389
      %v450 = vadd.s32 %v370, %v390
      %v451 = vadd.s32 %v370, %v391
      %v452 = vadd.s32 %v371, %v388
      %v453 = vadd.s32 %v371, %v389
      %v454 = vadd.s32 %v371, %v390
      %v455 = vadd.s32 %v371, %v391
      %v456 = vadd.s32 %v372, %v388
      %v457 = vadd.s32 %v372, %v389
      %v458 = vadd.s32 %v372, %v390
      %v459 = vadd.s32 %v372, %v391
      %v460 = vadd.s32 %v373, %v388
      %v461 = vadd.s32 %v373, %v389
      %v462 = vadd.s32 %v373, %v390
      %v463 = vadd.s32 %v373, %v391
      %v464 = vadd.s32 %v374, %v388
      %v465 = vadd.s32 %v374, %v389
      %v466 = vadd.s32 %v374, %v390
      %v467 = vadd.s32 %v374, %v391
      %v468 = vadd.s32 %v375, %v388
      %v469 = vadd.s32 %v375, %v389
      %v470 = vadd.s32 %v375, %v390
      %v471 = vadd.s32 %v375, %v391
      %v472 = vadd.s32 %v376, %v388
      %v473 = vadd.s32 %v376, %v389
      %v474 = vadd.s32 %v376, %v390
      %v475 = vadd.s32 %v376, %v391
      %v476 = vadd.s32 %v377, %v388
      %v477 = vadd.s32 %v377, %v389
      %v478 = vadd.s32 %v377, %v390
      %v479 = vadd.s32 %v377, %v391
      %v480 = vadd.s32 %v378, %v388
      %v481 = vadd.s32 %v378, %v389
      %v482 = vadd.s32 %v378, %v390
      %v483 = vadd.s32 %v378, %v391
      %v484 = vadd.s32 %v379, %v388
      %v485 = vadd.s32 %v379, %v389
      %v486 = vadd.s32 %v379, %v390
      %v487 = vadd.s32 %v379, %v391
      %v488 = vadd.s32 %v380, %v388
      %v489 = vadd.s32 %v380, %v389
      %v490 = vadd.s32 %v380, %v390
      %v491 = vadd.s32 %v380, %v391
      %v492 = vadd.s32 %v381, %v388
      %v493 = vadd.s32 %v381, %v389
      %v494 = vadd.s32 %v381, %v390
      %v495 = vadd.s32 %v381, %v391
      %v496 = vadd.s32 %v382, %v388
      %v497 = vadd.s32 %v382, %v389
      %v498 = vadd.s32 %v382, %v390
      %v499 = vadd.s32 %v382, %v391
      %v500 = vadd.s32 %v383, %v388
      %v501 = vadd.s32 %v383, %v389
      %v502 = vadd.s32 %v383, %v390
      %v503 = vadd.s32 %v383, %v391
      %v504 = vadd.s32 %v384, %v388
      %v505 = vadd.s32 %v384, %v389
      %v506 = vadd.s32 %v384, %v390
      %v507 = vadd.s32 %v384, %v391
      %v508 = vadd.s32 %v385, %v388
      %v509 = vadd.s32 %v385, %v389
      %v510 = vadd.s32 %v385, %v390
      %v511 = vadd.s32 %v385, %v391
      %v512 = vadd.s32 %v386, %v388
      %v513 = vadd.s32 %v386, %v389
      %v514 = vadd.s32 %v386, %v390
      %v515 = vadd.s32 %v386, %v391
      %v516 = vadd.s32 %v387, %v388
      %v517 = vadd.s32 %v387, %v389
      %v518 = vadd.s32 %v387, %v390
      %v519 = vadd.s32 %v387, %v391
      %v520 = vadd.s32 %v392, 1234
      %v521 = vadd.s32 %v393, 1234
      %v522 = vadd.s32 %v394, 1234
      %v523 = vadd.s32 %v395, 1234
      %v524 = vadd.s32 %v396, 1234
      %v525 = vadd.s32 %v397, 1234
      %v526 = vadd.s32 %v398, 1234
      %v527 = vadd.s32 %v399, 1234
      %v528 = vadd.s32 %v400, 1234
      %v529 = vadd.s32 %v401, 1234
      %v530 = vadd.s32 %v402, 1234
      %v531 = vadd.s32 %v403, 1234
      %v532 = vadd.s32 %v404, 1234
      %v533 = vadd.s32 %v405, 1234
      %v534 = vadd.s32 %v406, 1234
      %v535 = vadd.s32 %v407, 1234
      %v536 = vadd.s32 %v408, 1234
      %v537 = vadd.s32 %v409, 1234
      %v538 = vadd.s32 %v410, 1234
      %v539 = vadd.s32 %v411, 1234
      %v540 = vadd.s32 %v412, 1234
      %v541 = vadd.s32 %v413, 1234
      %v542 = vadd.s32 %v414, 1234
      %v543 = vadd.s32 %v415, 1234
      %v544 = vadd.s32 %v416, 1234
      %v545 = vadd.s32 %v417, 1234
      %v546 = vadd.s32 %v418, 1234
      %v547 = vadd.s32 %v419, 1234
      %v548 = vadd.s32 %v420, 1234
      %v549 = vadd.s32 %v421, 1234
      %v550 = vadd.s32 %v422, 1234
      %v551 = vadd.s32 %v423, 1234
      %v552 = vadd.s32 %v424, 1234
      %v553 = vadd.s32 %v425, 1234
      %v554 = vadd.s32 %v426, 1234
      %v555 = vadd.s32 %v427, 1234
      %v556 = vadd.s32 %v428, 1234
      %v557 = vadd.s32 %v429, 1234
      %v558 = vadd.s32 %v430, 1234
      %v559 = vadd.s32 %v431, 1234
      %v560 = vadd.s32 %v432, 1234
      %v561 = vadd.s32 %v433, 1234
      %v562 = vadd.s32 %v434, 1234
      %v563 = vadd.s32 %v435, 1234
      %v564 = vadd.s32 %v436, 1234
      %v565 = vadd.s32 %v437, 1234
      %v566 = vadd.s32 %v438, 1234
      %v567 = vadd.s32 %v439, 1234
      %v568 = vadd.s32 %v440, 1234
      %v569 = vadd.s32 %v441, 1234
      %v570 = vadd.s32 %v442, 1234
      %v571 = vadd.s32 %v443, 1234
      %v572 = vadd.s32 %v444, 1234
      %v573 = vadd.s32 %v445, 1234
      %v574 = vadd.s32 %v446, 1234
      %v575 = vadd.s32 %v447, 1234
      %v576 = vadd.s32 %v448, 1234
      %v577 = vadd.s32 %v449, 1234
      %v578 = vadd.s32 %v450, 1234
      %v579 = vadd.s32 %v451, 1234
      %v580 = vadd.s32 %v452, 1234
      %v581 = vadd.s32 %v453, 1234
      %v582 = vadd.s32 %v454, 1234
      %v583 = vadd.s32 %v455, 1234
      %v584 = vadd.s32 %v456, 1234
      %v585 = vadd.s32 %v457, 1234
      %v586 = vadd.s32 %v458, 1234
      %v587 = vadd.s32 %v459, 1234
      %v588 = vadd.s32 %v460, 1234
      %v589 = vadd.s32 %v461, 1234
      %v590 = vadd.s32 %v462, 1234
      %v591 = vadd.s32 %v463, 1234
      %v592 = vadd.s32 %v464, 1234
      %v593 = vadd.s32 %v465, 1234
      %v594 = vadd.s32 %v466, 1234
      %v595 = vadd.s32 %v467, 1234
      %v596 = vadd.s32 %v468, 1234
      %v597 = vadd.s32 %v469, 1234
      %v598 = vadd.s32 %v470, 1234
      %v599 = vadd.s32 %v471, 1234
      %v600 = vadd.s32 %v472, 1234
      %v601 = vadd.s32 %v473, 1234
      %v602 = vadd.s32 %v474, 1234
      %v603 = vadd.s32 %v475, 1234
      %v604 = vadd.s32 %v476, 1234
      %v605 = vadd.s32 %v477, 1234
      %v606 = vadd.s32 %v478, 1234
      %v607 = vadd.s32 %v479, 1234
      %v608 = vadd.s32 %v480, 1234
      %v609 = vadd.s32 %v481, 1234
      %v610 = vadd.s32 %v482, 1234
      %v611 = vadd.s32 %v483, 1234
      %v612 = vadd.s32 %v484, 1234
      %v613 = vadd.s32 %v485, 1234
      %v614 = vadd.s32 %v486, 1234
      %v615 = vadd.s32 %v487, 1234
      %v616 = vadd.s32 %v488, 1234
      %v617 = vadd.s32 %v489, 1234
      %v618 = vadd.s32 %v490, 1234
      %v619 = vadd.s32 %v491, 1234
      %v620 = vadd.s32 %v492, 1234
      %v621 = vadd.s32 %v493, 1234
      %v622 = vadd.s32 %v494, 1234
      %v623 = vadd.s32 %v495, 1234
      %v624 = vadd.s32 %v496, 1234
      %v625 = vadd.s32 %v497, 1234
      %v626 = vadd.s32 %v498, 1234
      %v627 = vadd.s32 %v499, 1234
      %v628 = vadd.s32 %v500, 1234
      %v629 = vadd.s32 %v501, 1234
      %v630 = vadd.s32 %v502, 1234
      %v631 = vadd.s32 %v503, 1234
      %v632 = vadd.s32 %v504, 1234
      %v633 = vadd.s32 %v505, 1234
      %v634 = vadd.s32 %v506, 1234
      %v635 = vadd.s32 %v507, 1234
      %v636 = vadd.s32 %v508, 1234
      %v637 = vadd.s32 %v509, 1234
      %v638 = vadd.s32 %v510, 1234
      %v639 = vadd.s32 %v511, 1234
      %v640 = vadd.s32 %v512, 1234
      %v641 = vadd.s32 %v513, 1234
      %v642 = vadd.s32 %v514, 1234
      %v643 = vadd.s32 %v515, 1234
      %v644 = vadd.s32 %v516, 1234
      %v645 = vadd.s32 %v517, 1234
      %v646 = vadd.s32 %v518, 1234
      %v647 = vadd.s32 %v519, 1234
      %v648 = vshrl.u32 %v520, 16
      %v649 = vshrl.u32 %v521, 16
      %v650 = vshrl.u32 %v522, 16
      %v651 = vshrl.u32 %v523, 16
      %v652 = vshrl.u32 %v524, 16
      %v653 = vshrl.u32 %v525, 16
      %v654 = vshrl.u32 %v526, 16
      %v655 = vshrl.u32 %v527, 16
      %v656 = vshrl.u32 %v528, 16
      %v657 = vshrl.u32 %v529, 16
      %v658 = vshrl.u32 %v530, 16
      %v659 = vshrl.u32 %v531, 16
      %v660 = vshrl.u32 %v532, 16
      %v661 = vshrl.u32 %v533, 16
      %v662 = vshrl.u32 %v534, 16
      %v663 = vshrl.u32 %v535, 16
      %v664 = vshrl.u32 %v536, 16
      %v665 = vshrl.u32 %v537, 16
      %v666 = vshrl.u32 %v538, 16
      %v667 = vshrl.u32 %v539, 16
      %v668 = vshrl.u32 %v540, 16
      %v669 = vshrl.u32 %v541, 16
      %v670 = vshrl.u32 %v542, 16
      %v671 = vshrl.u32 %v543, 16
      %v672 = vshrl.u32 %v544, 16
      %v673 = vshrl.u32 %v545, 16
      %v674 = vshrl.u32 %v546, 16
      %v675 = vshrl.u32 %v547, 16
      %v676 = vshrl.u32 %v548, 16
      %v677 = vshrl.u32 %v549, 16
      %v678 = vshrl.u32 %v550, 16
      %v679 = vshrl.u32 %v551, 16
      %v680 = vshrl.u32 %v552, 16
      %v681 = vshrl.u32 %v553, 16
      %v682 = vshrl.u32 %v554, 16
      %v683 = vshrl.u32 %v555, 16
      %v684 = vshrl.u32 %v556, 16
      %v685 = vshrl.u32 %v557, 16
      %v686 = vshrl.u32 %v558, 16
      %v687 = vshrl.u32 %v559, 16
      %v688 = vshrl.u32 %v560, 16
      %v689 = vshrl.u32 %v561, 16
      %v690 = vshrl.u32 %v562, 16
      %v691 = vshrl.u32 %v563, 16
      %v692 = vshrl.u32 %v564, 16
      %v693 = vshrl.u32 %v565, 16
      %v694 = vshrl.u32 %v566, 16
      %v695 = vshrl.u32 %v567, 16
      %v696 = vshrl.u32 %v568, 16
      %v697 = vshrl.u32 %v569, 16
      %v698 = vshrl.u32 %v570, 16
      %v699 = vshrl.u32 %v571, 16
      %v700 = vshrl.u32 %v572, 16
      %v701 = vshrl.u32 %v573, 16
      %v702 = vshrl.u32 %v574, 16
      %v703 = vshrl.u32 %v575, 16
      %v704 = vshrl.u32 %v576, 16
      %v705 = vshrl.u32 %v577, 16
      %v706 = vshrl.u32 %v578, 16
      %v707 = vshrl.u32 %v579, 16
      %v708 = vshrl.u32 %v580, 16
      %v709 = vshrl.u32 %v581, 16
      %v710 = vshrl.u32 %v582, 16
      %v711 = vshrl.u32 %v583, 16
      %v712 = vshrl.u32 %v584, 16
      %v713 = vshrl.u32 %v585, 16
      %v714 = vshrl.u32 %v586, 16
      %v715 = vshrl.u32 %v587, 16
      %v716 = vshrl.u32 %v588, 16
      %v717 = vshrl.u32 %v589, 16
      %v718 = vshrl.u32 %v590, 16
      %v719 = vshrl.u32 %v591, 16
      %v720 = vshrl.u32 %v592, 16
      %v721 = vshrl.u32 %v593, 16
      %v722 = vshrl.u32 %v594, 16
      %v723 = vshrl.u32 %v595, 16
      %v724 = vshrl.u32 %v596, 16
      %v725 = vshrl.u32 %v597, 16
      %v726 = vshrl.u32 %v598, 16
      %v727 = vshrl.u32 %v599, 16
      %v728 = vshrl.u32 %v600, 16
      %v729 = vshrl.u32 %v601, 16
      %v730 = vshrl.u32 %v602, 16
      %v731 = vshrl.u32 %v603, 16
      %v732 = vshrl.u32 %v604, 16
      %v733 = vshrl.u32 %v605, 16
      %v734 = vshrl.u32 %v606, 16
      %v735 = vshrl.u32 %v607, 16
      %v736 = vshrl.u32 %v608, 16
      %v737 = vshrl.u32 %v609, 16
      %v738 = vshrl.u32 %v610, 16
      %v739 = vshrl.u32 %v611, 16
      %v740 = vshrl.u32 %v612, 16
      %v741 = vshrl.u32 %v613, 16
      %v742 = vshrl.u32 %v614, 16
      %v743 = vshrl.u32 %v615, 16
      %v744 = vshrl.u32 %v616, 16
      %v745 = vshrl.u32 %v617, 16
      %v746 = vshrl.u32 %v618, 16
      %v747 = vshrl.u32 %v619, 16
      %v748 = vshrl.u32 %v620, 16
      %v749 = vshrl.u32 %v621, 16
      %v750 = vshrl.u32 %v622, 16
      %v751 = vshrl.u32 %v623, 16
      %v752 = vshrl.u32 %v624, 16
      %v753 = vshrl.u32 %v625, 16
      %v754 = vshrl.u32 %v626, 16
      %v755 = vshrl.u32 %v627, 16
      %v756 = vshrl.u32 %v628, 16
      %v757 = vshrl.u32 %v629, 16
      %v758 = vshrl.u32 %v630, 16
      %v759 = vshrl.u32 %v631, 16
      %v760 = vshrl.u32 %v632, 16
      %v761 = vshrl.u32 %v633, 16
      %v762 = vshrl.u32 %v634, 16
      %v763 = vshrl.u32 %v635, 16
      %v764 = vshrl.u32 %v636, 16
      %v765 = vshrl.u32 %v637, 16
      %v766 = vshrl.u32 %v638, 16
      %v767 = vshrl.u32 %v639, 16
      %v768 = vshrl.u32 %v640, 16
      %v769 = vshrl.u32 %v641, 16
      %v770 = vshrl.u32 %v642, 16
      %v771 = vshrl.u32 %v643, 16
      %v772 = vshrl.u32 %v644, 16
      %v773 = vshrl.u32 %v645, 16
      %v774 = vshrl.u32 %v646, 16
      %v775 = vshrl.u32 %v647, 16
      %v776 = vxor.u32 %v520, %v648
      %v777 = vxor.u32 %v521, %v649
      %v778 = vxor.u32 %v522, %v650
      %v779 = vxor.u32 %v523, %v651
      %v780 = vxor.u32 %v524, %v652
      %v781 = vxor.u32 %v525, %v653
      %v782 = vxor.u32 %v526, %v654
      %v783 = vxor.u32 %v527, %v655
      %v784 = vxor.u32 %v528, %v656
      %v785 = vxor.u32 %v529, %v657
      %v786 = vxor.u32 %v530, %v658
      %v787 = vxor.u32 %v531, %v659
      %v788 = vxor.u32 %v532, %v660
      %v789 = vxor.u32 %v533, %v661
      %v790 = vxor.u32 %v534, %v662
      %v791 = vxor.u32 %v535, %v663
      %v792 = vxor.u32 %v536, %v664
      %v793 = vxor.u32 %v537, %v665
      %v794 = vxor.u32 %v538, %v666
      %v795 = vxor.u32 %v539, %v667
      %v796 = vxor.u32 %v540, %v668
      %v797 = vxor.u32 %v541, %v669
      %v798 = vxor.u32 %v542, %v670
      %v799 = vxor.u32 %v543, %v671
      %v800 = vxor.u32 %v544, %v672
      %v801 = vxor.u32 %v545, %v673
      %v802 = vxor.u32 %v546, %v674
      %v803 = vxor.u32 %v547, %v675
      %v804 = vxor.u32 %v548, %v676
      %v805 = vxor.u32 %v549, %v677
      %v806 = vxor.u32 %v550, %v678
      %v807 = vxor.u32 %v551, %v679
      %v808 = vxor.u32 %v552, %v680
      %v809 = vxor.u32 %v553, %v681
      %v810 = vxor.u32 %v554, %v682
      %v811 = vxor.u32 %v555, %v683
      %v812 = vxor.u32 %v556, %v684
      %v813 = vxor.u32 %v557, %v685
      %v814 = vxor.u32 %v558, %v686
      %v815 = vxor.u32 %v559, %v687
      %v816 = vxor.u32 %v560, %v688
      %v817 = vxor.u32 %v561, %v689
      %v818 = vxor.u32 %v562, %v690
      %v819 = vxor.u32 %v563, %v691
      %v820 = vxor.u32 %v564, %v692
      %v821 = vxor.u32 %v565, %v693
      %v822 = vxor.u32 %v566, %v694
      %v823 = vxor.u32 %v567, %v695
      %v824 = vxor.u32 %v568, %v696
      %v825 = vxor.u32 %v569, %v697
      %v826 = vxor.u32 %v570, %v698
      %v827 = vxor.u32 %v571, %v699
      %v828 = vxor.u32 %v572, %v700
      %v829 = vxor.u32 %v573, %v701
      %v830 = vxor.u32 %v574, %v702
      %v831 = vxor.u32 %v575, %v703
      %v832 = vxor.u32 %v576, %v704
      %v833 = vxor.u32 %v577, %v705
      %v834 = vxor.u32 %v578, %v706
      %v835 = vxor.u32 %v579, %v707
      %v836 = vxor.u32 %v580, %v708
      %v837 = vxor.u32 %v581, %v709
      %v838 = vxor.u32 %v582, %v710
      %v839 = vxor.u32 %v583, %v711
      %v840 = vxor.u32 %v584, %v712
      %v841 = vxor.u32 %v585, %v713
      %v842 = vxor.u32 %v586, %v714
      %v843 = vxor.u32 %v587, %v715
      %v844 = vxor.u32 %v588, %v716
      %v845 = vxor.u32 %v589, %v717
      %v846 = vxor.u32 %v590, %v718
      %v847 = vxor.u32 %v591, %v719
      %v848 = vxor.u32 %v592, %v720
      %v849 = vxor.u32 %v593, %v721
      %v850 = vxor.u32 %v594, %v722
      %v851 = vxor.u32 %v595, %v723
      %v852 = vxor.u32 %v596, %v724
      %v853 = vxor.u32 %v597, %v725
      %v854 = vxor.u32 %v598, %v726
      %v855 = vxor.u32 %v599, %v727
      %v856 = vxor.u32 %v600, %v728
      %v857 = vxor.u32 %v601, %v729
      %v858 = vxor.u32 %v602, %v730
      %v859 = vxor.u32 %v603, %v731
      %v860 = vxor.u32 %v604, %v732
      %v861 = vxor.u32 %v605, %v733
      %v862 = vxor.u32 %v606, %v734
      %v863 = vxor.u32 %v607, %v735
      %v864 = vxor.u32 %v608, %v736
      %v865 = vxor.u32 %v609, %v737
      %v866 = vxor.u32 %v610, %v738
      %v867 = vxor.u32 %v611, %v739
      %v868 = vxor.u32 %v612, %v740
      %v869 = vxor.u32 %v613, %v741
      %v870 = vxor.u32 %v614, %v742
      %v871 = vxor.u32 %v615, %v743
      %v872 = vxor.u32 %v616, %v744
      %v873 = vxor.u32 %v617, %v745
      %v874 = vxor.u32 %v618, %v746
      %v875 = vxor.u32 %v619, %v747
      %v876 = vxor.u32 %v620, %v748
      %v877 = vxor.u32 %v621, %v749
      %v878 = vxor.u32 %v622, %v750
      %v879 = vxor.u32 %v623, %v751
      %v880 = vxor.u32 %v624, %v752
      %v881 = vxor.u32 %v625, %v753
      %v882 = vxor.u32 %v626, %v754
      %v883 = vxor.u32 %v627, %v755
      %v884 = vxor.u32 %v628, %v756
      %v885 = vxor.u32 %v629, %v757
      %v886 = vxor.u32 %v630, %v758
      %v887 = vxor.u32 %v631, %v759
      %v888 = vxor.u32 %v632, %v760
      %v889 = vxor.u32 %v633, %v761
      %v890 = vxor.u32 %v634, %v762
      %v891 = vxor.u32 %v635, %v763
      %v892 = vxor.u32 %v636, %v764
      %v893 = vxor.u32 %v637, %v765
      %v894 = vxor.u32 %v638, %v766
      %v895 = vxor.u32 %v639, %v767
      %v896 = vxor.u32 %v640, %v768
      %v897 = vxor.u32 %v641, %v769
      %v898 = vxor.u32 %v642, %v770
      %v899 = vxor.u32 %v643, %v771
      %v900 = vxor.u32 %v644, %v772
      %v901 = vxor.u32 %v645, %v773
      %v902 = vxor.u32 %v646, %v774
      %v903 = vxor.u32 %v647, %v775
      %v904 = vmul.u32 %v776, 2146121005
      %v905 = vmul.u32 %v777, 2146121005
      %v906 = vmul.u32 %v778, 2146121005
      %v907 = vmul.u32 %v779, 2146121005
      %v908 = vmul.u32 %v780, 2146121005
      %v909 = vmul.u32 %v781, 2146121005
      %v910 = vmul.u32 %v782, 2146121005
      %v911 = vmul.u32 %v783, 2146121005
      %v912 = vmul.u32 %v784, 2146121005
      %v913 = vmul.u32 %v785, 2146121005
      %v914 = vmul.u32 %v786, 2146121005
      %v915 = vmul.u32 %v787, 2146121005
      %v916 = vmul.u32 %v788, 2146121005
      %v917 = vmul.u32 %v789, 2146121005
      %v918 = vmul.u32 %v790, 2146121005
      %v919 = vmul.u32 %v791, 2146121005
      %v920 = vmul.u32 %v792, 2146121005
      %v921 = vmul.u32 %v793, 2146121005
      %v922 = vmul.u32 %v794, 2146121005
      %v923 = vmul.u32 %v795, 2146121005
      %v924 = vmul.u32 %v796, 2146121005
      %v925 = vmul.u32 %v797, 2146121005
      %v926 = vmul.u32 %v798, 2146121005
      %v927 = vmul.u32 %v799, 2146121005
      %v928 = vmul.u32 %v800, 2146121005
      %v929 = vmul.u32 %v801, 2146121005
      %v930 = vmul.u32 %v802, 2146121005
      %v931 = vmul.u32 %v803, 2146121005
      %v932 = vmul.u32 %v804, 2146121005
      %v933 = vmul.u32 %v805, 2146121005
      %v934 = vmul.u32 %v806, 2146121005
      %v935 = vmul.u32 %v807, 2146121005
      %v936 = vmul.u32 %v808, 2146121005
      %v937 = vmul.u32 %v809, 2146121005
      %v938 = vmul.u32 %v810, 2146121005
      %v939 = vmul.u32 %v811, 2146121005
      %v940 = vmul.u32 %v812, 2146121005
      %v941 = vmul.u32 %v813, 2146121005
      %v942 = vmul.u32 %v814, 2146121005
      %v943 = vmul.u32 %v815, 2146121005
      %v944 = vmul.u32 %v816, 2146121005
      %v945 = vmul.u32 %v817, 2146121005
      %v946 = vmul.u32 %v818, 2146121005
      %v947 = vmul.u32 %v819, 2146121005
      %v948 = vmul.u32 %v820, 2146121005
      %v949 = vmul.u32 %v821, 2146121005
      %v950 = vmul.u32 %v822, 2146121005
      %v951 = vmul.u32 %v823, 2146121005
      %v952 = vmul.u32 %v824, 2146121005
      %v953 = vmul.u32 %v825, 2146121005
      %v954 = vmul.u32 %v826, 2146121005
      %v955 = vmul.u32 %v827, 2146121005
      %v956 = vmul.u32 %v828, 2146121005
      %v957 = vmul.u32 %v829, 2146121005
      %v958 = vmul.u32 %v830, 2146121005
      %v959 = vmul.u32 %v831, 2146121005
      %v960 = vmul.u32 %v832, 2146121005
      %v961 = vmul.u32 %v833, 2146121005
      %v962 = vmul.u32 %v834, 2146121005
      %v963 = vmul.u32 %v835, 2146121005
      %v964 = vmul.u32 %v836, 2146121005
      %v965 = vmul.u32 %v837, 2146121005
      %v966 = vmul.u32 %v838, 2146121005
      %v967 = vmul.u32 %v839, 2146121005
      %v968 = vmul.u32 %v840, 2146121005
      %v969 = vmul.u32 %v841, 2146121005
      %v970 = vmul.u32 %v842, 2146121005
      %v971 = vmul.u32 %v843, 2146121005
      %v972 = vmul.u32 %v844, 2146121005
      %v973 = vmul.u32 %v845, 2146121005
      %v974 = vmul.u32 %v846, 2146121005
      %v975 = vmul.u32 %v847, 2146121005
      %v976 = vmul.u32 %v848, 2146121005
      %v977 = vmul.u32 %v849, 2146121005
      %v978 = vmul.u32 %v850, 2146121005
      %v979 = vmul.u32 %v851, 2146121005
      %v980 = vmul.u32 %v852, 2146121005
      %v981 = vmul.u32 %v853, 2146121005
      %v982 = vmul.u32 %v854, 2146121005
      %v983 = vmul.u32 %v855, 2146121005
      %v984 = vmul.u32 %v856, 2146121005
      %v985 = vmul.u32 %v857, 2146121005
      %v986 = vmul.u32 %v858, 2146121005
      %v987 = vmul.u32 %v859, 2146121005
      %v988 = vmul.u32 %v860, 2146121005
      %v989 = vmul.u32 %v861, 2146121005
      %v990 = vmul.u32 %v862, 2146121005
      %v991 = vmul.u32 %v863, 2146121005
      %v992 = vmul.u32 %v864, 2146121005
      %v993 = vmul.u32 %v865, 2146121005
      %v994 = vmul.u32 %v866, 2146121005
      %v995 = vmul.u32 %v867, 2146121005
      %v996 = vmul.u32 %v868, 2146121005
      %v997 = vmul.u32 %v869, 2146121005
      %v998 = vmul.u32 %v870, 2146121005
      %v999 = vmul.u32 %v871, 2146121005
      %v1000 = vmul.u32 %v872, 2146121005
      %v1001 = vmul.u32 %v873, 2146121005
      %v1002 = vmul.u32 %v874, 2146121005
      %v1003 = vmul.u32 %v875, 2146121005
      %v1004 = vmul.u32 %v876, 2146121005
      %v1005 = vmul.u32 %v877, 2146121005
      %v1006 = vmul.u32 %v878, 2146121005
      %v1007 = vmul.u32 %v879, 2146121005
      %v1008 = vmul.u32 %v880, 2146121005
      %v1009 = vmul.u32 %v881, 2146121005
      %v1010 = vmul.u32 %v882, 2146121005
      %v1011 = vmul.u32 %v883, 2146121005
      %v1012 = vmul.u32 %v884, 2146121005
      %v1013 = vmul.u32 %v885, 2146121005
      %v1014 = vmul.u32 %v886, 2146121005
      %v1015 = vmul.u32 %v887, 2146121005
      %v1016 = vmul.u32 %v888, 2146121005
      %v1017 = vmul.u32 %v889, 2146121005
      %v1018 = vmul.u32 %v890, 2146121005
      %v1019 = vmul.u32 %v891, 2146121005
      %v1020 = vmul.u32 %v892, 2146121005
      %v1021 = vmul.u32 %v893, 2146121005
      %v1022 = vmul.u32 %v894, 2146121005
      %v1023 = vmul.u32 %v895, 2146121005
      %v1024 = vmul.u32 %v896, 2146121005
      %v1025 = vmul.u32 %v897, 2146121005
      %v1026 = vmul.u32 %v898, 2146121005
      %v1027 = vmul.u32 %v899, 2146121005
      %v1028 = vmul.u32 %v900, 2146121005
      %v1029 = vmul.u32 %v901, 2146121005
      %v1030 = vmul.u32 %v902, 2146121005
      %v1031 = vmul.u32 %v903, 2146121005
      %v1032 = vshrl.u32 %v904, 15
      %v1033 = vshrl.u32 %v905, 15
      %v1034 = vshrl.u32 %v906, 15
      %v1035 = vshrl.u32 %v907, 15
      %v1036 = vshrl.u32 %v908, 15
      %v1037 = vshrl.u32 %v909, 15
      %v1038 = vshrl.u32 %v910, 15
      %v1039 = vshrl.u32 %v911, 15
      %v1040 = vshrl.u32 %v912, 15
      %v1041 = vshrl.u32 %v913, 15
      %v1042 = vshrl.u32 %v914, 15
      %v1043 = vshrl.u32 %v915, 15
      %v1044 = vshrl.u32 %v916, 15
      %v1045 = vshrl.u32 %v917, 15
      %v1046 = vshrl.u32 %v918, 15
      %v1047 = vshrl.u32 %v919, 15
      %v1048 = vshrl.u32 %v920, 15
      %v1049 = vshrl.u32 %v921, 15
      %v1050 = vshrl.u32 %v922, 15
      %v1051 = vshrl.u32 %v923, 15
      %v1052 = vshrl.u32 %v924, 15
      %v1053 = vshrl.u32 %v925, 15
      %v1054 = vshrl.u32 %v926, 15
      %v1055 = vshrl.u32 %v927, 15
      %v1056 = vshrl.u32 %v928, 15
      %v1057 = vshrl.u32 %v929, 15
      %v1058 = vshrl.u32 %v930, 15
      %v1059 = vshrl.u32 %v931, 15
      %v1060 = vshrl.u32 %v932, 15
      %v1061 = vshrl.u32 %v933, 15
      %v1062 = vshrl.u32 %v934, 15
      %v1063 = vshrl.u32 %v935, 15
      %v1064 = vshrl.u32 %v936, 15
      %v1065 = vshrl.u32 %v937, 15
      %v1066 = vshrl.u32 %v938, 15
      %v1067 = vshrl.u32 %v939, 15
      %v1068 = vshrl.u32 %v940, 15
      %v1069 = vshrl.u32 %v941, 15
      %v1070 = vshrl.u32 %v942, 15
      %v1071 = vshrl.u32 %v943, 15
      %v1072 = vshrl.u32 %v944, 15
      %v1073 = vshrl.u32 %v945, 15
      %v1074 = vshrl.u32 %v946, 15
      %v1075 = vshrl.u32 %v947, 15
      %v1076 = vshrl.u32 %v948, 15
      %v1077 = vshrl.u32 %v949, 15
      %v1078 = vshrl.u32 %v950, 15
      %v1079 = vshrl.u32 %v951, 15
      %v1080 = vshrl.u32 %v952, 15
      %v1081 = vshrl.u32 %v953, 15
      %v1082 = vshrl.u32 %v954, 15
      %v1083 = vshrl.u32 %v955, 15
      %v1084 = vshrl.u32 %v956, 15
      %v1085 = vshrl.u32 %v957, 15
      %v1086 = vshrl.u32 %v958, 15
      %v1087 = vshrl.u32 %v959, 15
      %v1088 = vshrl.u32 %v960, 15
      %v1089 = vshrl.u32 %v961, 15
      %v1090 = vshrl.u32 %v962, 15
      %v1091 = vshrl.u32 %v963, 15
      %v1092 = vshrl.u32 %v964, 15
      %v1093 = vshrl.u32 %v965, 15
      %v1094 = vshrl.u32 %v966, 15
      %v1095 = vshrl.u32 %v967, 15
      %v1096 = vshrl.u32 %v968, 15
      %v1097 = vshrl.u32 %v969, 15
      %v1098 = vshrl.u32 %v970, 15
      %v1099 = vshrl.u32 %v971, 15
      %v1100 = vshrl.u32 %v972, 15
      %v1101 = vshrl.u32 %v973, 15
      %v1102 = vshrl.u32 %v974, 15
      %v1103 = vshrl.u32 %v975, 15
      %v1104 = vshrl.u32 %v976, 15
      %v1105 = vshrl.u32 %v977, 15
      %v1106 = vshrl.u32 %v978, 15
      %v1107 = vshrl.u32 %v979, 15
      %v1108 = vshrl.u32 %v980, 15
      %v1109 = vshrl.u32 %v981, 15
      %v1110 = vshrl.u32 %v982, 15
      %v1111 = vshrl.u32 %v983, 15
      %v1112 = vshrl.u32 %v984, 15
      %v1113 = vshrl.u32 %v985, 15
      %v1114 = vshrl.u32 %v986, 15
      %v1115 = vshrl.u32 %v987, 15
      %v1116 = vshrl.u32 %v988, 15
      %v1117 = vshrl.u32 %v989, 15
      %v1118 = vshrl.u32 %v990, 15
      %v1119 = vshrl.u32 %v991, 15
      %v1120 = vshrl.u32 %v992, 15
      %v1121 = vshrl.u32 %v993, 15
      %v1122 = vshrl.u32 %v994, 15
      %v1123 = vshrl.u32 %v995, 15
      %v1124 = vshrl.u32 %v996, 15
      %v1125 = vshrl.u32 %v997, 15
      %v1126 = vshrl.u32 %v998, 15
      %v1127 = vshrl.u32 %v999, 15
      %v1128 = vshrl.u32 %v1000, 15
      %v1129 = vshrl.u32 %v1001, 15
      %v1130 = vshrl.u32 %v1002, 15
      %v1131 = vshrl.u32 %v1003, 15
      %v1132 = vshrl.u32 %v1004, 15
      %v1133 = vshrl.u32 %v1005, 15
      %v1134 = vshrl.u32 %v1006, 15
      %v1135 = vshrl.u32 %v1007, 15
      %v1136 = vshrl.u32 %v1008, 15
      %v1137 = vshrl.u32 %v1009, 15
      %v1138 = vshrl.u32 %v1010, 15
      %v1139 = vshrl.u32 %v1011, 15
      %v1140 = vshrl.u32 %v1012, 15
      %v1141 = vshrl.u32 %v1013, 15
      %v1142 = vshrl.u32 %v1014, 15
      %v1143 = vshrl.u32 %v1015, 15
      %v1144 = vshrl.u32 %v1016, 15
      %v1145 = vshrl.u32 %v1017, 15
      %v1146 = vshrl.u32 %v1018, 15
      %v1147 = vshrl.u32 %v1019, 15
      %v1148 = vshrl.u32 %v1020, 15
      %v1149 = vshrl.u32 %v1021, 15
      %v1150 = vshrl.u32 %v1022, 15
      %v1151 = vshrl.u32 %v1023, 15
      %v1152 = vshrl.u32 %v1024, 15
      %v1153 = vshrl.u32 %v1025, 15
      %v1154 = vshrl.u32 %v1026, 15
      %v1155 = vshrl.u32 %v1027, 15
      %v1156 = vshrl.u32 %v1028, 15
      %v1157 = vshrl.u32 %v1029, 15
      %v1158 = vshrl.u32 %v1030, 15
      %v1159 = vshrl.u32 %v1031, 15
      %v1160 = vxor.u32 %v904, %v1032
      %v1161 = vxor.u32 %v905, %v1033
      %v1162 = vxor.u32 %v906, %v1034
      %v1163 = vxor.u32 %v907, %v1035
      %v1164 = vxor.u32 %v908, %v1036
      %v1165 = vxor.u32 %v909, %v1037
      %v1166 = vxor.u32 %v910, %v1038
      %v1167 = vxor.u32 %v911, %v1039
      %v1168 = vxor.u32 %v912, %v1040
      %v1169 = vxor.u32 %v913, %v1041
      %v1170 = vxor.u32 %v914, %v1042
      %v1171 = vxor.u32 %v915, %v1043
      %v1172 = vxor.u32 %v916, %v1044
      %v1173 = vxor.u32 %v917, %v1045
      %v1174 = vxor.u32 %v918, %v1046
      %v1175 = vxor.u32 %v919, %v1047
      %v1176 = vxor.u32 %v920, %v1048
      %v1177 = vxor.u32 %v921, %v1049
      %v1178 = vxor.u32 %v922, %v1050
      %v1179 = vxor.u32 %v923, %v1051
      %v1180 = vxor.u32 %v924, %v1052
      %v1181 = vxor.u32 %v925, %v1053
      %v1182 = vxor.u32 %v926, %v1054
      %v1183 = vxor.u32 %v927, %v1055
      %v1184 = vxor.u32 %v928, %v1056
      %v1185 = vxor.u32 %v929, %v1057
      %v1186 = vxor.u32 %v930, %v1058
      %v1187 = vxor.u32 %v931, %v1059
      %v1188 = vxor.u32 %v932, %v1060
      %v1189 = vxor.u32 %v933, %v1061
      %v1190 = vxor.u32 %v934, %v1062
      %v1191 = vxor.u32 %v935, %v1063
      %v1192 = vxor.u32 %v936, %v1064
      %v1193 = vxor.u32 %v937, %v1065
      %v1194 = vxor.u32 %v938, %v1066
      %v1195 = vxor.u32 %v939, %v1067
      %v1196 = vxor.u32 %v940, %v1068
      %v1197 = vxor.u32 %v941, %v1069
      %v1198 = vxor.u32 %v942, %v1070
      %v1199 = vxor.u32 %v943, %v1071
      %v1200 = vxor.u32 %v944, %v1072
      %v1201 = vxor.u32 %v945, %v1073
      %v1202 = vxor.u32 %v946, %v1074
      %v1203 = vxor.u32 %v947, %v1075
      %v1204 = vxor.u32 %v948, %v1076
      %v1205 = vxor.u32 %v949, %v1077
      %v1206 = vxor.u32 %v950, %v1078
      %v1207 = vxor.u32 %v951, %v1079
      %v1208 = vxor.u32 %v952, %v1080
      %v1209 = vxor.u32 %v953, %v1081
      %v1210 = vxor.u32 %v954, %v1082
      %v1211 = vxor.u32 %v955, %v1083
      %v1212 = vxor.u32 %v956, %v1084
      %v1213 = vxor.u32 %v957, %v1085
      %v1214 = vxor.u32 %v958, %v1086
      %v1215 = vxor.u32 %v959, %v1087
      %v1216 = vxor.u32 %v960, %v1088
      %v1217 = vxor.u32 %v961, %v1089
      %v1218 = vxor.u32 %v962, %v1090
      %v1219 = vxor.u32 %v963, %v1091
      %v1220 = vxor.u32 %v964, %v1092
      %v1221 = vxor.u32 %v965, %v1093
      %v1222 = vxor.u32 %v966, %v1094
      %v1223 = vxor.u32 %v967, %v1095
      %v1224 = vxor.u32 %v968, %v1096
      %v1225 = vxor.u32 %v969, %v1097
      %v1226 = vxor.u32 %v970, %v1098
      %v1227 = vxor.u32 %v971, %v1099
      %v1228 = vxor.u32 %v972, %v1100
      %v1229 = vxor.u32 %v973, %v1101
      %v1230 = vxor.u32 %v974, %v1102
      %v1231 = vxor.u32 %v975, %v1103
      %v1232 = vxor.u32 %v976, %v1104
      %v1233 = vxor.u32 %v977, %v1105
      %v1234 = vxor.u32 %v978, %v1106
      %v1235 = vxor.u32 %v979, %v1107
      %v1236 = vxor.u32 %v980, %v1108
      %v1237 = vxor.u32 %v981, %v1109
      %v1238 = vxor.u32 %v982, %v1110
      %v1239 = vxor.u32 %v983, %v1111
      %v1240 = vxor.u32 %v984, %v1112
      %v1241 = vxor.u32 %v985, %v1113
      %v1242 = vxor.u32 %v986, %v1114
      %v1243 = vxor.u32 %v987, %v1115
      %v1244 = vxor.u32 %v988, %v1116
      %v1245 = vxor.u32 %v989, %v1117
      %v1246 = vxor.u32 %v990, %v1118
      %v1247 = vxor.u32 %v991, %v1119
      %v1248 = vxor.u32 %v992, %v1120
      %v1249 = vxor.u32 %v993, %v1121
      %v1250 = vxor.u32 %v994, %v1122
      %v1251 = vxor.u32 %v995, %v1123
      %v1252 = vxor.u32 %v996, %v1124
      %v1253 = vxor.u32 %v997, %v1125
      %v1254 = vxor.u32 %v998, %v1126
      %v1255 = vxor.u32 %v999, %v1127
      %v1256 = vxor.u32 %v1000, %v1128
      %v1257 = vxor.u32 %v1001, %v1129
      %v1258 = vxor.u32 %v1002, %v1130
      %v1259 = vxor.u32 %v1003, %v1131
      %v1260 = vxor.u32 %v1004, %v1132
      %v1261 = vxor.u32 %v1005, %v1133
      %v1262 = vxor.u32 %v1006, %v1134
      %v1263 = vxor.u32 %v1007, %v1135
      %v1264 = vxor.u32 %v1008, %v1136
      %v1265 = vxor.u32 %v1009, %v1137
      %v1266 = vxor.u32 %v1010, %v1138
      %v1267 = vxor.u32 %v1011, %v1139
      %v1268 = vxor.u32 %v1012, %v1140
      %v1269 = vxor.u32 %v1013, %v1141
      %v1270 = vxor.u32 %v1014, %v1142
      %v1271 = vxor.u32 %v1015, %v1143
      %v1272 = vxor.u32 %v1016, %v1144
      %v1273 = vxor.u32 %v1017, %v1145
      %v1274 = vxor.u32 %v1018, %v1146
      %v1275 = vxor.u32 %v1019, %v1147
      %v1276 = vxor.u32 %v1020, %v1148
      %v1277 = vxor.u32 %v1021, %v1149
      %v1278 = vxor.u32 %v1022, %v1150
      %v1279 = vxor.u32 %v1023, %v1151
      %v1280 = vxor.u32 %v1024, %v1152
      %v1281 = vxor.u32 %v1025, %v1153
      %v1282 = vxor.u32 %v1026, %v1154
      %v1283 = vxor.u32 %v1027, %v1155
      %v1284 = vxor.u32 %v1028, %v1156
      %v1285 = vxor.u32 %v1029, %v1157
      %v1286 = vxor.u32 %v1030, %v1158
      %v1287 = vxor.u32 %v1031, %v1159
      %v1288 = vmul.u32 %v1160, 2221713035
      %v1289 = vmul.u32 %v1161, 2221713035
      %v1290 = vmul.u32 %v1162, 2221713035
      %v1291 = vmul.u32 %v1163, 2221713035
      %v1292 = vmul.u32 %v1164, 2221713035
      %v1293 = vmul.u32 %v1165, 2221713035
      %v1294 = vmul.u32 %v1166, 2221713035
      %v1295 = vmul.u32 %v1167, 2221713035
      %v1296 = vmul.u32 %v1168, 2221713035
      %v1297 = vmul.u32 %v1169, 2221713035
      %v1298 = vmul.u32 %v1170, 2221713035
      %v1299 = vmul.u32 %v1171, 2221713035
      %v1300 = vmul.u32 %v1172, 2221713035
      %v1301 = vmul.u32 %v1173, 2221713035
      %v1302 = vmul.u32 %v1174, 2221713035
      %v1303 = vmul.u32 %v1175, 2221713035
      %v1304 = vmul.u32 %v1176, 2221713035
      %v1305 = vmul.u32 %v1177, 2221713035
      %v1306 = vmul.u32 %v1178, 2221713035
      %v1307 = vmul.u32 %v1179, 2221713035
      %v1308 = vmul.u32 %v1180, 2221713035
      %v1309 = vmul.u32 %v1181, 2221713035
      %v1310 = vmul.u32 %v1182, 2221713035
      %v1311 = vmul.u32 %v1183, 2221713035
      %v1312 = vmul.u32 %v1184, 2221713035
      %v1313 = vmul.u32 %v1185, 2221713035
      %v1314 = vmul.u32 %v1186, 2221713035
      %v1315 = vmul.u32 %v1187, 2221713035
      %v1316 = vmul.u32 %v1188, 2221713035
      %v1317 = vmul.u32 %v1189, 2221713035
      %v1318 = vmul.u32 %v1190, 2221713035
      %v1319 = vmul.u32 %v1191, 2221713035
      %v1320 = vmul.u32 %v1192, 2221713035
      %v1321 = vmul.u32 %v1193, 2221713035
      %v1322 = vmul.u32 %v1194, 2221713035
      %v1323 = vmul.u32 %v1195, 2221713035
      %v1324 = vmul.u32 %v1196, 2221713035
      %v1325 = vmul.u32 %v1197, 2221713035
      %v1326 = vmul.u32 %v1198, 2221713035
      %v1327 = vmul.u32 %v1199, 2221713035
      %v1328 = vmul.u32 %v1200, 2221713035
      %v1329 = vmul.u32 %v1201, 2221713035
      %v1330 = vmul.u32 %v1202, 2221713035
      %v1331 = vmul.u32 %v1203, 2221713035
      %v1332 = vmul.u32 %v1204, 2221713035
      %v1333 = vmul.u32 %v1205, 2221713035
      %v1334 = vmul.u32 %v1206, 2221713035
      %v1335 = vmul.u32 %v1207, 2221713035
      %v1336 = vmul.u32 %v1208, 2221713035
      %v1337 = vmul.u32 %v1209, 2221713035
      %v1338 = vmul.u32 %v1210, 2221713035
      %v1339 = vmul.u32 %v1211, 2221713035
      %v1340 = vmul.u32 %v1212, 2221713035
      %v1341 = vmul.u32 %v1213, 2221713035
      %v1342 = vmul.u32 %v1214, 2221713035
      %v1343 = vmul.u32 %v1215, 2221713035
      %v1344 = vmul.u32 %v1216, 2221713035
      %v1345 = vmul.u32 %v1217, 2221713035
      %v1346 = vmul.u32 %v1218, 2221713035
      %v1347 = vmul.u32 %v1219, 2221713035
      %v1348 = vmul.u32 %v1220, 2221713035
      %v1349 = vmul.u32 %v1221, 2221713035
      %v1350 = vmul.u32 %v1222, 2221713035
      %v1351 = vmul.u32 %v1223, 2221713035
      %v1352 = vmul.u32 %v1224, 2221713035
      %v1353 = vmul.u32 %v1225, 2221713035
      %v1354 = vmul.u32 %v1226, 2221713035
      %v1355 = vmul.u32 %v1227, 2221713035
      %v1356 = vmul.u32 %v1228, 2221713035
      %v1357 = vmul.u32 %v1229, 2221713035
      %v1358 = vmul.u32 %v1230, 2221713035
      %v1359 = vmul.u32 %v1231, 2221713035
      %v1360 = vmul.u32 %v1232, 2221713035
      %v1361 = vmul.u32 %v1233, 2221713035
      %v1362 = vmul.u32 %v1234, 2221713035
      %v1363 = vmul.u32 %v1235, 2221713035
      %v1364 = vmul.u32 %v1236, 2221713035
      %v1365 = vmul.u32 %v1237, 2221713035
      %v1366 = vmul.u32 %v1238, 2221713035
      %v1367 = vmul.u32 %v1239, 2221713035
      %v1368 = vmul.u32 %v1240, 2221713035
      %v1369 = vmul.u32 %v1241, 2221713035
      %v1370 = vmul.u32 %v1242, 2221713035
      %v1371 = vmul.u32 %v1243, 2221713035
      %v1372 = vmul.u32 %v1244, 2221713035
      %v1373 = vmul.u32 %v1245, 2221713035
      %v1374 = vmul.u32 %v1246, 2221713035
      %v1375 = vmul.u32 %v1247, 2221713035
      %v1376 = vmul.u32 %v1248, 2221713035
      %v1377 = vmul.u32 %v1249, 2221713035
      %v1378 = vmul.u32 %v1250, 2221713035
      %v1379 = vmul.u32 %v1251, 2221713035
      %v1380 = vmul.u32 %v1252, 2221713035
      %v1381 = vmul.u32 %v1253, 2221713035
      %v1382 = vmul.u32 %v1254, 2221713035
      %v1383 = vmul.u32 %v1255, 2221713035
      %v1384 = vmul.u32 %v1256, 2221713035
      %v1385 = vmul.u32 %v1257, 2221713035
      %v1386 = vmul.u32 %v1258, 2221713035
      %v1387 = vmul.u32 %v1259, 2221713035
      %v1388 = vmul.u32 %v1260, 2221713035
      %v1389 = vmul.u32 %v1261, 2221713035
      %v1390 = vmul.u32 %v1262, 2221713035
      %v1391 = vmul.u32 %v1263, 2221713035
      %v1392 = vmul.u32 %v1264, 2221713035
      %v1393 = vmul.u32 %v1265, 2221713035
      %v1394 = vmul.u32 %v1266, 2221713035
      %v1395 = vmul.u32 %v1267, 2221713035
      %v1396 = vmul.u32 %v1268, 2221713035
      %v1397 = vmul.u32 %v1269, 2221713035
      %v1398 = vmul.u32 %v1270, 2221713035
      %v1399 = vmul.u32 %v1271, 2221713035
      %v1400 = vmul.u32 %v1272, 2221713035
      %v1401 = vmul.u32 %v1273, 2221713035
      %v1402 = vmul.u32 %v1274, 2221713035
      %v1403 = vmul.u32 %v1275, 2221713035
      %v1404 = vmul.u32 %v1276, 2221713035
      %v1405 = vmul.u32 %v1277, 2221713035
      %v1406 = vmul.u32 %v1278, 2221713035
      %v1407 = vmul.u32 %v1279, 2221713035
      %v1408 = vmul.u32 %v1280, 2221713035
      %v1409 = vmul.u32 %v1281, 2221713035
      %v1410 = vmul.u32 %v1282, 2221713035
      %v1411 = vmul.u32 %v1283, 2221713035
      %v1412 = vmul.u32 %v1284, 2221713035
      %v1413 = vmul.u32 %v1285, 2221713035
      %v1414 = vmul.u32 %v1286, 2221713035
      %v1415 = vmul.u32 %v1287, 2221713035
      %v1416 = vshrl.u32 %v1288, 16
      %v1417 = vshrl.u32 %v1289, 16
      %v1418 = vshrl.u32 %v1290, 16
      %v1419 = vshrl.u32 %v1291, 16
      %v1420 = vshrl.u32 %v1292, 16
      %v1421 = vshrl.u32 %v1293, 16
      %v1422 = vshrl.u32 %v1294, 16
      %v1423 = vshrl.u32 %v1295, 16
      %v1424 = vshrl.u32 %v1296, 16
      %v1425 = vshrl.u32 %v1297, 16
      %v1426 = vshrl.u32 %v1298, 16
      %v1427 = vshrl.u32 %v1299, 16
      %v1428 = vshrl.u32 %v1300, 16
      %v1429 = vshrl.u32 %v1301, 16
      %v1430 = vshrl.u32 %v1302, 16
      %v1431 = vshrl.u32 %v1303, 16
      %v1432 = vshrl.u32 %v1304, 16
      %v1433 = vshrl.u32 %v1305, 16
      %v1434 = vshrl.u32 %v1306, 16
      %v1435 = vshrl.u32 %v1307, 16
      %v1436 = vshrl.u32 %v1308, 16
      %v1437 = vshrl.u32 %v1309, 16
      %v1438 = vshrl.u32 %v1310, 16
      %v1439 = vshrl.u32 %v1311, 16
      %v1440 = vshrl.u32 %v1312, 16
      %v1441 = vshrl.u32 %v1313, 16
      %v1442 = vshrl.u32 %v1314, 16
      %v1443 = vshrl.u32 %v1315, 16
      %v1444 = vshrl.u32 %v1316, 16
      %v1445 = vshrl.u32 %v1317, 16
      %v1446 = vshrl.u32 %v1318, 16
      %v1447 = vshrl.u32 %v1319, 16
      %v1448 = vshrl.u32 %v1320, 16
      %v1449 = vshrl.u32 %v1321, 16
      %v1450 = vshrl.u32 %v1322, 16
      %v1451 = vshrl.u32 %v1323, 16
      %v1452 = vshrl.u32 %v1324, 16
      %v1453 = vshrl.u32 %v1325, 16
      %v1454 = vshrl.u32 %v1326, 16
      %v1455 = vshrl.u32 %v1327, 16
      %v1456 = vshrl.u32 %v1328, 16
      %v1457 = vshrl.u32 %v1329, 16
      %v1458 = vshrl.u32 %v1330, 16
      %v1459 = vshrl.u32 %v1331, 16
      %v1460 = vshrl.u32 %v1332, 16
      %v1461 = vshrl.u32 %v1333, 16
      %v1462 = vshrl.u32 %v1334, 16
      %v1463 = vshrl.u32 %v1335, 16
      %v1464 = vshrl.u32 %v1336, 16
      %v1465 = vshrl.u32 %v1337, 16
      %v1466 = vshrl.u32 %v1338, 16
      %v1467 = vshrl.u32 %v1339, 16
      %v1468 = vshrl.u32 %v1340, 16
      %v1469 = vshrl.u32 %v1341, 16
      %v1470 = vshrl.u32 %v1342, 16
      %v1471 = vshrl.u32 %v1343, 16
      %v1472 = vshrl.u32 %v1344, 16
      %v1473 = vshrl.u32 %v1345, 16
      %v1474 = vshrl.u32 %v1346, 16
      %v1475 = vshrl.u32 %v1347, 16
      %v1476 = vshrl.u32 %v1348, 16
      %v1477 = vshrl.u32 %v1349, 16
      %v1478 = vshrl.u32 %v1350, 16
      %v1479 = vshrl.u32 %v1351, 16
      %v1480 = vshrl.u32 %v1352, 16
      %v1481 = vshrl.u32 %v1353, 16
      %v1482 = vshrl.u32 %v1354, 16
      %v1483 = vshrl.u32 %v1355, 16
      %v1484 = vshrl.u32 %v1356, 16
      %v1485 = vshrl.u32 %v1357, 16
      %v1486 = vshrl.u32 %v1358, 16
      %v1487 = vshrl.u32 %v1359, 16
      %v1488 = vshrl.u32 %v1360, 16
      %v1489 = vshrl.u32 %v1361, 16
      %v1490 = vshrl.u32 %v1362, 16
      %v1491 = vshrl.u32 %v1363, 16
      %v1492 = vshrl.u32 %v1364, 16
      %v1493 = vshrl.u32 %v1365, 16
      %v1494 = vshrl.u32 %v1366, 16
      %v1495 = vshrl.u32 %v1367, 16
      %v1496 = vshrl.u32 %v1368, 16
      %v1497 = vshrl.u32 %v1369, 16
      %v1498 = vshrl.u32 %v1370, 16
      %v1499 = vshrl.u32 %v1371, 16
      %v1500 = vshrl.u32 %v1372, 16
      %v1501 = vshrl.u32 %v1373, 16
      %v1502 = vshrl.u32 %v1374, 16
      %v1503 = vshrl.u32 %v1375, 16
      %v1504 = vshrl.u32 %v1376, 16
      %v1505 = vshrl.u32 %v1377, 16
      %v1506 = vshrl.u32 %v1378, 16
      %v1507 = vshrl.u32 %v1379, 16
      %v1508 = vshrl.u32 %v1380, 16
      %v1509 = vshrl.u32 %v1381, 16
      %v1510 = vshrl.u32 %v1382, 16
      %v1511 = vshrl.u32 %v1383, 16
      %v1512 = vshrl.u32 %v1384, 16
      %v1513 = vshrl.u32 %v1385, 16
      %v1514 = vshrl.u32 %v1386, 16
      %v1515 = vshrl.u32 %v1387, 16
      %v1516 = vshrl.u32 %v1388, 16
      %v1517 = vshrl.u32 %v1389, 16
      %v1518 = vshrl.u32 %v1390, 16
      %v1519 = vshrl.u32 %v1391, 16
      %v1520 = vshrl.u32 %v1392, 16
      %v1521 = vshrl.u32 %v1393, 16
      %v1522 = vshrl.u32 %v1394, 16
      %v1523 = vshrl.u32 %v1395, 16
      %v1524 = vshrl.u32 %v1396, 16
      %v1525 = vshrl.u32 %v1397, 16
      %v1526 = vshrl.u32 %v1398, 16
      %v1527 = vshrl.u32 %v1399, 16
      %v1528 = vshrl.u32 %v1400, 16
      %v1529 = vshrl.u32 %v1401, 16
      %v1530 = vshrl.u32 %v1402, 16
      %v1531 = vshrl.u32 %v1403, 16
      %v1532 = vshrl.u32 %v1404, 16
      %v1533 = vshrl.u32 %v1405, 16
      %v1534 = vshrl.u32 %v1406, 16
      %v1535 = vshrl.u32 %v1407, 16
      %v1536 = vshrl.u32 %v1408, 16
      %v1537 = vshrl.u32 %v1409, 16
      %v1538 = vshrl.u32 %v1410, 16
      %v1539 = vshrl.u32 %v1411, 16
      %v1540 = vshrl.u32 %v1412, 16
      %v1541 = vshrl.u32 %v1413, 16
      %v1542 = vshrl.u32 %v1414, 16
      %v1543 = vshrl.u32 %v1415, 16
      %v1544 = vxor.u32 %v1288, %v1416
      %v1545 = vxor.u32 %v1289, %v1417
      %v1546 = vxor.u32 %v1290, %v1418
      %v1547 = vxor.u32 %v1291, %v1419
      %v1548 = vxor.u32 %v1292, %v1420
      %v1549 = vxor.u32 %v1293, %v1421
      %v1550 = vxor.u32 %v1294, %v1422
      %v1551 = vxor.u32 %v1295, %v1423
      %v1552 = vxor.u32 %v1296, %v1424
      %v1553 = vxor.u32 %v1297, %v1425
      %v1554 = vxor.u32 %v1298, %v1426
      %v1555 = vxor.u32 %v1299, %v1427
      %v1556 = vxor.u32 %v1300, %v1428
      %v1557 = vxor.u32 %v1301, %v1429
      %v1558 = vxor.u32 %v1302, %v1430
      %v1559 = vxor.u32 %v1303, %v1431
      %v1560 = vxor.u32 %v1304, %v1432
      %v1561 = vxor.u32 %v1305, %v1433
      %v1562 = vxor.u32 %v1306, %v1434
      %v1563 = vxor.u32 %v1307, %v1435
      %v1564 = vxor.u32 %v1308, %v1436
      %v1565 = vxor.u32 %v1309, %v1437
      %v1566 = vxor.u32 %v1310, %v1438
      %v1567 = vxor.u32 %v1311, %v1439
      %v1568 = vxor.u32 %v1312, %v1440
      %v1569 = vxor.u32 %v1313, %v1441
      %v1570 = vxor.u32 %v1314, %v1442
      %v1571 = vxor.u32 %v1315, %v1443
      %v1572 = vxor.u32 %v1316, %v1444
      %v1573 = vxor.u32 %v1317, %v1445
      %v1574 = vxor.u32 %v1318, %v1446
      %v1575 = vxor.u32 %v1319, %v1447
      %v1576 = vxor.u32 %v1320, %v1448
      %v1577 = vxor.u32 %v1321, %v1449
      %v1578 = vxor.u32 %v1322, %v1450
      %v1579 = vxor.u32 %v1323, %v1451
      %v1580 = vxor.u32 %v1324, %v1452
      %v1581 = vxor.u32 %v1325, %v1453
      %v1582 = vxor.u32 %v1326, %v1454
      %v1583 = vxor.u32 %v1327, %v1455
      %v1584 = vxor.u32 %v1328, %v1456
      %v1585 = vxor.u32 %v1329, %v1457
      %v1586 = vxor.u32 %v1330, %v1458
      %v1587 = vxor.u32 %v1331, %v1459
      %v1588 = vxor.u32 %v1332, %v1460
      %v1589 = vxor.u32 %v1333, %v1461
      %v1590 = vxor.u32 %v1334, %v1462
      %v1591 = vxor.u32 %v1335, %v1463
      %v1592 = vxor.u32 %v1336, %v1464
      %v1593 = vxor.u32 %v1337, %v1465
      %v1594 = vxor.u32 %v1338, %v1466
      %v1595 = vxor.u32 %v1339, %v1467
      %v1596 = vxor.u32 %v1340, %v1468
      %v1597 = vxor.u32 %v1341, %v1469
      %v1598 = vxor.u32 %v1342, %v1470
      %v1599 = vxor.u32 %v1343, %v1471
      %v1600 = vxor.u32 %v1344, %v1472
      %v1601 = vxor.u32 %v1345, %v1473
      %v1602 = vxor.u32 %v1346, %v1474
      %v1603 = vxor.u32 %v1347, %v1475
      %v1604 = vxor.u32 %v1348, %v1476
      %v1605 = vxor.u32 %v1349, %v1477
      %v1606 = vxor.u32 %v1350, %v1478
      %v1607 = vxor.u32 %v1351, %v1479
      %v1608 = vxor.u32 %v1352, %v1480
      %v1609 = vxor.u32 %v1353, %v1481
      %v1610 = vxor.u32 %v1354, %v1482
      %v1611 = vxor.u32 %v1355, %v1483
      %v1612 = vxor.u32 %v1356, %v1484
      %v1613 = vxor.u32 %v1357, %v1485
      %v1614 = vxor.u32 %v1358, %v1486
      %v1615 = vxor.u32 %v1359, %v1487
      %v1616 = vxor.u32 %v1360, %v1488
      %v1617 = vxor.u32 %v1361, %v1489
      %v1618 = vxor.u32 %v1362, %v1490
      %v1619 = vxor.u32 %v1363, %v1491
      %v1620 = vxor.u32 %v1364, %v1492
      %v1621 = vxor.u32 %v1365, %v1493
      %v1622 = vxor.u32 %v1366, %v1494
      %v1623 = vxor.u32 %v1367, %v1495
      %v1624 = vxor.u32 %v1368, %v1496
      %v1625 = vxor.u32 %v1369, %v1497
      %v1626 = vxor.u32 %v1370, %v1498
      %v1627 = vxor.u32 %v1371, %v1499
      %v1628 = vxor.u32 %v1372, %v1500
      %v1629 = vxor.u32 %v1373, %v1501
      %v1630 = vxor.u32 %v1374, %v1502
      %v1631 = vxor.u32 %v1375, %v1503
      %v1632 = vxor.u32 %v1376, %v1504
      %v1633 = vxor.u32 %v1377, %v1505
      %v1634 = vxor.u32 %v1378, %v1506
      %v1635 = vxor.u32 %v1379, %v1507
      %v1636 = vxor.u32 %v1380, %v1508
      %v1637 = vxor.u32 %v1381, %v1509
      %v1638 = vxor.u32 %v1382, %v1510
      %v1639 = vxor.u32 %v1383, %v1511
      %v1640 = vxor.u32 %v1384, %v1512
      %v1641 = vxor.u32 %v1385, %v1513
      %v1642 = vxor.u32 %v1386, %v1514
      %v1643 = vxor.u32 %v1387, %v1515
      %v1644 = vxor.u32 %v1388, %v1516
      %v1645 = vxor.u32 %v1389, %v1517
      %v1646 = vxor.u32 %v1390, %v1518
      %v1647 = vxor.u32 %v1391, %v1519
      %v1648 = vxor.u32 %v1392, %v1520
      %v1649 = vxor.u32 %v1393, %v1521
      %v1650 = vxor.u32 %v1394, %v1522
      %v1651 = vxor.u32 %v1395, %v1523
      %v1652 = vxor.u32 %v1396, %v1524
      %v1653 = vxor.u32 %v1397, %v1525
      %v1654 = vxor.u32 %v1398, %v1526
      %v1655 = vxor.u32 %v1399, %v1527
      %v1656 = vxor.u32 %v1400, %v1528
      %v1657 = vxor.u32 %v1401, %v1529
      %v1658 = vxor.u32 %v1402, %v1530
      %v1659 = vxor.u32 %v1403, %v1531
      %v1660 = vxor.u32 %v1404, %v1532
      %v1661 = vxor.u32 %v1405, %v1533
      %v1662 = vxor.u32 %v1406, %v1534
      %v1663 = vxor.u32 %v1407, %v1535
      %v1664 = vxor.u32 %v1408, %v1536
      %v1665 = vxor.u32 %v1409, %v1537
      %v1666 = vxor.u32 %v1410, %v1538
      %v1667 = vxor.u32 %v1411, %v1539
      %v1668 = vxor.u32 %v1412, %v1540
      %v1669 = vxor.u32 %v1413, %v1541
      %v1670 = vxor.u32 %v1414, %v1542
      %v1671 = vxor.u32 %v1415, %v1543
      %v1672 = vshrl.u32 %v1544, 8
      %v1673 = vshrl.u32 %v1545, 8
      %v1674 = vshrl.u32 %v1546, 8
      %v1675 = vshrl.u32 %v1547, 8
      %v1676 = vshrl.u32 %v1548, 8
      %v1677 = vshrl.u32 %v1549, 8
      %v1678 = vshrl.u32 %v1550, 8
      %v1679 = vshrl.u32 %v1551, 8
      %v1680 = vshrl.u32 %v1552, 8
      %v1681 = vshrl.u32 %v1553, 8
      %v1682 = vshrl.u32 %v1554, 8
      %v1683 = vshrl.u32 %v1555, 8
      %v1684 = vshrl.u32 %v1556, 8
      %v1685 = vshrl.u32 %v1557, 8
      %v1686 = vshrl.u32 %v1558, 8
      %v1687 = vshrl.u32 %v1559, 8
      %v1688 = vshrl.u32 %v1560, 8
      %v1689 = vshrl.u32 %v1561, 8
      %v1690 = vshrl.u32 %v1562, 8
      %v1691 = vshrl.u32 %v1563, 8
      %v1692 = vshrl.u32 %v1564, 8
      %v1693 = vshrl.u32 %v1565, 8
      %v1694 = vshrl.u32 %v1566, 8
      %v1695 = vshrl.u32 %v1567, 8
      %v1696 = vshrl.u32 %v1568, 8
      %v1697 = vshrl.u32 %v1569, 8
      %v1698 = vshrl.u32 %v1570, 8
      %v1699 = vshrl.u32 %v1571, 8
      %v1700 = vshrl.u32 %v1572, 8
      %v1701 = vshrl.u32 %v1573, 8
      %v1702 = vshrl.u32 %v1574, 8
      %v1703 = vshrl.u32 %v1575, 8
      %v1704 = vshrl.u32 %v1576, 8
      %v1705 = vshrl.u32 %v1577, 8
      %v1706 = vshrl.u32 %v1578, 8
      %v1707 = vshrl.u32 %v1579, 8
      %v1708 = vshrl.u32 %v1580, 8
      %v1709 = vshrl.u32 %v1581, 8
      %v1710 = vshrl.u32 %v1582, 8
      %v1711 = vshrl.u32 %v1583, 8
      %v1712 = vshrl.u32 %v1584, 8
      %v1713 = vshrl.u32 %v1585, 8
      %v1714 = vshrl.u32 %v1586, 8
      %v1715 = vshrl.u32 %v1587, 8
      %v1716 = vshrl.u32 %v1588, 8
      %v1717 = vshrl.u32 %v1589, 8
      %v1718 = vshrl.u32 %v1590, 8
      %v1719 = vshrl.u32 %v1591, 8
      %v1720 = vshrl.u32 %v1592, 8
      %v1721 = vshrl.u32 %v1593, 8
      %v1722 = vshrl.u32 %v1594, 8
      %v1723 = vshrl.u32 %v1595, 8
      %v1724 = vshrl.u32 %v1596, 8
      %v1725 = vshrl.u32 %v1597, 8
      %v1726 = vshrl.u32 %v1598, 8
      %v1727 = vshrl.u32 %v1599, 8
      %v1728 = vshrl.u32 %v1600, 8
      %v1729 = vshrl.u32 %v1601, 8
      %v1730 = vshrl.u32 %v1602, 8
      %v1731 = vshrl.u32 %v1603, 8
      %v1732 = vshrl.u32 %v1604, 8
      %v1733 = vshrl.u32 %v1605, 8
      %v1734 = vshrl.u32 %v1606, 8
      %v1735 = vshrl.u32 %v1607, 8
      %v1736 = vshrl.u32 %v1608, 8
      %v1737 = vshrl.u32 %v1609, 8
      %v1738 = vshrl.u32 %v1610, 8
      %v1739 = vshrl.u32 %v1611, 8
      %v1740 = vshrl.u32 %v1612, 8
      %v1741 = vshrl.u32 %v1613, 8
      %v1742 = vshrl.u32 %v1614, 8
      %v1743 = vshrl.u32 %v1615, 8
      %v1744 = vshrl.u32 %v1616, 8
      %v1745 = vshrl.u32 %v1617, 8
      %v1746 = vshrl.u32 %v1618, 8
      %v1747 = vshrl.u32 %v1619, 8
      %v1748 = vshrl.u32 %v1620, 8
      %v1749 = vshrl.u32 %v1621, 8
      %v1750 = vshrl.u32 %v1622, 8
      %v1751 = vshrl.u32 %v1623, 8
      %v1752 = vshrl.u32 %v1624, 8
      %v1753 = vshrl.u32 %v1625, 8
      %v1754 = vshrl.u32 %v1626, 8
      %v1755 = vshrl.u32 %v1627, 8
      %v1756 = vshrl.u32 %v1628, 8
      %v1757 = vshrl.u32 %v1629, 8
      %v1758 = vshrl.u32 %v1630, 8
      %v1759 = vshrl.u32 %v1631, 8
      %v1760 = vshrl.u32 %v1632, 8
      %v1761 = vshrl.u32 %v1633, 8
      %v1762 = vshrl.u32 %v1634, 8
      %v1763 = vshrl.u32 %v1635, 8
      %v1764 = vshrl.u32 %v1636, 8
      %v1765 = vshrl.u32 %v1637, 8
      %v1766 = vshrl.u32 %v1638, 8
      %v1767 = vshrl.u32 %v1639, 8
      %v1768 = vshrl.u32 %v1640, 8
      %v1769 = vshrl.u32 %v1641, 8
      %v1770 = vshrl.u32 %v1642, 8
      %v1771 = vshrl.u32 %v1643, 8
      %v1772 = vshrl.u32 %v1644, 8
      %v1773 = vshrl.u32 %v1645, 8
      %v1774 = vshrl.u32 %v1646, 8
      %v1775 = vshrl.u32 %v1647, 8
      %v1776 = vshrl.u32 %v1648, 8
      %v1777 = vshrl.u32 %v1649, 8
      %v1778 = vshrl.u32 %v1650, 8
      %v1779 = vshrl.u32 %v1651, 8
      %v1780 = vshrl.u32 %v1652, 8
      %v1781 = vshrl.u32 %v1653, 8
      %v1782 = vshrl.u32 %v1654, 8
      %v1783 = vshrl.u32 %v1655, 8
      %v1784 = vshrl.u32 %v1656, 8
      %v1785 = vshrl.u32 %v1657, 8
      %v1786 = vshrl.u32 %v1658, 8
      %v1787 = vshrl.u32 %v1659, 8
      %v1788 = vshrl.u32 %v1660, 8
      %v1789 = vshrl.u32 %v1661, 8
      %v1790 = vshrl.u32 %v1662, 8
      %v1791 = vshrl.u32 %v1663, 8
      %v1792 = vshrl.u32 %v1664, 8
      %v1793 = vshrl.u32 %v1665, 8
      %v1794 = vshrl.u32 %v1666, 8
      %v1795 = vshrl.u32 %v1667, 8
      %v1796 = vshrl.u32 %v1668, 8
      %v1797 = vshrl.u32 %v1669, 8
      %v1798 = vshrl.u32 %v1670, 8
      %v1799 = vshrl.u32 %v1671, 8
      %vm1800 = vcmp.ge.s32.totalorder %v1672, 1677721
      %vm1801 = vcmp.ge.s32.totalorder %v1673, 1677721
      %vm1802 = vcmp.ge.s32.totalorder %v1674, 1677721
      %vm1803 = vcmp.ge.s32.totalorder %v1675, 1677721
      %vm1804 = vcmp.ge.s32.totalorder %v1676, 1677721
      %vm1805 = vcmp.ge.s32.totalorder %v1677, 1677721
      %vm1806 = vcmp.ge.s32.totalorder %v1678, 1677721
      %vm1807 = vcmp.ge.s32.totalorder %v1679, 1677721
      %vm1808 = vcmp.ge.s32.totalorder %v1680, 1677721
      %vm1809 = vcmp.ge.s32.totalorder %v1681, 1677721
      %vm1810 = vcmp.ge.s32.totalorder %v1682, 1677721
      %vm1811 = vcmp.ge.s32.totalorder %v1683, 1677721
      %vm1812 = vcmp.ge.s32.totalorder %v1684, 1677721
      %vm1813 = vcmp.ge.s32.totalorder %v1685, 1677721
      %vm1814 = vcmp.ge.s32.totalorder %v1686, 1677721
      %vm1815 = vcmp.ge.s32.totalorder %v1687, 1677721
      %vm1816 = vcmp.ge.s32.totalorder %v1688, 1677721
      %vm1817 = vcmp.ge.s32.totalorder %v1689, 1677721
      %vm1818 = vcmp.ge.s32.totalorder %v1690, 1677721
      %vm1819 = vcmp.ge.s32.totalorder %v1691, 1677721
      %vm1820 = vcmp.ge.s32.totalorder %v1692, 1677721
      %vm1821 = vcmp.ge.s32.totalorder %v1693, 1677721
      %vm1822 = vcmp.ge.s32.totalorder %v1694, 1677721
      %vm1823 = vcmp.ge.s32.totalorder %v1695, 1677721
      %vm1824 = vcmp.ge.s32.totalorder %v1696, 1677721
      %vm1825 = vcmp.ge.s32.totalorder %v1697, 1677721
      %vm1826 = vcmp.ge.s32.totalorder %v1698, 1677721
      %vm1827 = vcmp.ge.s32.totalorder %v1699, 1677721
      %vm1828 = vcmp.ge.s32.totalorder %v1700, 1677721
      %vm1829 = vcmp.ge.s32.totalorder %v1701, 1677721
      %vm1830 = vcmp.ge.s32.totalorder %v1702, 1677721
      %vm1831 = vcmp.ge.s32.totalorder %v1703, 1677721
      %vm1832 = vcmp.ge.s32.totalorder %v1704, 1677721
      %vm1833 = vcmp.ge.s32.totalorder %v1705, 1677721
      %vm1834 = vcmp.ge.s32.totalorder %v1706, 1677721
      %vm1835 = vcmp.ge.s32.totalorder %v1707, 1677721
      %vm1836 = vcmp.ge.s32.totalorder %v1708, 1677721
      %vm1837 = vcmp.ge.s32.totalorder %v1709, 1677721
      %vm1838 = vcmp.ge.s32.totalorder %v1710, 1677721
      %vm1839 = vcmp.ge.s32.totalorder %v1711, 1677721
      %vm1840 = vcmp.ge.s32.totalorder %v1712, 1677721
      %vm1841 = vcmp.ge.s32.totalorder %v1713, 1677721
      %vm1842 = vcmp.ge.s32.totalorder %v1714, 1677721
      %vm1843 = vcmp.ge.s32.totalorder %v1715, 1677721
      %vm1844 = vcmp.ge.s32.totalorder %v1716, 1677721
      %vm1845 = vcmp.ge.s32.totalorder %v1717, 1677721
      %vm1846 = vcmp.ge.s32.totalorder %v1718, 1677721
      %vm1847 = vcmp.ge.s32.totalorder %v1719, 1677721
      %vm1848 = vcmp.ge.s32.totalorder %v1720, 1677721
      %vm1849 = vcmp.ge.s32.totalorder %v1721, 1677721
      %vm1850 = vcmp.ge.s32.totalorder %v1722, 1677721
      %vm1851 = vcmp.ge.s32.totalorder %v1723, 1677721
      %vm1852 = vcmp.ge.s32.totalorder %v1724, 1677721
      %vm1853 = vcmp.ge.s32.totalorder %v1725, 1677721
      %vm1854 = vcmp.ge.s32.totalorder %v1726, 1677721
      %vm1855 = vcmp.ge.s32.totalorder %v1727, 1677721
      %vm1856 = vcmp.ge.s32.totalorder %v1728, 1677721
      %vm1857 = vcmp.ge.s32.totalorder %v1729, 1677721
      %vm1858 = vcmp.ge.s32.totalorder %v1730, 1677721
      %vm1859 = vcmp.ge.s32.totalorder %v1731, 1677721
      %vm1860 = vcmp.ge.s32.totalorder %v1732, 1677721
      %vm1861 = vcmp.ge.s32.totalorder %v1733, 1677721
      %vm1862 = vcmp.ge.s32.totalorder %v1734, 1677721
      %vm1863 = vcmp.ge.s32.totalorder %v1735, 1677721
      %vm1864 = vcmp.ge.s32.totalorder %v1736, 1677721
      %vm1865 = vcmp.ge.s32.totalorder %v1737, 1677721
      %vm1866 = vcmp.ge.s32.totalorder %v1738, 1677721
      %vm1867 = vcmp.ge.s32.totalorder %v1739, 1677721
      %vm1868 = vcmp.ge.s32.totalorder %v1740, 1677721
      %vm1869 = vcmp.ge.s32.totalorder %v1741, 1677721
      %vm1870 = vcmp.ge.s32.totalorder %v1742, 1677721
      %vm1871 = vcmp.ge.s32.totalorder %v1743, 1677721
      %vm1872 = vcmp.ge.s32.totalorder %v1744, 1677721
      %vm1873 = vcmp.ge.s32.totalorder %v1745, 1677721
      %vm1874 = vcmp.ge.s32.totalorder %v1746, 1677721
      %vm1875 = vcmp.ge.s32.totalorder %v1747, 1677721
      %vm1876 = vcmp.ge.s32.totalorder %v1748, 1677721
      %vm1877 = vcmp.ge.s32.totalorder %v1749, 1677721
      %vm1878 = vcmp.ge.s32.totalorder %v1750, 1677721
      %vm1879 = vcmp.ge.s32.totalorder %v1751, 1677721
      %vm1880 = vcmp.ge.s32.totalorder %v1752, 1677721
      %vm1881 = vcmp.ge.s32.totalorder %v1753, 1677721
      %vm1882 = vcmp.ge.s32.totalorder %v1754, 1677721
      %vm1883 = vcmp.ge.s32.totalorder %v1755, 1677721
      %vm1884 = vcmp.ge.s32.totalorder %v1756, 1677721
      %vm1885 = vcmp.ge.s32.totalorder %v1757, 1677721
      %vm1886 = vcmp.ge.s32.totalorder %v1758, 1677721
      %vm1887 = vcmp.ge.s32.totalorder %v1759, 1677721
      %vm1888 = vcmp.ge.s32.totalorder %v1760, 1677721
      %vm1889 = vcmp.ge.s32.totalorder %v1761, 1677721
      %vm1890 = vcmp.ge.s32.totalorder %v1762, 1677721
      %vm1891 = vcmp.ge.s32.totalorder %v1763, 1677721
      %vm1892 = vcmp.ge.s32.totalorder %v1764, 1677721
      %vm1893 = vcmp.ge.s32.totalorder %v1765, 1677721
      %vm1894 = vcmp.ge.s32.totalorder %v1766, 1677721
      %vm1895 = vcmp.ge.s32.totalorder %v1767, 1677721
      %vm1896 = vcmp.ge.s32.totalorder %v1768, 1677721
      %vm1897 = vcmp.ge.s32.totalorder %v1769, 1677721
      %vm1898 = vcmp.ge.s32.totalorder %v1770, 1677721
      %vm1899 = vcmp.ge.s32.totalorder %v1771, 1677721
      %vm1900 = vcmp.ge.s32.totalorder %v1772, 1677721
      %vm1901 = vcmp.ge.s32.totalorder %v1773, 1677721
      %vm1902 = vcmp.ge.s32.totalorder %v1774, 1677721
      %vm1903 = vcmp.ge.s32.totalorder %v1775, 1677721
      %vm1904 = vcmp.ge.s32.totalorder %v1776, 1677721
      %vm1905 = vcmp.ge.s32.totalorder %v1777, 1677721
      %vm1906 = vcmp.ge.s32.totalorder %v1778, 1677721
      %vm1907 = vcmp.ge.s32.totalorder %v1779, 1677721
      %vm1908 = vcmp.ge.s32.totalorder %v1780, 1677721
      %vm1909 = vcmp.ge.s32.totalorder %v1781, 1677721
      %vm1910 = vcmp.ge.s32.totalorder %v1782, 1677721
      %vm1911 = vcmp.ge.s32.totalorder %v1783, 1677721
      %vm1912 = vcmp.ge.s32.totalorder %v1784, 1677721
      %vm1913 = vcmp.ge.s32.totalorder %v1785, 1677721
      %vm1914 = vcmp.ge.s32.totalorder %v1786, 1677721
      %vm1915 = vcmp.ge.s32.totalorder %v1787, 1677721
      %vm1916 = vcmp.ge.s32.totalorder %v1788, 1677721
      %vm1917 = vcmp.ge.s32.totalorder %v1789, 1677721
      %vm1918 = vcmp.ge.s32.totalorder %v1790, 1677721
      %vm1919 = vcmp.ge.s32.totalorder %v1791, 1677721
      %vm1920 = vcmp.ge.s32.totalorder %v1792, 1677721
      %vm1921 = vcmp.ge.s32.totalorder %v1793, 1677721
      %vm1922 = vcmp.ge.s32.totalorder %v1794, 1677721
      %vm1923 = vcmp.ge.s32.totalorder %v1795, 1677721
      %vm1924 = vcmp.ge.s32.totalorder %v1796, 1677721
      %vm1925 = vcmp.ge.s32.totalorder %v1797, 1677721
      %vm1926 = vcmp.ge.s32.totalorder %v1798, 1677721
      %vm1927 = vcmp.ge.s32.totalorder %v1799, 1677721
      %v1928 = vsel %vm1800, 1.1111112, 0.0
      %v1929 = vsel %vm1801, 1.1111112, 0.0
      %v1930 = vsel %vm1802, 1.1111112, 0.0
      %v1931 = vsel %vm1803, 1.1111112, 0.0
      %v1932 = vsel %vm1804, 1.1111112, 0.0
      %v1933 = vsel %vm1805, 1.1111112, 0.0
      %v1934 = vsel %vm1806, 1.1111112, 0.0
      %v1935 = vsel %vm1807, 1.1111112, 0.0
      %v1936 = vsel %vm1808, 1.1111112, 0.0
      %v1937 = vsel %vm1809, 1.1111112, 0.0
      %v1938 = vsel %vm1810, 1.1111112, 0.0
      %v1939 = vsel %vm1811, 1.1111112, 0.0
      %v1940 = vsel %vm1812, 1.1111112, 0.0
      %v1941 = vsel %vm1813, 1.1111112, 0.0
      %v1942 = vsel %vm1814, 1.1111112, 0.0
      %v1943 = vsel %vm1815, 1.1111112, 0.0
      %v1944 = vsel %vm1816, 1.1111112, 0.0
      %v1945 = vsel %vm1817, 1.1111112, 0.0
      %v1946 = vsel %vm1818, 1.1111112, 0.0
      %v1947 = vsel %vm1819, 1.1111112, 0.0
      %v1948 = vsel %vm1820, 1.1111112, 0.0
      %v1949 = vsel %vm1821, 1.1111112, 0.0
      %v1950 = vsel %vm1822, 1.1111112, 0.0
      %v1951 = vsel %vm1823, 1.1111112, 0.0
      %v1952 = vsel %vm1824, 1.1111112, 0.0
      %v1953 = vsel %vm1825, 1.1111112, 0.0
      %v1954 = vsel %vm1826, 1.1111112, 0.0
      %v1955 = vsel %vm1827, 1.1111112, 0.0
      %v1956 = vsel %vm1828, 1.1111112, 0.0
      %v1957 = vsel %vm1829, 1.1111112, 0.0
      %v1958 = vsel %vm1830, 1.1111112, 0.0
      %v1959 = vsel %vm1831, 1.1111112, 0.0
      %v1960 = vsel %vm1832, 1.1111112, 0.0
      %v1961 = vsel %vm1833, 1.1111112, 0.0
      %v1962 = vsel %vm1834, 1.1111112, 0.0
      %v1963 = vsel %vm1835, 1.1111112, 0.0
      %v1964 = vsel %vm1836, 1.1111112, 0.0
      %v1965 = vsel %vm1837, 1.1111112, 0.0
      %v1966 = vsel %vm1838, 1.1111112, 0.0
      %v1967 = vsel %vm1839, 1.1111112, 0.0
      %v1968 = vsel %vm1840, 1.1111112, 0.0
      %v1969 = vsel %vm1841, 1.1111112, 0.0
      %v1970 = vsel %vm1842, 1.1111112, 0.0
      %v1971 = vsel %vm1843, 1.1111112, 0.0
      %v1972 = vsel %vm1844, 1.1111112, 0.0
      %v1973 = vsel %vm1845, 1.1111112, 0.0
      %v1974 = vsel %vm1846, 1.1111112, 0.0
      %v1975 = vsel %vm1847, 1.1111112, 0.0
      %v1976 = vsel %vm1848, 1.1111112, 0.0
      %v1977 = vsel %vm1849, 1.1111112, 0.0
      %v1978 = vsel %vm1850, 1.1111112, 0.0
      %v1979 = vsel %vm1851, 1.1111112, 0.0
      %v1980 = vsel %vm1852, 1.1111112, 0.0
      %v1981 = vsel %vm1853, 1.1111112, 0.0
      %v1982 = vsel %vm1854, 1.1111112, 0.0
      %v1983 = vsel %vm1855, 1.1111112, 0.0
      %v1984 = vsel %vm1856, 1.1111112, 0.0
      %v1985 = vsel %vm1857, 1.1111112, 0.0
      %v1986 = vsel %vm1858, 1.1111112, 0.0
      %v1987 = vsel %vm1859, 1.1111112, 0.0
      %v1988 = vsel %vm1860, 1.1111112, 0.0
      %v1989 = vsel %vm1861, 1.1111112, 0.0
      %v1990 = vsel %vm1862, 1.1111112, 0.0
      %v1991 = vsel %vm1863, 1.1111112, 0.0
      %v1992 = vsel %vm1864, 1.1111112, 0.0
      %v1993 = vsel %vm1865, 1.1111112, 0.0
      %v1994 = vsel %vm1866, 1.1111112, 0.0
      %v1995 = vsel %vm1867, 1.1111112, 0.0
      %v1996 = vsel %vm1868, 1.1111112, 0.0
      %v1997 = vsel %vm1869, 1.1111112, 0.0
      %v1998 = vsel %vm1870, 1.1111112, 0.0
      %v1999 = vsel %vm1871, 1.1111112, 0.0
      %v2000 = vsel %vm1872, 1.1111112, 0.0
      %v2001 = vsel %vm1873, 1.1111112, 0.0
      %v2002 = vsel %vm1874, 1.1111112, 0.0
      %v2003 = vsel %vm1875, 1.1111112, 0.0
      %v2004 = vsel %vm1876, 1.1111112, 0.0
      %v2005 = vsel %vm1877, 1.1111112, 0.0
      %v2006 = vsel %vm1878, 1.1111112, 0.0
      %v2007 = vsel %vm1879, 1.1111112, 0.0
      %v2008 = vsel %vm1880, 1.1111112, 0.0
      %v2009 = vsel %vm1881, 1.1111112, 0.0
      %v2010 = vsel %vm1882, 1.1111112, 0.0
      %v2011 = vsel %vm1883, 1.1111112, 0.0
      %v2012 = vsel %vm1884, 1.1111112, 0.0
      %v2013 = vsel %vm1885, 1.1111112, 0.0
      %v2014 = vsel %vm1886, 1.1111112, 0.0
      %v2015 = vsel %vm1887, 1.1111112, 0.0
      %v2016 = vsel %vm1888, 1.1111112, 0.0
      %v2017 = vsel %vm1889, 1.1111112, 0.0
      %v2018 = vsel %vm1890, 1.1111112, 0.0
      %v2019 = vsel %vm1891, 1.1111112, 0.0
      %v2020 = vsel %vm1892, 1.1111112, 0.0
      %v2021 = vsel %vm1893, 1.1111112, 0.0
      %v2022 = vsel %vm1894, 1.1111112, 0.0
      %v2023 = vsel %vm1895, 1.1111112, 0.0
      %v2024 = vsel %vm1896, 1.1111112, 0.0
      %v2025 = vsel %vm1897, 1.1111112, 0.0
      %v2026 = vsel %vm1898, 1.1111112, 0.0
      %v2027 = vsel %vm1899, 1.1111112, 0.0
      %v2028 = vsel %vm1900, 1.1111112, 0.0
      %v2029 = vsel %vm1901, 1.1111112, 0.0
      %v2030 = vsel %vm1902, 1.1111112, 0.0
      %v2031 = vsel %vm1903, 1.1111112, 0.0
      %v2032 = vsel %vm1904, 1.1111112, 0.0
      %v2033 = vsel %vm1905, 1.1111112, 0.0
      %v2034 = vsel %vm1906, 1.1111112, 0.0
      %v2035 = vsel %vm1907, 1.1111112, 0.0
      %v2036 = vsel %vm1908, 1.1111112, 0.0
      %v2037 = vsel %vm1909, 1.1111112, 0.0
      %v2038 = vsel %vm1910, 1.1111112, 0.0
      %v2039 = vsel %vm1911, 1.1111112, 0.0
      %v2040 = vsel %vm1912, 1.1111112, 0.0
      %v2041 = vsel %vm1913, 1.1111112, 0.0
      %v2042 = vsel %vm1914, 1.1111112, 0.0
      %v2043 = vsel %vm1915, 1.1111112, 0.0
      %v2044 = vsel %vm1916, 1.1111112, 0.0
      %v2045 = vsel %vm1917, 1.1111112, 0.0
      %v2046 = vsel %vm1918, 1.1111112, 0.0
      %v2047 = vsel %vm1919, 1.1111112, 0.0
      %v2048 = vsel %vm1920, 1.1111112, 0.0
      %v2049 = vsel %vm1921, 1.1111112, 0.0
      %v2050 = vsel %vm1922, 1.1111112, 0.0
      %v2051 = vsel %vm1923, 1.1111112, 0.0
      %v2052 = vsel %vm1924, 1.1111112, 0.0
      %v2053 = vsel %vm1925, 1.1111112, 0.0
      %v2054 = vsel %vm1926, 1.1111112, 0.0
      %v2055 = vsel %vm1927, 1.1111112, 0.0
      %v2056 = vunpack.c.l.bf16 %v214
      %v2057 = vunpack.c.h.bf16 %v214
      %v2058 = vunpack.c.l.bf16 %v215
      %v2059 = vunpack.c.h.bf16 %v215
      %v2060 = vunpack.c.l.bf16 %v216
      %v2061 = vunpack.c.h.bf16 %v216
      %v2062 = vunpack.c.l.bf16 %v217
      %v2063 = vunpack.c.h.bf16 %v217
      %v2064 = vunpack.c.l.bf16 %v218
      %v2065 = vunpack.c.h.bf16 %v218
      %v2066 = vunpack.c.l.bf16 %v219
      %v2067 = vunpack.c.h.bf16 %v219
      %v2068 = vunpack.c.l.bf16 %v220
      %v2069 = vunpack.c.h.bf16 %v220
      %v2070 = vunpack.c.l.bf16 %v221
      %v2071 = vunpack.c.h.bf16 %v221
      %v2072 = vunpack.c.l.bf16 %v222
      %v2073 = vunpack.c.h.bf16 %v222
      %v2074 = vunpack.c.l.bf16 %v223
      %v2075 = vunpack.c.h.bf16 %v223
      %v2076 = vunpack.c.l.bf16 %v224
      %v2077 = vunpack.c.h.bf16 %v224
      %v2078 = vunpack.c.l.bf16 %v225
      %v2079 = vunpack.c.h.bf16 %v225
      %v2080 = vunpack.c.l.bf16 %v226
      %v2081 = vunpack.c.h.bf16 %v226
      %v2082 = vunpack.c.l.bf16 %v227
      %v2083 = vunpack.c.h.bf16 %v227
      %v2084 = vunpack.c.l.bf16 %v228
      %v2085 = vunpack.c.h.bf16 %v228
      %v2086 = vunpack.c.l.bf16 %v229
      %v2087 = vunpack.c.h.bf16 %v229
      %v2088 = vunpack.c.l.bf16 %v230
      %v2089 = vunpack.c.h.bf16 %v230
      %v2090 = vunpack.c.l.bf16 %v231
      %v2091 = vunpack.c.h.bf16 %v231
      %v2092 = vunpack.c.l.bf16 %v232
      %v2093 = vunpack.c.h.bf16 %v232
      %v2094 = vunpack.c.l.bf16 %v233
      %v2095 = vunpack.c.h.bf16 %v233
      %v2096 = vunpack.c.l.bf16 %v234
      %v2097 = vunpack.c.h.bf16 %v234
      %v2098 = vunpack.c.l.bf16 %v235
      %v2099 = vunpack.c.h.bf16 %v235
      %v2100 = vunpack.c.l.bf16 %v236
      %v2101 = vunpack.c.h.bf16 %v236
      %v2102 = vunpack.c.l.bf16 %v237
      %v2103 = vunpack.c.h.bf16 %v237
      %v2104 = vunpack.c.l.bf16 %v238
      %v2105 = vunpack.c.h.bf16 %v238
      %v2106 = vunpack.c.l.bf16 %v239
      %v2107 = vunpack.c.h.bf16 %v239
      %v2108 = vunpack.c.l.bf16 %v240
      %v2109 = vunpack.c.h.bf16 %v240
      %v2110 = vunpack.c.l.bf16 %v241
      %v2111 = vunpack.c.h.bf16 %v241
      %v2112 = vunpack.c.l.bf16 %v242
      %v2113 = vunpack.c.h.bf16 %v242
      %v2114 = vunpack.c.l.bf16 %v243
      %v2115 = vunpack.c.h.bf16 %v243
      %v2116 = vunpack.c.l.bf16 %v244
      %v2117 = vunpack.c.h.bf16 %v244
      %v2118 = vunpack.c.l.bf16 %v245
      %v2119 = vunpack.c.h.bf16 %v245
      %v2120 = vunpack.c.l.bf16 %v246
      %v2121 = vunpack.c.h.bf16 %v246
      %v2122 = vunpack.c.l.bf16 %v247
      %v2123 = vunpack.c.h.bf16 %v247
      %v2124 = vunpack.c.l.bf16 %v248
      %v2125 = vunpack.c.h.bf16 %v248
      %v2126 = vunpack.c.l.bf16 %v249
      %v2127 = vunpack.c.h.bf16 %v249
      %v2128 = vunpack.c.l.bf16 %v250
      %v2129 = vunpack.c.h.bf16 %v250
      %v2130 = vunpack.c.l.bf16 %v251
      %v2131 = vunpack.c.h.bf16 %v251
      %v2132 = vunpack.c.l.bf16 %v252
      %v2133 = vunpack.c.h.bf16 %v252
      %v2134 = vunpack.c.l.bf16 %v253
      %v2135 = vunpack.c.h.bf16 %v253
      %v2136 = vunpack.c.l.bf16 %v254
      %v2137 = vunpack.c.h.bf16 %v254
      %v2138 = vunpack.c.l.bf16 %v255
      %v2139 = vunpack.c.h.bf16 %v255
      %v2140 = vunpack.c.l.bf16 %v256
      %v2141 = vunpack.c.h.bf16 %v256
      %v2142 = vunpack.c.l.bf16 %v257
      %v2143 = vunpack.c.h.bf16 %v257
      %v2144 = vunpack.c.l.bf16 %v258
      %v2145 = vunpack.c.h.bf16 %v258
      %v2146 = vunpack.c.l.bf16 %v259
      %v2147 = vunpack.c.h.bf16 %v259
      %v2148 = vunpack.c.l.bf16 %v260
      %v2149 = vunpack.c.h.bf16 %v260
      %v2150 = vunpack.c.l.bf16 %v261
      %v2151 = vunpack.c.h.bf16 %v261
      %v2152 = vunpack.c.l.bf16 %v262
      %v2153 = vunpack.c.h.bf16 %v262
      %v2154 = vunpack.c.l.bf16 %v263
      %v2155 = vunpack.c.h.bf16 %v263
      %v2156 = vunpack.c.l.bf16 %v264
      %v2157 = vunpack.c.h.bf16 %v264
      %v2158 = vunpack.c.l.bf16 %v265
      %v2159 = vunpack.c.h.bf16 %v265
      %v2160 = vunpack.c.l.bf16 %v266
      %v2161 = vunpack.c.h.bf16 %v266
      %v2162 = vunpack.c.l.bf16 %v267
      %v2163 = vunpack.c.h.bf16 %v267
      %v2164 = vunpack.c.l.bf16 %v268
      %v2165 = vunpack.c.h.bf16 %v268
      %v2166 = vunpack.c.l.bf16 %v269
      %v2167 = vunpack.c.h.bf16 %v269
      %v2168 = vunpack.c.l.bf16 %v270
      %v2169 = vunpack.c.h.bf16 %v270
      %v2170 = vunpack.c.l.bf16 %v271
      %v2171 = vunpack.c.h.bf16 %v271
      %v2172 = vunpack.c.l.bf16 %v272
      %v2173 = vunpack.c.h.bf16 %v272
      %v2174 = vunpack.c.l.bf16 %v273
      %v2175 = vunpack.c.h.bf16 %v273
      %v2176 = vunpack.c.l.bf16 %v274
      %v2177 = vunpack.c.h.bf16 %v274
      %v2178 = vunpack.c.l.bf16 %v275
      %v2179 = vunpack.c.h.bf16 %v275
      %v2180 = vunpack.c.l.bf16 %v276
      %v2181 = vunpack.c.h.bf16 %v276
      %v2182 = vunpack.c.l.bf16 %v277
      %v2183 = vunpack.c.h.bf16 %v277
      %v2184 = vmul.f32 %v2056, %v1928
      %v2185 = vmul.f32 %v2057, %v1929
      %v2186 = vmul.f32 %v2058, %v1930
      %v2187 = vmul.f32 %v2059, %v1931
      %v2188 = vmul.f32 %v2060, %v1932
      %v2189 = vmul.f32 %v2061, %v1933
      %v2190 = vmul.f32 %v2062, %v1934
      %v2191 = vmul.f32 %v2063, %v1935
      %v2192 = vmul.f32 %v2064, %v1936
      %v2193 = vmul.f32 %v2065, %v1937
      %v2194 = vmul.f32 %v2066, %v1938
      %v2195 = vmul.f32 %v2067, %v1939
      %v2196 = vmul.f32 %v2068, %v1940
      %v2197 = vmul.f32 %v2069, %v1941
      %v2198 = vmul.f32 %v2070, %v1942
      %v2199 = vmul.f32 %v2071, %v1943
      %v2200 = vmul.f32 %v2072, %v1944
      %v2201 = vmul.f32 %v2073, %v1945
      %v2202 = vmul.f32 %v2074, %v1946
      %v2203 = vmul.f32 %v2075, %v1947
      %v2204 = vmul.f32 %v2076, %v1948
      %v2205 = vmul.f32 %v2077, %v1949
      %v2206 = vmul.f32 %v2078, %v1950
      %v2207 = vmul.f32 %v2079, %v1951
      %v2208 = vmul.f32 %v2080, %v1952
      %v2209 = vmul.f32 %v2081, %v1953
      %v2210 = vmul.f32 %v2082, %v1954
      %v2211 = vmul.f32 %v2083, %v1955
      %v2212 = vmul.f32 %v2084, %v1956
      %v2213 = vmul.f32 %v2085, %v1957
      %v2214 = vmul.f32 %v2086, %v1958
      %v2215 = vmul.f32 %v2087, %v1959
      %v2216 = vmul.f32 %v2088, %v1960
      %v2217 = vmul.f32 %v2089, %v1961
      %v2218 = vmul.f32 %v2090, %v1962
      %v2219 = vmul.f32 %v2091, %v1963
      %v2220 = vmul.f32 %v2092, %v1964
      %v2221 = vmul.f32 %v2093, %v1965
      %v2222 = vmul.f32 %v2094, %v1966
      %v2223 = vmul.f32 %v2095, %v1967
      %v2224 = vmul.f32 %v2096, %v1968
      %v2225 = vmul.f32 %v2097, %v1969
      %v2226 = vmul.f32 %v2098, %v1970
      %v2227 = vmul.f32 %v2099, %v1971
      %v2228 = vmul.f32 %v2100, %v1972
      %v2229 = vmul.f32 %v2101, %v1973
      %v2230 = vmul.f32 %v2102, %v1974
      %v2231 = vmul.f32 %v2103, %v1975
      %v2232 = vmul.f32 %v2104, %v1976
      %v2233 = vmul.f32 %v2105, %v1977
      %v2234 = vmul.f32 %v2106, %v1978
      %v2235 = vmul.f32 %v2107, %v1979
      %v2236 = vmul.f32 %v2108, %v1980
      %v2237 = vmul.f32 %v2109, %v1981
      %v2238 = vmul.f32 %v2110, %v1982
      %v2239 = vmul.f32 %v2111, %v1983
      %v2240 = vmul.f32 %v2112, %v1984
      %v2241 = vmul.f32 %v2113, %v1985
      %v2242 = vmul.f32 %v2114, %v1986
      %v2243 = vmul.f32 %v2115, %v1987
      %v2244 = vmul.f32 %v2116, %v1988
      %v2245 = vmul.f32 %v2117, %v1989
      %v2246 = vmul.f32 %v2118, %v1990
      %v2247 = vmul.f32 %v2119, %v1991
      %v2248 = vmul.f32 %v2120, %v1992
      %v2249 = vmul.f32 %v2121, %v1993
      %v2250 = vmul.f32 %v2122, %v1994
      %v2251 = vmul.f32 %v2123, %v1995
      %v2252 = vmul.f32 %v2124, %v1996
      %v2253 = vmul.f32 %v2125, %v1997
      %v2254 = vmul.f32 %v2126, %v1998
      %v2255 = vmul.f32 %v2127, %v1999
      %v2256 = vmul.f32 %v2128, %v2000
      %v2257 = vmul.f32 %v2129, %v2001
      %v2258 = vmul.f32 %v2130, %v2002
      %v2259 = vmul.f32 %v2131, %v2003
      %v2260 = vmul.f32 %v2132, %v2004
      %v2261 = vmul.f32 %v2133, %v2005
      %v2262 = vmul.f32 %v2134, %v2006
      %v2263 = vmul.f32 %v2135, %v2007
      %v2264 = vmul.f32 %v2136, %v2008
      %v2265 = vmul.f32 %v2137, %v2009
      %v2266 = vmul.f32 %v2138, %v2010
      %v2267 = vmul.f32 %v2139, %v2011
      %v2268 = vmul.f32 %v2140, %v2012
      %v2269 = vmul.f32 %v2141, %v2013
      %v2270 = vmul.f32 %v2142, %v2014
      %v2271 = vmul.f32 %v2143, %v2015
      %v2272 = vmul.f32 %v2144, %v2016
      %v2273 = vmul.f32 %v2145, %v2017
      %v2274 = vmul.f32 %v2146, %v2018
      %v2275 = vmul.f32 %v2147, %v2019
      %v2276 = vmul.f32 %v2148, %v2020
      %v2277 = vmul.f32 %v2149, %v2021
      %v2278 = vmul.f32 %v2150, %v2022
      %v2279 = vmul.f32 %v2151, %v2023
      %v2280 = vmul.f32 %v2152, %v2024
      %v2281 = vmul.f32 %v2153, %v2025
      %v2282 = vmul.f32 %v2154, %v2026
      %v2283 = vmul.f32 %v2155, %v2027
      %v2284 = vmul.f32 %v2156, %v2028
      %v2285 = vmul.f32 %v2157, %v2029
      %v2286 = vmul.f32 %v2158, %v2030
      %v2287 = vmul.f32 %v2159, %v2031
      %v2288 = vmul.f32 %v2160, %v2032
      %v2289 = vmul.f32 %v2161, %v2033
      %v2290 = vmul.f32 %v2162, %v2034
      %v2291 = vmul.f32 %v2163, %v2035
      %v2292 = vmul.f32 %v2164, %v2036
      %v2293 = vmul.f32 %v2165, %v2037
      %v2294 = vmul.f32 %v2166, %v2038
      %v2295 = vmul.f32 %v2167, %v2039
      %v2296 = vmul.f32 %v2168, %v2040
      %v2297 = vmul.f32 %v2169, %v2041
      %v2298 = vmul.f32 %v2170, %v2042
      %v2299 = vmul.f32 %v2171, %v2043
      %v2300 = vmul.f32 %v2172, %v2044
      %v2301 = vmul.f32 %v2173, %v2045
      %v2302 = vmul.f32 %v2174, %v2046
      %v2303 = vmul.f32 %v2175, %v2047
      %v2304 = vmul.f32 %v2176, %v2048
      %v2305 = vmul.f32 %v2177, %v2049
      %v2306 = vmul.f32 %v2178, %v2050
      %v2307 = vmul.f32 %v2179, %v2051
      %v2308 = vmul.f32 %v2180, %v2052
      %v2309 = vmul.f32 %v2181, %v2053
      %v2310 = vmul.f32 %v2182, %v2054
      %v2311 = vmul.f32 %v2183, %v2055
      %v2312 = vpack.c.bf16 %v2188, %v2184
      %v2313 = vpack.c.bf16 %v2189, %v2185
      %v2314 = vpack.c.bf16 %v2190, %v2186
      %v2315 = vpack.c.bf16 %v2191, %v2187
      %v2316 = vpack.c.bf16 %v2196, %v2192
      %v2317 = vpack.c.bf16 %v2197, %v2193
      %v2318 = vpack.c.bf16 %v2198, %v2194
      %v2319 = vpack.c.bf16 %v2199, %v2195
      %v2320 = vpack.c.bf16 %v2204, %v2200
      %v2321 = vpack.c.bf16 %v2205, %v2201
      %v2322 = vpack.c.bf16 %v2206, %v2202
      %v2323 = vpack.c.bf16 %v2207, %v2203
      %v2324 = vpack.c.bf16 %v2212, %v2208
      %v2325 = vpack.c.bf16 %v2213, %v2209
      %v2326 = vpack.c.bf16 %v2214, %v2210
      %v2327 = vpack.c.bf16 %v2215, %v2211
      %v2328 = vpack.c.bf16 %v2220, %v2216
      %v2329 = vpack.c.bf16 %v2221, %v2217
      %v2330 = vpack.c.bf16 %v2222, %v2218
      %v2331 = vpack.c.bf16 %v2223, %v2219
      %v2332 = vpack.c.bf16 %v2228, %v2224
      %v2333 = vpack.c.bf16 %v2229, %v2225
      %v2334 = vpack.c.bf16 %v2230, %v2226
      %v2335 = vpack.c.bf16 %v2231, %v2227
      %v2336 = vpack.c.bf16 %v2236, %v2232
      %v2337 = vpack.c.bf16 %v2237, %v2233
      %v2338 = vpack.c.bf16 %v2238, %v2234
      %v2339 = vpack.c.bf16 %v2239, %v2235
      %v2340 = vpack.c.bf16 %v2244, %v2240
      %v2341 = vpack.c.bf16 %v2245, %v2241
      %v2342 = vpack.c.bf16 %v2246, %v2242
      %v2343 = vpack.c.bf16 %v2247, %v2243
      %v2344 = vpack.c.bf16 %v2252, %v2248
      %v2345 = vpack.c.bf16 %v2253, %v2249
      %v2346 = vpack.c.bf16 %v2254, %v2250
      %v2347 = vpack.c.bf16 %v2255, %v2251
      %v2348 = vpack.c.bf16 %v2260, %v2256
      %v2349 = vpack.c.bf16 %v2261, %v2257
      %v2350 = vpack.c.bf16 %v2262, %v2258
      %v2351 = vpack.c.bf16 %v2263, %v2259
      %v2352 = vpack.c.bf16 %v2268, %v2264
      %v2353 = vpack.c.bf16 %v2269, %v2265
      %v2354 = vpack.c.bf16 %v2270, %v2266
      %v2355 = vpack.c.bf16 %v2271, %v2267
      %v2356 = vpack.c.bf16 %v2276, %v2272
      %v2357 = vpack.c.bf16 %v2277, %v2273
      %v2358 = vpack.c.bf16 %v2278, %v2274
      %v2359 = vpack.c.bf16 %v2279, %v2275
      %v2360 = vpack.c.bf16 %v2284, %v2280
      %v2361 = vpack.c.bf16 %v2285, %v2281
      %v2362 = vpack.c.bf16 %v2286, %v2282
      %v2363 = vpack.c.bf16 %v2287, %v2283
      %v2364 = vpack.c.bf16 %v2292, %v2288
      %v2365 = vpack.c.bf16 %v2293, %v2289
      %v2366 = vpack.c.bf16 %v2294, %v2290
      %v2367 = vpack.c.bf16 %v2295, %v2291
      %v2368 = vpack.c.bf16 %v2300, %v2296
      %v2369 = vpack.c.bf16 %v2301, %v2297
      %v2370 = vpack.c.bf16 %v2302, %v2298
      %v2371 = vpack.c.bf16 %v2303, %v2299
      %v2372 = vpack.c.bf16 %v2308, %v2304
      %v2373 = vpack.c.bf16 %v2309, %v2305
      %v2374 = vpack.c.bf16 %v2310, %v2306
      %v2375 = vpack.c.bf16 %v2311, %v2307
      %s2376 = sshra.s32 %s279, 3
      %s2377 = sand.u32 %s279, 7
      %s2378 = smul.addr %s2376, 4
      %s2379 = scalar_lea.vmem %s1, %s2378
      %v2380 = vld [vmem:[%s2379] sm:$0xf]
      %v2381 = vld [vmem:[%s2379 + $0x4] sm:$0xf]
      %v2382 = vld [vmem:[%s2379 + $0x8] sm:$0xf]
      %v2383 = vld [vmem:[%s2379 + $0xc] sm:$0xf]
      %v2384 = vld [vmem:[%s2379 + $0x10] sm:$0xf]
      %v2385 = vld [vmem:[%s2379 + $0x14] sm:$0xf]
      %v2386 = vld [vmem:[%s2379 + $0x18] sm:$0xf]
      %v2387 = vld [vmem:[%s2379 + $0x1c] sm:$0xf]
      %v2388 = vld [vmem:[%s2379 + $0x20] sm:$0xf]
      %v2389 = vld [vmem:[%s2379 + $0x24] sm:$0xf]
      %v2390 = vld [vmem:[%s2379 + $0x28] sm:$0xf]
      %v2391 = vld [vmem:[%s2379 + $0x2c] sm:$0xf]
      %v2392 = vld [vmem:[%s2379 + $0x30] sm:$0xf]
      %v2393 = vld [vmem:[%s2379 + $0x34] sm:$0xf]
      %v2394 = vld [vmem:[%s2379 + $0x38] sm:$0xf]
      %v2395 = vld [vmem:[%s2379 + $0x3c] sm:$0xf]
      %v2396 = vld [vmem:[%s2379 + $0x40] sm:$0xf]
      %v2397 = vld [vmem:[%s2379 + $0x44] sm:$0xf]
      %v2398 = vld [vmem:[%s2379 + $0x48] sm:$0xf]
      %v2399 = vld [vmem:[%s2379 + $0x4c] sm:$0xf]
      %v2400 = vld [vmem:[%s2379 + $0x50] sm:$0xf]
      %v2401 = vld [vmem:[%s2379 + $0x54] sm:$0xf]
      %v2402 = vld [vmem:[%s2379 + $0x58] sm:$0xf]
      %v2403 = vld [vmem:[%s2379 + $0x5c] sm:$0xf]
      %v2404 = vld [vmem:[%s2379 + $0x60] sm:$0xf]
      %v2405 = vld [vmem:[%s2379 + $0x64] sm:$0xf]
      %v2406 = vld [vmem:[%s2379 + $0x68] sm:$0xf]
      %v2407 = vld [vmem:[%s2379 + $0x6c] sm:$0xf]
      %v2408 = vld [vmem:[%s2379 + $0x70] sm:$0xf]
      %v2409 = vld [vmem:[%s2379 + $0x74] sm:$0xf]
      %v2410 = vld [vmem:[%s2379 + $0x78] sm:$0xf]
      %v2411 = vld [vmem:[%s2379 + $0x7c] sm:$0xf]
      %v2412 = vld [vmem:[%s2379 + $0x80] sm:$0xf]
      %v2413 = vld [vmem:[%s2379 + $0x84] sm:$0xf]
      %v2414 = vld [vmem:[%s2379 + $0x88] sm:$0xf]
      %v2415 = vld [vmem:[%s2379 + $0x8c] sm:$0xf]
      %v2416 = vld [vmem:[%s2379 + $0x90] sm:$0xf]
      %v2417 = vld [vmem:[%s2379 + $0x94] sm:$0xf]
      %v2418 = vld [vmem:[%s2379 + $0x98] sm:$0xf]
      %v2419 = vld [vmem:[%s2379 + $0x9c] sm:$0xf]
      %v2420 = vld [vmem:[%s2379 + $0xa0] sm:$0xf]
      %v2421 = vld [vmem:[%s2379 + $0xa4] sm:$0xf]
      %v2422 = vld [vmem:[%s2379 + $0xa8] sm:$0xf]
      %v2423 = vld [vmem:[%s2379 + $0xac] sm:$0xf]
      %v2424 = vld [vmem:[%s2379 + $0xb0] sm:$0xf]
      %v2425 = vld [vmem:[%s2379 + $0xb4] sm:$0xf]
      %v2426 = vld [vmem:[%s2379 + $0xb8] sm:$0xf]
      %v2427 = vld [vmem:[%s2379 + $0xbc] sm:$0xf]
      %v2428 = vld [vmem:[%s2379 + $0xc0] sm:$0xf]
      %v2429 = vld [vmem:[%s2379 + $0xc4] sm:$0xf]
      %v2430 = vld [vmem:[%s2379 + $0xc8] sm:$0xf]
      %v2431 = vld [vmem:[%s2379 + $0xcc] sm:$0xf]
      %v2432 = vld [vmem:[%s2379 + $0xd0] sm:$0xf]
      %v2433 = vld [vmem:[%s2379 + $0xd4] sm:$0xf]
      %v2434 = vld [vmem:[%s2379 + $0xd8] sm:$0xf]
      %v2435 = vld [vmem:[%s2379 + $0xdc] sm:$0xf]
      %v2436 = vld [vmem:[%s2379 + $0xe0] sm:$0xf]
      %v2437 = vld [vmem:[%s2379 + $0xe4] sm:$0xf]
      %v2438 = vld [vmem:[%s2379 + $0xe8] sm:$0xf]
      %v2439 = vld [vmem:[%s2379 + $0xec] sm:$0xf]
      %v2440 = vld [vmem:[%s2379 + $0xf0] sm:$0xf]
      %v2441 = vld [vmem:[%s2379 + $0xf4] sm:$0xf]
      %v2442 = vld [vmem:[%s2379 + $0xf8] sm:$0xf]
      %v2443 = vld [vmem:[%s2379 + $0xfc] sm:$0xf]
      %v2444 = vld [vmem:[#allocation2] sm:$0xff]
      %v2445 = vld [vmem:[#allocation2 + $0x8] sm:$0xff]
      %v2446 = vld [vmem:[#allocation2 + $0x10] sm:$0xff]
      %v2447 = vld [vmem:[#allocation2 + $0x18] sm:$0xff]
      %v2448 = vld [vmem:[#allocation2 + $0x20] sm:$0xff]
      %v2449 = vld [vmem:[#allocation2 + $0x28] sm:$0xff]
      %v2450 = vld [vmem:[#allocation2 + $0x30] sm:$0xff]
      %v2451 = vld [vmem:[#allocation2 + $0x38] sm:$0xff]
      %v2452 = vld [vmem:[#allocation2 + $0x40] sm:$0xff]
      %v2453 = vld [vmem:[#allocation2 + $0x48] sm:$0xff]
      %v2454 = vld [vmem:[#allocation2 + $0x50] sm:$0xff]
      %v2455 = vld [vmem:[#allocation2 + $0x58] sm:$0xff]
      %v2456 = vld [vmem:[#allocation2 + $0x60] sm:$0xff]
      %v2457 = vld [vmem:[#allocation2 + $0x68] sm:$0xff]
      %v2458 = vld [vmem:[#allocation2 + $0x70] sm:$0xff]
      %v2459 = vld [vmem:[#allocation2 + $0x78] sm:$0xff]
      %v2460 = vld [vmem:[#allocation2 + $0x80] sm:$0xff]
      %v2461 = vld [vmem:[#allocation2 + $0x88] sm:$0xff]
      %v2462 = vld [vmem:[#allocation2 + $0x90] sm:$0xff]
      %v2463 = vld [vmem:[#allocation2 + $0x98] sm:$0xff]
      %v2464 = vld [vmem:[#allocation2 + $0xa0] sm:$0xff]
      %v2465 = vld [vmem:[#allocation2 + $0xa8] sm:$0xff]
      %v2466 = vld [vmem:[#allocation2 + $0xb0] sm:$0xff]
      %v2467 = vld [vmem:[#allocation2 + $0xb8] sm:$0xff]
      %v2468 = vld [vmem:[#allocation2 + $0xc0] sm:$0xff]
      %v2469 = vld [vmem:[#allocation2 + $0xc8] sm:$0xff]
      %v2470 = vld [vmem:[#allocation2 + $0xd0] sm:$0xff]
      %v2471 = vld [vmem:[#allocation2 + $0xd8] sm:$0xff]
      %v2472 = vld [vmem:[#allocation2 + $0xe0] sm:$0xff]
      %v2473 = vld [vmem:[#allocation2 + $0xe8] sm:$0xff]
      %v2474 = vld [vmem:[#allocation2 + $0xf0] sm:$0xff]
      %v2475 = vld [vmem:[#allocation2 + $0xf8] sm:$0xff]
      %v2540 = vunpack.c.l.b16 %v2380
      %v2541 = vunpack.c.l.b16 %v2381
      %v2542 = vunpack.c.l.b16 %v2382
      %v2543 = vunpack.c.l.b16 %v2383
      %v2544 = vunpack.c.l.b16 %v2384
      %v2545 = vunpack.c.l.b16 %v2385
      %v2546 = vunpack.c.l.b16 %v2386
      %v2547 = vunpack.c.l.b16 %v2387
      %v2548 = vunpack.c.l.b16 %v2388
      %v2549 = vunpack.c.l.b16 %v2389
      %v2550 = vunpack.c.l.b16 %v2390
      %v2551 = vunpack.c.l.b16 %v2391
      %v2552 = vunpack.c.l.b16 %v2392
      %v2553 = vunpack.c.l.b16 %v2393
      %v2554 = vunpack.c.l.b16 %v2394
      %v2555 = vunpack.c.l.b16 %v2395
      %v2556 = vunpack.c.l.b16 %v2396
      %v2557 = vunpack.c.l.b16 %v2397
      %v2558 = vunpack.c.l.b16 %v2398
      %v2559 = vunpack.c.l.b16 %v2399
      %v2560 = vunpack.c.l.b16 %v2400
      %v2561 = vunpack.c.l.b16 %v2401
      %v2562 = vunpack.c.l.b16 %v2402
      %v2563 = vunpack.c.l.b16 %v2403
      %v2564 = vunpack.c.l.b16 %v2404
      %v2565 = vunpack.c.l.b16 %v2405
      %v2566 = vunpack.c.l.b16 %v2406
      %v2567 = vunpack.c.l.b16 %v2407
      %v2568 = vunpack.c.l.b16 %v2408
      %v2569 = vunpack.c.l.b16 %v2409
      %v2570 = vunpack.c.l.b16 %v2410
      %v2571 = vunpack.c.l.b16 %v2411
      %v2572 = vunpack.c.l.b16 %v2412
      %v2573 = vunpack.c.l.b16 %v2413
      %v2574 = vunpack.c.l.b16 %v2414
      %v2575 = vunpack.c.l.b16 %v2415
      %v2576 = vunpack.c.l.b16 %v2416
      %v2577 = vunpack.c.l.b16 %v2417
      %v2578 = vunpack.c.l.b16 %v2418
      %v2579 = vunpack.c.l.b16 %v2419
      %v2580 = vunpack.c.l.b16 %v2420
      %v2581 = vunpack.c.l.b16 %v2421
      %v2582 = vunpack.c.l.b16 %v2422
      %v2583 = vunpack.c.l.b16 %v2423
      %v2584 = vunpack.c.l.b16 %v2424
      %v2585 = vunpack.c.l.b16 %v2425
      %v2586 = vunpack.c.l.b16 %v2426
      %v2587 = vunpack.c.l.b16 %v2427
      %v2588 = vunpack.c.l.b16 %v2428
      %v2589 = vunpack.c.l.b16 %v2429
      %v2590 = vunpack.c.l.b16 %v2430
      %v2591 = vunpack.c.l.b16 %v2431
      %v2592 = vunpack.c.l.b16 %v2432
      %v2593 = vunpack.c.l.b16 %v2433
      %v2594 = vunpack.c.l.b16 %v2434
      %v2595 = vunpack.c.l.b16 %v2435
      %v2596 = vunpack.c.l.b16 %v2436
      %v2597 = vunpack.c.l.b16 %v2437
      %v2598 = vunpack.c.l.b16 %v2438
      %v2599 = vunpack.c.l.b16 %v2439
      %v2600 = vunpack.c.l.b16 %v2440
      %v2601 = vunpack.c.l.b16 %v2441
      %v2602 = vunpack.c.l.b16 %v2442
      %v2603 = vunpack.c.l.b16 %v2443
      %v2604 = vpack.c.b16 %v2541, %v2540
      %v2605 = vpack.c.b16 %v2543, %v2542
      %v2606 = vpack.c.b16 %v2545, %v2544
      %v2607 = vpack.c.b16 %v2547, %v2546
      %v2608 = vpack.c.b16 %v2549, %v2548
      %v2609 = vpack.c.b16 %v2551, %v2550
      %v2610 = vpack.c.b16 %v2553, %v2552
      %v2611 = vpack.c.b16 %v2555, %v2554
      %v2612 = vpack.c.b16 %v2557, %v2556
      %v2613 = vpack.c.b16 %v2559, %v2558
      %v2614 = vpack.c.b16 %v2561, %v2560
      %v2615 = vpack.c.b16 %v2563, %v2562
      %v2616 = vpack.c.b16 %v2565, %v2564
      %v2617 = vpack.c.b16 %v2567, %v2566
      %v2618 = vpack.c.b16 %v2569, %v2568
      %v2619 = vpack.c.b16 %v2571, %v2570
      %v2620 = vpack.c.b16 %v2573, %v2572
      %v2621 = vpack.c.b16 %v2575, %v2574
      %v2622 = vpack.c.b16 %v2577, %v2576
      %v2623 = vpack.c.b16 %v2579, %v2578
      %v2624 = vpack.c.b16 %v2581, %v2580
      %v2625 = vpack.c.b16 %v2583, %v2582
      %v2626 = vpack.c.b16 %v2585, %v2584
      %v2627 = vpack.c.b16 %v2587, %v2586
      %v2628 = vpack.c.b16 %v2589, %v2588
      %v2629 = vpack.c.b16 %v2591, %v2590
      %v2630 = vpack.c.b16 %v2593, %v2592
      %v2631 = vpack.c.b16 %v2595, %v2594
      %v2632 = vpack.c.b16 %v2597, %v2596
      %v2633 = vpack.c.b16 %v2599, %v2598
      %v2634 = vpack.c.b16 %v2601, %v2600
      %v2635 = vpack.c.b16 %v2603, %v2602
      %2668 = vmatpush.bf16.msra.mxu0 %v2611
      %2669 = vmatpush.bf16.msra.mxu0 %v2610
      %2670 = vmatpush.bf16.msra.mxu0 %v2609
      %2671 = vmatpush.bf16.msra.mxu0 %v2608
      %2672 = vmatpush.bf16.msra.mxu0 %v2607
      %2673 = vmatpush.bf16.msra.mxu0 %v2606
      %2674 = vmatpush.bf16.msra.mxu0 %v2605
      %2675 = vmatpush.bf16.msra.mxu0 %v2604
      %2676 = vmatmul.bf16.gmra.mxu0 %v2312
      %v2677 = vpop.f32.mrf.mxu0
      %v2678 = vadd.f32 0.0, %v2677
      %v2679 = vpop.f32.mrf.mxu0
      %v2680 = vadd.f32 0.0, %v2679
      %2681 = vmatmul.bf16.gmra.mxu0 %v2316
      %v2682 = vpop.f32.mrf.mxu0
      %v2683 = vadd.f32 0.0, %v2682
      %v2684 = vpop.f32.mrf.mxu0
      %v2685 = vadd.f32 0.0, %v2684
      %2686 = vmatmul.bf16.gmra.mxu0 %v2320
      %v2687 = vpop.f32.mrf.mxu0
      %v2688 = vadd.f32 0.0, %v2687
      %v2689 = vpop.f32.mrf.mxu0
      %v2690 = vadd.f32 0.0, %v2689
      %2691 = vmatmul.bf16.gmra.mxu0 %v2324
      %v2692 = vpop.f32.mrf.mxu0
      %v2693 = vadd.f32 0.0, %v2692
      %v2694 = vpop.f32.mrf.mxu0
      %v2695 = vadd.f32 0.0, %v2694
      %2696 = vmatmul.bf16.gmra.mxu0 %v2328
      %v2697 = vpop.f32.mrf.mxu0
      %v2698 = vadd.f32 0.0, %v2697
      %v2699 = vpop.f32.mrf.mxu0
      %v2700 = vadd.f32 0.0, %v2699
      %2701 = vmatmul.bf16.gmra.mxu0 %v2332
      %v2702 = vpop.f32.mrf.mxu0
      %v2703 = vadd.f32 0.0, %v2702
      %v2704 = vpop.f32.mrf.mxu0
      %v2705 = vadd.f32 0.0, %v2704
      %2706 = vmatmul.bf16.gmra.mxu0 %v2336
      %v2707 = vpop.f32.mrf.mxu0
      %v2708 = vadd.f32 0.0, %v2707
      %v2709 = vpop.f32.mrf.mxu0
      %v2710 = vadd.f32 0.0, %v2709
      %2711 = vmatmul.bf16.gmra.mxu0 %v2340
      %v2712 = vpop.f32.mrf.mxu0
      %v2713 = vadd.f32 0.0, %v2712
      %v2714 = vpop.f32.mrf.mxu0
      %v2715 = vadd.f32 0.0, %v2714
      %2716 = vmatmul.bf16.gmra.mxu0 %v2344
      %v2717 = vpop.f32.mrf.mxu0
      %v2718 = vadd.f32 0.0, %v2717
      %v2719 = vpop.f32.mrf.mxu0
      %v2720 = vadd.f32 0.0, %v2719
      %2721 = vmatmul.bf16.gmra.mxu0 %v2348
      %v2722 = vpop.f32.mrf.mxu0
      %v2723 = vadd.f32 0.0, %v2722
      %v2724 = vpop.f32.mrf.mxu0
      %v2725 = vadd.f32 0.0, %v2724
      %2726 = vmatmul.bf16.gmra.mxu0 %v2352
      %v2727 = vpop.f32.mrf.mxu0
      %v2728 = vadd.f32 0.0, %v2727
      %v2729 = vpop.f32.mrf.mxu0
      %v2730 = vadd.f32 0.0, %v2729
      %2731 = vmatmul.bf16.gmra.mxu0 %v2356
      %v2732 = vpop.f32.mrf.mxu0
      %v2733 = vadd.f32 0.0, %v2732
      %v2734 = vpop.f32.mrf.mxu0
      %v2735 = vadd.f32 0.0, %v2734
      %2736 = vmatmul.bf16.gmra.mxu0 %v2360
      %v2737 = vpop.f32.mrf.mxu0
      %v2738 = vadd.f32 0.0, %v2737
      %v2739 = vpop.f32.mrf.mxu0
      %v2740 = vadd.f32 0.0, %v2739
      %2741 = vmatmul.bf16.gmra.mxu0 %v2364
      %v2742 = vpop.f32.mrf.mxu0
      %v2743 = vadd.f32 0.0, %v2742
      %v2744 = vpop.f32.mrf.mxu0
      %v2745 = vadd.f32 0.0, %v2744
      %2746 = vmatmul.bf16.gmra.mxu0 %v2368
      %v2747 = vpop.f32.mrf.mxu0
      %v2748 = vadd.f32 0.0, %v2747
      %v2749 = vpop.f32.mrf.mxu0
      %v2750 = vadd.f32 0.0, %v2749
      %2751 = vmatmul.bf16.gmra.mxu0 %v2372
      %v2752 = vpop.f32.mrf.mxu0
      %v2753 = vadd.f32 0.0, %v2752
      %v2754 = vpop.f32.mrf.mxu0
      %v2755 = vadd.f32 0.0, %v2754
      %2756 = vdwg.mxu0
      %2757 = vmatpush.bf16.msra.mxu0 %v2619
      %2758 = vmatpush.bf16.msra.mxu0 %v2618
      %2759 = vmatpush.bf16.msra.mxu0 %v2617
      %2760 = vmatpush.bf16.msra.mxu0 %v2616
      %2761 = vmatpush.bf16.msra.mxu0 %v2615
      %2762 = vmatpush.bf16.msra.mxu0 %v2614
      %2763 = vmatpush.bf16.msra.mxu0 %v2613
      %2764 = vmatpush.bf16.msra.mxu0 %v2612
      %2765 = vmatmul.bf16.gmra.mxu0 %v2313
      %v2766 = vpop.f32.mrf.mxu0
      %v2767 = vadd.f32 %v2678, %v2766
      %v2768 = vpop.f32.mrf.mxu0
      %v2769 = vadd.f32 %v2680, %v2768
      %2770 = vmatmul.bf16.gmra.mxu0 %v2317
      %v2771 = vpop.f32.mrf.mxu0
      %v2772 = vadd.f32 %v2683, %v2771
      %v2773 = vpop.f32.mrf.mxu0
      %v2774 = vadd.f32 %v2685, %v2773
      %2775 = vmatmul.bf16.gmra.mxu0 %v2321
      %v2776 = vpop.f32.mrf.mxu0
      %v2777 = vadd.f32 %v2688, %v2776
      %v2778 = vpop.f32.mrf.mxu0
      %v2779 = vadd.f32 %v2690, %v2778
      %2780 = vmatmul.bf16.gmra.mxu0 %v2325
      %v2781 = vpop.f32.mrf.mxu0
      %v2782 = vadd.f32 %v2693, %v2781
      %v2783 = vpop.f32.mrf.mxu0
      %v2784 = vadd.f32 %v2695, %v2783
      %2785 = vmatmul.bf16.gmra.mxu0 %v2329
      %v2786 = vpop.f32.mrf.mxu0
      %v2787 = vadd.f32 %v2698, %v2786
      %v2788 = vpop.f32.mrf.mxu0
      %v2789 = vadd.f32 %v2700, %v2788
      %2790 = vmatmul.bf16.gmra.mxu0 %v2333
      %v2791 = vpop.f32.mrf.mxu0
      %v2792 = vadd.f32 %v2703, %v2791
      %v2793 = vpop.f32.mrf.mxu0
      %v2794 = vadd.f32 %v2705, %v2793
      %2795 = vmatmul.bf16.gmra.mxu0 %v2337
      %v2796 = vpop.f32.mrf.mxu0
      %v2797 = vadd.f32 %v2708, %v2796
      %v2798 = vpop.f32.mrf.mxu0
      %v2799 = vadd.f32 %v2710, %v2798
      %2800 = vmatmul.bf16.gmra.mxu0 %v2341
      %v2801 = vpop.f32.mrf.mxu0
      %v2802 = vadd.f32 %v2713, %v2801
      %v2803 = vpop.f32.mrf.mxu0
      %v2804 = vadd.f32 %v2715, %v2803
      %2805 = vmatmul.bf16.gmra.mxu0 %v2345
      %v2806 = vpop.f32.mrf.mxu0
      %v2807 = vadd.f32 %v2718, %v2806
      %v2808 = vpop.f32.mrf.mxu0
      %v2809 = vadd.f32 %v2720, %v2808
      %2810 = vmatmul.bf16.gmra.mxu0 %v2349
      %v2811 = vpop.f32.mrf.mxu0
      %v2812 = vadd.f32 %v2723, %v2811
      %v2813 = vpop.f32.mrf.mxu0
      %v2814 = vadd.f32 %v2725, %v2813
      %2815 = vmatmul.bf16.gmra.mxu0 %v2353
      %v2816 = vpop.f32.mrf.mxu0
      %v2817 = vadd.f32 %v2728, %v2816
      %v2818 = vpop.f32.mrf.mxu0
      %v2819 = vadd.f32 %v2730, %v2818
      %2820 = vmatmul.bf16.gmra.mxu0 %v2357
      %v2821 = vpop.f32.mrf.mxu0
      %v2822 = vadd.f32 %v2733, %v2821
      %v2823 = vpop.f32.mrf.mxu0
      %v2824 = vadd.f32 %v2735, %v2823
      %2825 = vmatmul.bf16.gmra.mxu0 %v2361
      %v2826 = vpop.f32.mrf.mxu0
      %v2827 = vadd.f32 %v2738, %v2826
      %v2828 = vpop.f32.mrf.mxu0
      %v2829 = vadd.f32 %v2740, %v2828
      %2830 = vmatmul.bf16.gmra.mxu0 %v2365
      %v2831 = vpop.f32.mrf.mxu0
      %v2832 = vadd.f32 %v2743, %v2831
      %v2833 = vpop.f32.mrf.mxu0
      %v2834 = vadd.f32 %v2745, %v2833
      %2835 = vmatmul.bf16.gmra.mxu0 %v2369
      %v2836 = vpop.f32.mrf.mxu0
      %v2837 = vadd.f32 %v2748, %v2836
      %v2838 = vpop.f32.mrf.mxu0
      %v2839 = vadd.f32 %v2750, %v2838
      %2840 = vmatmul.bf16.gmra.mxu0 %v2373
      %v2841 = vpop.f32.mrf.mxu0
      %v2842 = vadd.f32 %v2753, %v2841
      %v2843 = vpop.f32.mrf.mxu0
      %v2844 = vadd.f32 %v2755, %v2843
      %2845 = vdwg.mxu0
      %2846 = vmatpush.bf16.msra.mxu0 %v2627
      %2847 = vmatpush.bf16.msra.mxu0 %v2626
      %2848 = vmatpush.bf16.msra.mxu0 %v2625
      %2849 = vmatpush.bf16.msra.mxu0 %v2624
      %2850 = vmatpush.bf16.msra.mxu0 %v2623
      %2851 = vmatpush.bf16.msra.mxu0 %v2622
      %2852 = vmatpush.bf16.msra.mxu0 %v2621
      %2853 = vmatpush.bf16.msra.mxu0 %v2620
      %2854 = vmatmul.bf16.gmra.mxu0 %v2314
      %v2855 = vpop.f32.mrf.mxu0
      %v2856 = vadd.f32 %v2767, %v2855
      %v2857 = vpop.f32.mrf.mxu0
      %v2858 = vadd.f32 %v2769, %v2857
      %2859 = vmatmul.bf16.gmra.mxu0 %v2318
      %v2860 = vpop.f32.mrf.mxu0
      %v2861 = vadd.f32 %v2772, %v2860
      %v2862 = vpop.f32.mrf.mxu0
      %v2863 = vadd.f32 %v2774, %v2862
      %2864 = vmatmul.bf16.gmra.mxu0 %v2322
      %v2865 = vpop.f32.mrf.mxu0
      %v2866 = vadd.f32 %v2777, %v2865
      %v2867 = vpop.f32.mrf.mxu0
      %v2868 = vadd.f32 %v2779, %v2867
      %2869 = vmatmul.bf16.gmra.mxu0 %v2326
      %v2870 = vpop.f32.mrf.mxu0
      %v2871 = vadd.f32 %v2782, %v2870
      %v2872 = vpop.f32.mrf.mxu0
      %v2873 = vadd.f32 %v2784, %v2872
      %2874 = vmatmul.bf16.gmra.mxu0 %v2330
      %v2875 = vpop.f32.mrf.mxu0
      %v2876 = vadd.f32 %v2787, %v2875
      %v2877 = vpop.f32.mrf.mxu0
      %v2878 = vadd.f32 %v2789, %v2877
      %2879 = vmatmul.bf16.gmra.mxu0 %v2334
      %v2880 = vpop.f32.mrf.mxu0
      %v2881 = vadd.f32 %v2792, %v2880
      %v2882 = vpop.f32.mrf.mxu0
      %v2883 = vadd.f32 %v2794, %v2882
      %2884 = vmatmul.bf16.gmra.mxu0 %v2338
      %v2885 = vpop.f32.mrf.mxu0
      %v2886 = vadd.f32 %v2797, %v2885
      %v2887 = vpop.f32.mrf.mxu0
      %v2888 = vadd.f32 %v2799, %v2887
      %2889 = vmatmul.bf16.gmra.mxu0 %v2342
      %v2890 = vpop.f32.mrf.mxu0
      %v2891 = vadd.f32 %v2802, %v2890
      %v2892 = vpop.f32.mrf.mxu0
      %v2893 = vadd.f32 %v2804, %v2892
      %2894 = vmatmul.bf16.gmra.mxu0 %v2346
      %v2895 = vpop.f32.mrf.mxu0
      %v2896 = vadd.f32 %v2807, %v2895
      %v2897 = vpop.f32.mrf.mxu0
      %v2898 = vadd.f32 %v2809, %v2897
      %2899 = vmatmul.bf16.gmra.mxu0 %v2350
      %v2900 = vpop.f32.mrf.mxu0
      %v2901 = vadd.f32 %v2812, %v2900
      %v2902 = vpop.f32.mrf.mxu0
      %v2903 = vadd.f32 %v2814, %v2902
      %2904 = vmatmul.bf16.gmra.mxu0 %v2354
      %v2905 = vpop.f32.mrf.mxu0
      %v2906 = vadd.f32 %v2817, %v2905
      %v2907 = vpop.f32.mrf.mxu0
      %v2908 = vadd.f32 %v2819, %v2907
      %2909 = vmatmul.bf16.gmra.mxu0 %v2358
      %v2910 = vpop.f32.mrf.mxu0
      %v2911 = vadd.f32 %v2822, %v2910
      %v2912 = vpop.f32.mrf.mxu0
      %v2913 = vadd.f32 %v2824, %v2912
      %2914 = vmatmul.bf16.gmra.mxu0 %v2362
      %v2915 = vpop.f32.mrf.mxu0
      %v2916 = vadd.f32 %v2827, %v2915
      %v2917 = vpop.f32.mrf.mxu0
      %v2918 = vadd.f32 %v2829, %v2917
      %2919 = vmatmul.bf16.gmra.mxu0 %v2366
      %v2920 = vpop.f32.mrf.mxu0
      %v2921 = vadd.f32 %v2832, %v2920
      %v2922 = vpop.f32.mrf.mxu0
      %v2923 = vadd.f32 %v2834, %v2922
      %2924 = vmatmul.bf16.gmra.mxu0 %v2370
      %v2925 = vpop.f32.mrf.mxu0
      %v2926 = vadd.f32 %v2837, %v2925
      %v2927 = vpop.f32.mrf.mxu0
      %v2928 = vadd.f32 %v2839, %v2927
      %2929 = vmatmul.bf16.gmra.mxu0 %v2374
      %v2930 = vpop.f32.mrf.mxu0
      %v2931 = vadd.f32 %v2842, %v2930
      %v2932 = vpop.f32.mrf.mxu0
      %v2933 = vadd.f32 %v2844, %v2932
      %2934 = vdwg.mxu0
      %2935 = vmatpush.bf16.msra.mxu0 %v2635
      %2936 = vmatpush.bf16.msra.mxu0 %v2634
      %2937 = vmatpush.bf16.msra.mxu0 %v2633
      %2938 = vmatpush.bf16.msra.mxu0 %v2632
      %2939 = vmatpush.bf16.msra.mxu0 %v2631
      %2940 = vmatpush.bf16.msra.mxu0 %v2630
      %2941 = vmatpush.bf16.msra.mxu0 %v2629
      %2942 = vmatpush.bf16.msra.mxu0 %v2628
      %2943 = vmatmul.bf16.gmra.mxu0 %v2315
      %v2944 = vpop.f32.mrf.mxu0
      %v2945 = vadd.f32 %v2856, %v2944
      %v2946 = vpop.f32.mrf.mxu0
      %v2947 = vadd.f32 %v2858, %v2946
      %2948 = vmatmul.bf16.gmra.mxu0 %v2319
      %v2949 = vpop.f32.mrf.mxu0
      %v2950 = vadd.f32 %v2861, %v2949
      %v2951 = vpop.f32.mrf.mxu0
      %v2952 = vadd.f32 %v2863, %v2951
      %2953 = vmatmul.bf16.gmra.mxu0 %v2323
      %v2954 = vpop.f32.mrf.mxu0
      %v2955 = vadd.f32 %v2866, %v2954
      %v2956 = vpop.f32.mrf.mxu0
      %v2957 = vadd.f32 %v2868, %v2956
      %2958 = vmatmul.bf16.gmra.mxu0 %v2327
      %v2959 = vpop.f32.mrf.mxu0
      %v2960 = vadd.f32 %v2871, %v2959
      %v2961 = vpop.f32.mrf.mxu0
      %v2962 = vadd.f32 %v2873, %v2961
      %2963 = vmatmul.bf16.gmra.mxu0 %v2331
      %v2964 = vpop.f32.mrf.mxu0
      %v2965 = vadd.f32 %v2876, %v2964
      %v2966 = vpop.f32.mrf.mxu0
      %v2967 = vadd.f32 %v2878, %v2966
      %2968 = vmatmul.bf16.gmra.mxu0 %v2335
      %v2969 = vpop.f32.mrf.mxu0
      %v2970 = vadd.f32 %v2881, %v2969
      %v2971 = vpop.f32.mrf.mxu0
      %v2972 = vadd.f32 %v2883, %v2971
      %2973 = vmatmul.bf16.gmra.mxu0 %v2339
      %v2974 = vpop.f32.mrf.mxu0
      %v2975 = vadd.f32 %v2886, %v2974
      %v2976 = vpop.f32.mrf.mxu0
      %v2977 = vadd.f32 %v2888, %v2976
      %2978 = vmatmul.bf16.gmra.mxu0 %v2343
      %v2979 = vpop.f32.mrf.mxu0
      %v2980 = vadd.f32 %v2891, %v2979
      %v2981 = vpop.f32.mrf.mxu0
      %v2982 = vadd.f32 %v2893, %v2981
      %2983 = vmatmul.bf16.gmra.mxu0 %v2347
      %v2984 = vpop.f32.mrf.mxu0
      %v2985 = vadd.f32 %v2896, %v2984
      %v2986 = vpop.f32.mrf.mxu0
      %v2987 = vadd.f32 %v2898, %v2986
      %2988 = vmatmul.bf16.gmra.mxu0 %v2351
      %v2989 = vpop.f32.mrf.mxu0
      %v2990 = vadd.f32 %v2901, %v2989
      %v2991 = vpop.f32.mrf.mxu0
      %v2992 = vadd.f32 %v2903, %v2991
      %2993 = vmatmul.bf16.gmra.mxu0 %v2355
      %v2994 = vpop.f32.mrf.mxu0
      %v2995 = vadd.f32 %v2906, %v2994
      %v2996 = vpop.f32.mrf.mxu0
      %v2997 = vadd.f32 %v2908, %v2996
      %2998 = vmatmul.bf16.gmra.mxu0 %v2359
      %v2999 = vpop.f32.mrf.mxu0
      %v3000 = vadd.f32 %v2911, %v2999
      %v3001 = vpop.f32.mrf.mxu0
      %v3002 = vadd.f32 %v2913, %v3001
      %3003 = vmatmul.bf16.gmra.mxu0 %v2363
      %v3004 = vpop.f32.mrf.mxu0
      %v3005 = vadd.f32 %v2916, %v3004
      %v3006 = vpop.f32.mrf.mxu0
      %v3007 = vadd.f32 %v2918, %v3006
      %3008 = vmatmul.bf16.gmra.mxu0 %v2367
      %v3009 = vpop.f32.mrf.mxu0
      %v3010 = vadd.f32 %v2921, %v3009
      %v3011 = vpop.f32.mrf.mxu0
      %v3012 = vadd.f32 %v2923, %v3011
      %3013 = vmatmul.bf16.gmra.mxu0 %v2371
      %v3014 = vpop.f32.mrf.mxu0
      %v3015 = vadd.f32 %v2926, %v3014
      %v3016 = vpop.f32.mrf.mxu0
      %v3017 = vadd.f32 %v2928, %v3016
      %3018 = vmatmul.bf16.gmra.mxu0 %v2375
      %v3019 = vpop.f32.mrf.mxu0
      %v3020 = vadd.f32 %v2931, %v3019
      %v3021 = vpop.f32.mrf.mxu0
      %v3022 = vadd.f32 %v2933, %v3021
      %3023 = vdwg.mxu0
      %v3024 = vadd.f32 %v2444, %v2945
      %v3025 = vadd.f32 %v2445, %v2947
      %v3026 = vadd.f32 %v2446, %v2950
      %v3027 = vadd.f32 %v2447, %v2952
      %v3028 = vadd.f32 %v2448, %v2955
      %v3029 = vadd.f32 %v2449, %v2957
      %v3030 = vadd.f32 %v2450, %v2960
      %v3031 = vadd.f32 %v2451, %v2962
      %v3032 = vadd.f32 %v2452, %v2965
      %v3033 = vadd.f32 %v2453, %v2967
      %v3034 = vadd.f32 %v2454, %v2970
      %v3035 = vadd.f32 %v2455, %v2972
      %v3036 = vadd.f32 %v2456, %v2975
      %v3037 = vadd.f32 %v2457, %v2977
      %v3038 = vadd.f32 %v2458, %v2980
      %v3039 = vadd.f32 %v2459, %v2982
      %v3040 = vadd.f32 %v2460, %v2985
      %v3041 = vadd.f32 %v2461, %v2987
      %v3042 = vadd.f32 %v2462, %v2990
      %v3043 = vadd.f32 %v2463, %v2992
      %v3044 = vadd.f32 %v2464, %v2995
      %v3045 = vadd.f32 %v2465, %v2997
      %v3046 = vadd.f32 %v2466, %v3000
      %v3047 = vadd.f32 %v2467, %v3002
      %v3048 = vadd.f32 %v2468, %v3005
      %v3049 = vadd.f32 %v2469, %v3007
      %v3050 = vadd.f32 %v2470, %v3010
      %v3051 = vadd.f32 %v2471, %v3012
      %v3052 = vadd.f32 %v2472, %v3015
      %v3053 = vadd.f32 %v2473, %v3017
      %v3054 = vadd.f32 %v2474, %v3020
      %v3055 = vadd.f32 %v2475, %v3022
      %3056 = vst [vmem:[#allocation2] sm:$0xff] %v3024
      %3057 = vst [vmem:[#allocation2 + $0x8] sm:$0xff] %v3025
      %3058 = vst [vmem:[#allocation2 + $0x10] sm:$0xff] %v3026
      %3059 = vst [vmem:[#allocation2 + $0x18] sm:$0xff] %v3027
      %3060 = vst [vmem:[#allocation2 + $0x20] sm:$0xff] %v3028
      %3061 = vst [vmem:[#allocation2 + $0x28] sm:$0xff] %v3029
      %3062 = vst [vmem:[#allocation2 + $0x30] sm:$0xff] %v3030
      %3063 = vst [vmem:[#allocation2 + $0x38] sm:$0xff] %v3031
      %3064 = vst [vmem:[#allocation2 + $0x40] sm:$0xff] %v3032
      %3065 = vst [vmem:[#allocation2 + $0x48] sm:$0xff] %v3033
      %3066 = vst [vmem:[#allocation2 + $0x50] sm:$0xff] %v3034
      %3067 = vst [vmem:[#allocation2 + $0x58] sm:$0xff] %v3035
      %3068 = vst [vmem:[#allocation2 + $0x60] sm:$0xff] %v3036
      %3069 = vst [vmem:[#allocation2 + $0x68] sm:$0xff] %v3037
      %3070 = vst [vmem:[#allocation2 + $0x70] sm:$0xff] %v3038
      %3071 = vst [vmem:[#allocation2 + $0x78] sm:$0xff] %v3039
      %3072 = vst [vmem:[#allocation2 + $0x80] sm:$0xff] %v3040
      %3073 = vst [vmem:[#allocation2 + $0x88] sm:$0xff] %v3041
      %3074 = vst [vmem:[#allocation2 + $0x90] sm:$0xff] %v3042
      %3075 = vst [vmem:[#allocation2 + $0x98] sm:$0xff] %v3043
      %3076 = vst [vmem:[#allocation2 + $0xa0] sm:$0xff] %v3044
      %3077 = vst [vmem:[#allocation2 + $0xa8] sm:$0xff] %v3045
      %3078 = vst [vmem:[#allocation2 + $0xb0] sm:$0xff] %v3046
      %3079 = vst [vmem:[#allocation2 + $0xb8] sm:$0xff] %v3047
      %3080 = vst [vmem:[#allocation2 + $0xc0] sm:$0xff] %v3048
      %3081 = vst [vmem:[#allocation2 + $0xc8] sm:$0xff] %v3049
      %3082 = vst [vmem:[#allocation2 + $0xd0] sm:$0xff] %v3050
      %3083 = vst [vmem:[#allocation2 + $0xd8] sm:$0xff] %v3051
      %3084 = vst [vmem:[#allocation2 + $0xe0] sm:$0xff] %v3052
      %3085 = vst [vmem:[#allocation2 + $0xe8] sm:$0xff] %v3053
      %3086 = vst [vmem:[#allocation2 + $0xf0] sm:$0xff] %v3054
      %3087 = vst [vmem:[#allocation2 + $0xf8] sm:$0xff] %v3055
      // Predicated region
      $region33: #{ngcf_forward.2} parent=27 // pred_check
        %p3088 = pneg %p178
      $region34: #{ngcf_forward.2} parent=27 // pred_check_branch
        %3090 = sbr.rel (%p3088) target = $region36
      $region35: #{ngcf_forward.2} parent=27 // pred_region
        %v3091 = vld [vmem:[#allocation2] sm:$0xff]
        %v3092 = vld [vmem:[#allocation2 + $0x8] sm:$0xff]
        %v3093 = vld [vmem:[#allocation2 + $0x10] sm:$0xff]
        %v3094 = vld [vmem:[#allocation2 + $0x18] sm:$0xff]
        %v3095 = vld [vmem:[#allocation2 + $0x20] sm:$0xff]
        %v3096 = vld [vmem:[#allocation2 + $0x28] sm:$0xff]
        %v3097 = vld [vmem:[#allocation2 + $0x30] sm:$0xff]
        %v3098 = vld [vmem:[#allocation2 + $0x38] sm:$0xff]
        %v3099 = vld [vmem:[#allocation2 + $0x40] sm:$0xff]
        %v3100 = vld [vmem:[#allocation2 + $0x48] sm:$0xff]
        %v3101 = vld [vmem:[#allocation2 + $0x50] sm:$0xff]
        %v3102 = vld [vmem:[#allocation2 + $0x58] sm:$0xff]
        %v3103 = vld [vmem:[#allocation2 + $0x60] sm:$0xff]
        %v3104 = vld [vmem:[#allocation2 + $0x68] sm:$0xff]
        %v3105 = vld [vmem:[#allocation2 + $0x70] sm:$0xff]
        %v3106 = vld [vmem:[#allocation2 + $0x78] sm:$0xff]
        %v3107 = vld [vmem:[#allocation2 + $0x80] sm:$0xff]
        %v3108 = vld [vmem:[#allocation2 + $0x88] sm:$0xff]
        %v3109 = vld [vmem:[#allocation2 + $0x90] sm:$0xff]
        %v3110 = vld [vmem:[#allocation2 + $0x98] sm:$0xff]
        %v3111 = vld [vmem:[#allocation2 + $0xa0] sm:$0xff]
        %v3112 = vld [vmem:[#allocation2 + $0xa8] sm:$0xff]
        %v3113 = vld [vmem:[#allocation2 + $0xb0] sm:$0xff]
        %v3114 = vld [vmem:[#allocation2 + $0xb8] sm:$0xff]
        %v3115 = vld [vmem:[#allocation2 + $0xc0] sm:$0xff]
        %v3116 = vld [vmem:[#allocation2 + $0xc8] sm:$0xff]
        %v3117 = vld [vmem:[#allocation2 + $0xd0] sm:$0xff]
        %v3118 = vld [vmem:[#allocation2 + $0xd8] sm:$0xff]
        %v3119 = vld [vmem:[#allocation2 + $0xe0] sm:$0xff]
        %v3120 = vld [vmem:[#allocation2 + $0xe8] sm:$0xff]
        %v3121 = vld [vmem:[#allocation2 + $0xf0] sm:$0xff]
        %v3122 = vld [vmem:[#allocation2 + $0xf8] sm:$0xff]
        %3123 = vst [vmem:[%s176] sm:$0xff] %v3091
        %3124 = vst [vmem:[%s176 + $0x8] sm:$0xff] %v3092
        %3125 = vst [vmem:[%s176 + $0x10] sm:$0xff] %v3093
        %3126 = vst [vmem:[%s176 + $0x18] sm:$0xff] %v3094
        %3127 = vst [vmem:[%s176 + $0x20] sm:$0xff] %v3095
        %3128 = vst [vmem:[%s176 + $0x28] sm:$0xff] %v3096
        %3129 = vst [vmem:[%s176 + $0x30] sm:$0xff] %v3097
        %3130 = vst [vmem:[%s176 + $0x38] sm:$0xff] %v3098
        %3131 = vst [vmem:[%s176 + $0x40] sm:$0xff] %v3099
        %3132 = vst [vmem:[%s176 + $0x48] sm:$0xff] %v3100
        %3133 = vst [vmem:[%s176 + $0x50] sm:$0xff] %v3101
        %3134 = vst [vmem:[%s176 + $0x58] sm:$0xff] %v3102
        %3135 = vst [vmem:[%s176 + $0x60] sm:$0xff] %v3103
        %3136 = vst [vmem:[%s176 + $0x68] sm:$0xff] %v3104
        %3137 = vst [vmem:[%s176 + $0x70] sm:$0xff] %v3105
        %3138 = vst [vmem:[%s176 + $0x78] sm:$0xff] %v3106
        %3139 = vst [vmem:[%s176 + $0x80] sm:$0xff] %v3107
        %3140 = vst [vmem:[%s176 + $0x88] sm:$0xff] %v3108
        %3141 = vst [vmem:[%s176 + $0x90] sm:$0xff] %v3109
        %3142 = vst [vmem:[%s176 + $0x98] sm:$0xff] %v3110
        %3143 = vst [vmem:[%s176 + $0xa0] sm:$0xff] %v3111
        %3144 = vst [vmem:[%s176 + $0xa8] sm:$0xff] %v3112
        %3145 = vst [vmem:[%s176 + $0xb0] sm:$0xff] %v3113
        %3146 = vst [vmem:[%s176 + $0xb8] sm:$0xff] %v3114
        %3147 = vst [vmem:[%s176 + $0xc0] sm:$0xff] %v3115
        %3148 = vst [vmem:[%s176 + $0xc8] sm:$0xff] %v3116
        %3149 = vst [vmem:[%s176 + $0xd0] sm:$0xff] %v3117
        %3150 = vst [vmem:[%s176 + $0xd8] sm:$0xff] %v3118
        %3151 = vst [vmem:[%s176 + $0xe0] sm:$0xff] %v3119
        %3152 = vst [vmem:[%s176 + $0xe8] sm:$0xff] %v3120
        %3153 = vst [vmem:[%s176 + $0xf0] sm:$0xff] %v3121
        %3154 = vst [vmem:[%s176 + $0xf8] sm:$0xff] %v3122
      $region36: #{ngcf_forward.2} parent=27 // pred_fallthru
        _
      %s3155 = smul.u32 32, %s17
      %p3156 = scmp.lt.s32.totalorder %s3155, 63
      %s3157 = scalar_select %p3156, %s3155, 63
      %s3158 = smul.addr %s3157, 8
      %s3159 = scalar_lea.vmem %s2, %s3158
      // Predicated region
      $region37: #{ngcf_forward.2} parent=27 // pred_check
        %p3160 = pneg %p92
      $region38: #{ngcf_forward.2} parent=27 // pred_check_branch
        %3162 = sbr.rel (%p3160) target = $region40
      $region39: #{ngcf_forward.2} parent=27 // pred_region
        %s3163 = smul.u32 32, %s17
      $region40: #{ngcf_forward.2} parent=27 // pred_fallthru
        _
    $region28: #{ngcf_forward.2} parent=5 // pred_fallthru
      _
    %p3164 = scmp.le.s32.totalorder 2, %s8
    // Predicated region
    $region41: #{ngcf_forward.2} parent=5 // pred_check
      %p3165 = pneg %p3164
    $region42: #{ngcf_forward.2} parent=5 // pred_check_branch
      %3167 = sbr.rel (%p3165) target = $region44
    $region43: #{ngcf_forward.2} parent=5 // pred_region
      %s3168 = ssub.s32 %s8, 2
      // Predicated region
      $region45: #{ngcf_forward.2} parent=43 // pred_check
        %p3169 = pneg %p98
      $region46: #{ngcf_forward.2} parent=43 // pred_check_branch
        %3171 = sbr.rel (%p3169) target = $region48
      $region47: #{ngcf_forward.2} parent=43 // pred_region
        %s3172 = smul.u32 32, %s19
        %p3173 = scmp.lt.s32.totalorder %s3172, 63
        %s3174 = scalar_select %p3173, %s3172, 63
        %s3175 = smul.addr %s3174, 8
        %s3176 = scalar_lea.vmem %s2, %s3175
      $region48: #{ngcf_forward.2} parent=43 // pred_fallthru
        _
    $region44: #{ngcf_forward.2} parent=5 // pred_fallthru
      _
  $region6: #{ngcf_forward.2} parent=0 // loop_footer
    %s12 = sadd.s32 1, %s8
  $region7: #{ngcf_forward.2} parent=0 // loop_footer_branch
    %7 = sbr.rel target = $region3
  $region8: #{ngcf_forward.2} parent=0 // loop_exit
    _

</llo_original>
